<compile_context>
chip_gen: v7x
topology: tpu7x:2x2x1
jax: 0.10.0
libtpu: 0.0.40
codegen_flags: <defaults>
</compile_context>

<pallas_src>
import functools

import jax
import jax.numpy as jnp
from jax.experimental import pallas as pl
from jax.experimental.pallas import tpu as pltpu

# ----------------------------- small config -----------------------------
B = 2                         # batch
C = 3                         # image channels
H = W = 32                    # image size
PATCH = 16                    # patch size (conv kernel = stride = PATCH)
NUM_PATCHES = (H // PATCH) * (W // PATCH)     # 4
S = NUM_PATCHES + 1           # real tokens per image = cls + patches = 5
NPB = NUM_PATCHES * B         # real patch rows total = 8 (sublane aligned)
SP = 8                        # padded tokens per image
BSP = B * SP                  # 16 rows of the flattened token tensor
D = 64                        # embedding dim (scaled down from in_planes=768)
HEADS = 4
DH = D // HEADS
DEPTH = 2
MLP = 4 * D
NUM_CLASSES = 8
OUT_ROWS = 8                  # sublane-padded output rows
OUT_LANES = 2 * D             # 128 lanes: [0:64)=score(pad), [64:128)=global_feat
CAM_NUM = 3
SIE_COE = 3.0                 # cfg.MODEL.SIE_COE
CPP = C * PATCH * PATCH       # im2col patch length = 768


# ----------------------------- fused Pallas kernel -----------------------------
def _fused_forward_kernel(
    patches_ref, add_ref, bias_ref, patch_w_ref,
    ln1_g_ref, ln1_b_ref, wq_ref, wk_ref, wv_ref, qb_ref, kb_ref, vb_ref,
    proj_w_ref, proj_b_ref, ln2_g_ref, ln2_b_ref,
    fc1_w_ref, fc1_b_ref, fc2_w_ref, fc2_b_ref,
    norm_g_ref, norm_b_ref, bn_g_ref, bn_b_ref, cls_w_ref,
    out_ref, x_ref):
    f32 = jnp.float32
    bf16 = jnp.bfloat16
    d = pl.program_id(0)

    def layernorm(v, g, b, eps=1e-6):
        mu = jnp.mean(v, axis=-1, keepdims=True)
        var = jnp.mean((v - mu) ** 2, axis=-1, keepdims=True)
        return (v - mu) * jax.lax.rsqrt(var + eps) * g + b

    def erf(z):
        # Abramowitz & Stegun 7.1.26, |err| <= 1.5e-7 (f32-exact) -> matches
        # torch.nn.GELU's exact erf GELU without relying on a lax.erf lowering.
        a1, a2, a3, a4, a5 = (0.254829592, -0.284496736, 1.421413741,
                              -1.453152027, 1.061405429)
        p = 0.3275911
        az = jnp.abs(z)
        t = 1.0 / (1.0 + p * az)
        poly = ((((a5 * t + a4) * t + a3) * t + a2) * t + a1) * t
        e = 1.0 - poly * jnp.exp(-az * az)
        return jnp.where(z < 0, -e, e)

    def gelu_exact(v):
        return 0.5 * v * (1.0 + erf(v * 0.7071067811865476))

    # --- layer-0 prologue: patch embedding (real patch rows only) + additive
    #     cls/pos/SIE embedding (pre-folded into add_ref by the wrapper) ---
    @pl.when(d == 0)
    def _():
        pe = jnp.dot(patches_ref[...].astype(bf16), patch_w_ref[...],
                     preferred_element_type=f32)                     # (NPB, D)
        x_ref[...] = add_ref[...] + jnp.concatenate(
            [pe, jnp.zeros((BSP - NPB, D), f32)], axis=0)

    bias = bias_ref[...]                       # (BSP, BSP) additive attn mask

    # ---------------- transformer block d: pre-LN MHSA ----------------
    xv = x_ref[...]
    h = layernorm(xv, ln1_g_ref[...], ln1_b_ref[...])
    hb = h.astype(bf16)
    acc = xv
    for hh in range(HEADS):                    # per-head weights -> no activation lane slices
        q = jnp.dot(hb, wq_ref[hh], preferred_element_type=f32) + qb_ref[hh]
        k = jnp.dot(hb, wk_ref[hh], preferred_element_type=f32) + kb_ref[hh]
        v = jnp.dot(hb, wv_ref[hh], preferred_element_type=f32) + vb_ref[hh]
        # contract on k's last dim: no explicit k.T (XLU transpose) needed
        s = jax.lax.dot_general(q, k, (((1,), (1,)), ((), ())),
                                preferred_element_type=f32) + bias
        m = jnp.max(s, axis=-1, keepdims=True)
        p = jnp.exp(s - m)
        p = p * pl.reciprocal(jnp.sum(p, axis=-1, keepdims=True), approx=True)
        o = jnp.dot(p, v, preferred_element_type=f32)               # (BSP, DH)
        # concat(heads) @ proj_w == sum_h head_h @ proj_w[h]  (no lane concat)
        acc = acc + jnp.dot(o.astype(bf16), proj_w_ref[hh],
                            preferred_element_type=f32)
    xv = acc + proj_b_ref[...]

    # ---------------------------- MLP (pre-LN) ---------------------------
    h = layernorm(xv, ln2_g_ref[...], ln2_b_ref[...])
    h = jnp.dot(h.astype(bf16), fc1_w_ref[...],
                preferred_element_type=f32) + fc1_b_ref[...]
    h = gelu_exact(h)
    xv = xv + jnp.dot(h.astype(bf16), fc2_w_ref[...],
                      preferred_element_type=f32) + fc2_b_ref[...]
    x_ref[...] = xv

    # --- last-layer epilogue: final LN on cls rows, BN bottleneck, classifier ---
    @pl.when(d == DEPTH - 1)
    def _():
        gf = xv[NPB:NPB + B, :]                              # contiguous cls rows
        gf = layernorm(gf, norm_g_ref[...], norm_b_ref[...])
        # bottleneck BatchNorm1d, training mode (batch stats, biased variance,
        # beta frozen at 0 via weights_init_kaiming)
        mu = jnp.mean(gf, axis=0, keepdims=True)
        var = jnp.mean((gf - mu) ** 2, axis=0, keepdims=True)
        feat = (gf - mu) * jax.lax.rsqrt(var + 1e-5) * bn_g_ref[...] + bn_b_ref[...]
        # classifier (Linear, bias=False), padded to 64 lanes
        score = jnp.dot(feat, cls_w_ref[...], preferred_element_type=f32)  # (B, D)
        merged = jnp.concatenate([score, gf], axis=-1)                     # (B, 128)
        out_ref[...] = jnp.concatenate(
            [merged, jnp.zeros((OUT_ROWS - B, OUT_LANES), f32)], axis=0)


def _const_spec(shape):
    nz = (0,) * len(shape)
    return pl.BlockSpec(shape, lambda d, _z=nz: _z)


def _layer_spec(shape):
    # full array has a leading DEPTH axis; squeeze it out of the kernel view
    block = (None,) + tuple(shape[1:])
    nz = (0,) * (len(shape) - 1)
    return pl.BlockSpec(block, lambda d, _z=nz: (d,) + _z)


# ----------------------------- forward (glue = input/param prep only) -----------------------------
def build_transformer_forward(params, x, cam_label, training=True):
    f32 = jnp.float32
    bf16 = jnp.bfloat16
    Bn = x.shape[0]
    assert Bn == B

    # one-time im2col of the NCHW image; real patch rows only (row = b*NP + p)
    patches = x.reshape(Bn, C, H // PATCH, PATCH, W // PATCH, PATCH)
    patches = patches.transpose(0, 2, 4, 1, 3, 5).reshape(Bn * NUM_PATCHES, CPP)

    # additive token embedding: pos embed + SIE camera embedding, patch-embed
    # bias folded into the patch rows, cls token folded into the cls rows
    sie = SIE_COE * params["sie_embed"][cam_label][:, 0, :]                 # (B, D)
    patch_add = (params["pos_embed"][0, 1:1 + NUM_PATCHES][None] +
                 params["patch_b"][None, None, :] + sie[:, None, :])        # (B, NP, D)
    cls_add = (params["cls_token"][0, 0][None, :] +
               params["pos_embed"][0, 0][None, :] + sie)                    # (B, D)
    add = jnp.concatenate(
        [patch_add.reshape(Bn * NUM_PATCHES, D), cls_add,
         jnp.zeros((BSP - NPB - Bn, D), f32)], axis=0)                      # (BSP, D)

    # additive attention mask: per-image blocks, padded key tokens masked out
    r = jnp.arange(BSP)
    img = jnp.where(r < NPB, r // NUM_PATCHES,
                    jnp.where(r < NPB + Bn, r - NPB, -1))
    keyok = img[None, :] >= 0
    attn_bias = jnp.where((img[:, None] == img[None, :]) & keyok,
                          0.0, -1e30).astype(f32)

    # per-head Q/K/V/proj weights, attention scale folded into Q, bf16 weights
    scale = float(DH) ** -0.5
    qkv_w, qkv_b = params["qkv_w"], params["qkv_b"]

    def split_w(w):   # (DEPTH, D, D) -> (DEPTH, HEADS, D, DH)
        return w.reshape(DEPTH, D, HEADS, DH).transpose(0, 2, 1, 3)

    def split_b(b):   # (DEPTH, 1, D) -> (DEPTH, HEADS, 1, DH)
        return b.reshape(DEPTH, 1, HEADS, DH).transpose(0, 2, 1, 3)

    wq = (split_w(qkv_w[:, :, :D]) * scale).astype(bf16)
    wk = split_w(qkv_w[:, :, D:2 * D]).astype(bf16)
    wv = split_w(qkv_w[:, :, 2 * D:]).astype(bf16)
    qb = split_b(qkv_b[:, :, :D]) * scale
    kb = split_b(qkv_b[:, :, D:2 * D])
    vb = split_b(qkv_b[:, :, 2 * D:])
    proj_w_h = params["proj_w"].reshape(DEPTH, HEADS, DH, D).astype(bf16)

    # classifier weight padded to 64 lanes (merged 128-lane output)
    cls_w_pad = jnp.zeros((D, D), f32).at[:, :NUM_CLASSES].set(params["cls_w"])

    ins = (patches, add, attn_bias, params["patch_w"].astype(bf16),
           params["ln1_g"], params["ln1_b"], wq, wk, wv, qb, kb, vb,
           proj_w_h, params["proj_b"], params["ln2_g"], params["ln2_b"],
           params["fc1_w"].astype(bf16), params["fc1_b"],
           params["fc2_w"].astype(bf16), params["fc2_b"],
           params["norm_g"], params["norm_b"], params["bn_g"], params["bn_b"],
           cls_w_pad)

    const_idx = {0, 1, 2, 3, 20, 21, 22, 23, 24}   # layer-invariant inputs
    in_specs = [
        _const_spec(a.shape) if i in const_idx else _layer_spec(a.shape)
        for i, a in enumerate(ins)
    ]

    out = pl.pallas_call(
        _fused_forward_kernel,
        out_shape=jax.ShapeDtypeStruct((OUT_ROWS, OUT_LANES), f32),
        grid_spec=pltpu.PrefetchScalarGridSpec(
            num_scalar_prefetch=0,
            grid=(DEPTH,),                                   # stream per-layer weights
            in_specs=in_specs,
            out_specs=pl.BlockSpec((OUT_ROWS, OUT_LANES), lambda d: (0, 0)),
            scratch_shapes=[pltpu.VMEM((BSP, D), jnp.float32)]),
        compiler_params=pltpu.CompilerParams(
            dimension_semantics=("arbitrary",)),             # layer axis is sequential
    )(*ins)

    global_feat = out[:Bn, D:2 * D]
    if training:
        cls_score = out[:Bn, :NUM_CLASSES]
        return cls_score, global_feat
    # eval, cfg.TEST.NECK_FEAT == 'before'
    return global_feat
    # TODO(synk): load_param (pretrained checkpoint loading) has no Pallas
    # equivalent; backbone weights are synthetic deterministic init instead.
    # TODO(synk): BatchNorm1d running-stat tracking / eval-mode statistics are
    # not implemented (training-mode batch statistics only).


# ----------------------------- parameter init -----------------------------
def init_params(key):
    keys = jax.random.split(key, 16)
    it = iter(keys)

    def nrm(shape, std):
        return std * jax.random.normal(next(it), shape, jnp.float32)

    params = {
        # conv weight kaiming fan_in stand-in, reshaped to (C*P*P, D)
        "patch_w": nrm((CPP, D), (2.0 / CPP) ** 0.5),
        "patch_b": jnp.zeros((D,), jnp.float32),
        "cls_token": nrm((1, 1, D), 0.02),
        "pos_embed": nrm((1, S, D), 0.02),
        "sie_embed": nrm((CAM_NUM, 1, D), 0.02),
        "norm_g": jnp.ones((1, D), jnp.float32),
        "norm_b": jnp.zeros((1, D), jnp.float32),
        # bottleneck BN: weights_init_kaiming -> weight=1, bias=0 (frozen)
        "bn_g": jnp.ones((1, D), jnp.float32),
        "bn_b": jnp.zeros((1, D), jnp.float32),
        # classifier: weights_init_classifier -> normal std=0.001, no bias
        "cls_w": nrm((D, NUM_CLASSES), 0.001),
        # per-block parameters stacked along a leading DEPTH axis
        "ln1_g": jnp.ones((DEPTH, 1, D), jnp.float32),
        "ln1_b": jnp.zeros((DEPTH, 1, D), jnp.float32),
        "qkv_w": nrm((DEPTH, D, 3 * D), 0.02),
        "qkv_b": jnp.zeros((DEPTH, 1, 3 * D), jnp.float32),
        "proj_w": nrm((DEPTH, D, D), 0.02),
        "proj_b": jnp.zeros((DEPTH, 1, D), jnp.float32),
        "ln2_g": jnp.ones((DEPTH, 1, D), jnp.float32),
        "ln2_b": jnp.zeros((DEPTH, 1, D), jnp.float32),
        "fc1_w": nrm((DEPTH, D, MLP), 0.02),
        "fc1_b": jnp.zeros((DEPTH, 1, MLP), jnp.float32),
        "fc2_w": nrm((DEPTH, MLP, D), 0.02),
        "fc2_b": jnp.zeros((DEPTH, 1, D), jnp.float32),
    }
    return params


# ----------------------------- main -----------------------------
if __name__ == "__main__":
    key = jax.random.PRNGKey(0)
    pkey, xkey = jax.random.split(key)
    params = init_params(pkey)

    x = jax.random.normal(xkey, (B, C, H, W), jnp.float32)   # NCHW, like PyTorch
    cam_label = jnp.array([0, 2], dtype=jnp.int32)

    fwd = jax.jit(functools.partial(build_transformer_forward, training=True))
    cls_score, global_feat = fwd(params, x, cam_label)
    jax.block_until_ready((cls_score, global_feat))

    assert cls_score.shape == (B, NUM_CLASSES), cls_score.shape
    assert global_feat.shape == (B, D), global_feat.shape
    assert bool(jnp.all(jnp.isfinite(cls_score))) and bool(jnp.all(jnp.isfinite(global_feat)))
    print("KERNEL_OK")
</pallas_src>

<mosaic_0001>
module attributes {stable_mosaic.version = 11 : i64} {
  func.func @_fused_forward_kernel(%arg0: i32, %arg1: memref<8x768xf32, #tpu.memory_space<vmem>>, %arg2: memref<16x64xf32, #tpu.memory_space<vmem>>, %arg3: memref<16x16xf32, #tpu.memory_space<vmem>>, %arg4: memref<768x64xbf16, #tpu.memory_space<vmem>>, %arg5: memref<1x1x64xf32, #tpu.memory_space<vmem>>, %arg6: memref<1x1x64xf32, #tpu.memory_space<vmem>>, %arg7: memref<1x4x64x16xbf16, #tpu.memory_space<vmem>>, %arg8: memref<1x4x64x16xbf16, #tpu.memory_space<vmem>>, %arg9: memref<1x4x64x16xbf16, #tpu.memory_space<vmem>>, %arg10: memref<1x4x1x16xf32, #tpu.memory_space<vmem>>, %arg11: memref<1x4x1x16xf32, #tpu.memory_space<vmem>>, %arg12: memref<1x4x1x16xf32, #tpu.memory_space<vmem>>, %arg13: memref<1x4x16x64xbf16, #tpu.memory_space<vmem>>, %arg14: memref<1x1x64xf32, #tpu.memory_space<vmem>>, %arg15: memref<1x1x64xf32, #tpu.memory_space<vmem>>, %arg16: memref<1x1x64xf32, #tpu.memory_space<vmem>>, %arg17: memref<1x64x256xbf16, #tpu.memory_space<vmem>>, %arg18: memref<1x1x256xf32, #tpu.memory_space<vmem>>, %arg19: memref<1x256x64xbf16, #tpu.memory_space<vmem>>, %arg20: memref<1x1x64xf32, #tpu.memory_space<vmem>>, %arg21: memref<1x64xf32, #tpu.memory_space<vmem>>, %arg22: memref<1x64xf32, #tpu.memory_space<vmem>>, %arg23: memref<1x64xf32, #tpu.memory_space<vmem>>, %arg24: memref<1x64xf32, #tpu.memory_space<vmem>>, %arg25: memref<64x64xf32, #tpu.memory_space<vmem>>, %arg26: memref<8x128xf32, #tpu.memory_space<vmem>>, %arg27: memref<16x64xf32, #tpu.memory_space<vmem>>) attributes {dimension_semantics = [#tpu.dimension_semantics<arbitrary>], iteration_bounds = array<i64: 2>, scalar_prefetch = 0 : i64, scratch_operands = 1 : i64, tpu.core_type = #tpu.core_type<tc>, window_params = [{pipeline_mode = #tpu.pipeline_mode<synchronous>, transform_indices = @transform_0, window_bounds = array<i64: 8, 768>}, {pipeline_mode = #tpu.pipeline_mode<synchronous>, transform_indices = @transform_1, window_bounds = array<i64: 16, 64>}, {pipeline_mode = #tpu.pipeline_mode<synchronous>, transform_indices = @transform_2, window_bounds = array<i64: 16, 16>}, {pipeline_mode = #tpu.pipeline_mode<synchronous>, transform_indices = @transform_3, window_bounds = array<i64: 768, 64>}, {transform_indices = @transform_4, window_bounds = array<i64: 1, 1, 64>}, {transform_indices = @transform_5, window_bounds = array<i64: 1, 1, 64>}, {transform_indices = @transform_6, window_bounds = array<i64: 1, 4, 64, 16>}, {transform_indices = @transform_7, window_bounds = array<i64: 1, 4, 64, 16>}, {transform_indices = @transform_8, window_bounds = array<i64: 1, 4, 64, 16>}, {transform_indices = @transform_9, window_bounds = array<i64: 1, 4, 1, 16>}, {transform_indices = @transform_10, window_bounds = array<i64: 1, 4, 1, 16>}, {transform_indices = @transform_11, window_bounds = array<i64: 1, 4, 1, 16>}, {transform_indices = @transform_12, window_bounds = array<i64: 1, 4, 16, 64>}, {transform_indices = @transform_13, window_bounds = array<i64: 1, 1, 64>}, {transform_indices = @transform_14, window_bounds = array<i64: 1, 1, 64>}, {transform_indices = @transform_15, window_bounds = array<i64: 1, 1, 64>}, {transform_indices = @transform_16, window_bounds = array<i64: 1, 64, 256>}, {transform_indices = @transform_17, window_bounds = array<i64: 1, 1, 256>}, {transform_indices = @transform_18, window_bounds = array<i64: 1, 256, 64>}, {transform_indices = @transform_19, window_bounds = array<i64: 1, 1, 64>}, {pipeline_mode = #tpu.pipeline_mode<synchronous>, transform_indices = @transform_20, window_bounds = array<i64: 1, 64>}, {pipeline_mode = #tpu.pipeline_mode<synchronous>, transform_indices = @transform_21, window_bounds = array<i64: 1, 64>}, {pipeline_mode = #tpu.pipeline_mode<synchronous>, transform_indices = @transform_22, window_bounds = array<i64: 1, 64>}, {pipeline_mode = #tpu.pipeline_mode<synchronous>, transform_indices = @transform_23, window_bounds = array<i64: 1, 64>}, {pipeline_mode = #tpu.pipeline_mode<synchronous>, transform_indices = @transform_24, window_bounds = array<i64: 64, 64>}, {pipeline_mode = #tpu.pipeline_mode<synchronous>, transform_indices = @transform_25, window_bounds = array<i64: 8, 128>}]} {
    %c0_i32 = arith.constant 0 : i32
    %0 = arith.cmpi eq, %arg0, %c0_i32 : i32
    %1 = arith.extui %0 : i1 to i32
    %c0_i32_0 = arith.constant 0 : i32
    %2 = arith.cmpi ne, %1, %c0_i32_0 : i32
    scf.if %2 {
      %c0_201 = arith.constant 0 : index
      %c0_202 = arith.constant 0 : index
      %279 = vector.load %arg1[%c0_201, %c0_202] : memref<8x768xf32, #tpu.memory_space<vmem>>, vector<8x768xf32>
      %280 = arith.truncf %279 : vector<8x768xf32> to vector<8x768xbf16>
      %c0_203 = arith.constant 0 : index
      %c0_204 = arith.constant 0 : index
      %281 = vector.load %arg4[%c0_203, %c0_204] : memref<768x64xbf16, #tpu.memory_space<vmem>>, vector<768x64xbf16>
      %cst_205 = arith.constant dense<0.000000e+00> : vector<8x64xf32>
      %282 = tpu.matmul %280, %281, %cst_205 {dimension_numbers = #tpu.dot_dimension_numbers<[1], [0], [0], [1], [0, 0, 1, 1], [], []>} : vector<8x768xbf16>, vector<768x64xbf16>, vector<8x64xf32> -> vector<8x64xf32>
      %c0_206 = arith.constant 0 : index
      %c0_207 = arith.constant 0 : index
      %283 = vector.load %arg2[%c0_206, %c0_207] : memref<16x64xf32, #tpu.memory_space<vmem>>, vector<16x64xf32>
      %cst_208 = arith.constant 0.000000e+00 : f32
      %284 = vector.broadcast %cst_208 : f32 to vector<8x64xf32>
      %285 = tpu.concatenate %282, %284 in 0 : vector<8x64xf32>, vector<8x64xf32> -> vector<16x64xf32>
      %286 = arith.addf %283, %285 : vector<16x64xf32>
      %c0_209 = arith.constant 0 : index
      %c0_210 = arith.constant 0 : index
      %287 = vector.load %arg27[%c0_209, %c0_210] : memref<16x64xf32, #tpu.memory_space<vmem>>, vector<16x64xf32>
      tpu.vector_store %arg27[%c0_209, %c0_210], %286 {strides = array<i32>} : memref<16x64xf32, #tpu.memory_space<vmem>>, vector<16x64xf32>,
    } else {
    }
    %c0 = arith.constant 0 : index
    %c0_1 = arith.constant 0 : index
    %3 = vector.load %arg3[%c0, %c0_1] : memref<16x16xf32, #tpu.memory_space<vmem>>, vector<16x16xf32>
    %c0_2 = arith.constant 0 : index
    %c0_3 = arith.constant 0 : index
    %4 = vector.load %arg27[%c0_2, %c0_3] : memref<16x64xf32, #tpu.memory_space<vmem>>, vector<16x64xf32>
    %c0_4 = arith.constant 0 : index
    %c0_5 = arith.constant 0 : index
    %c0_6 = arith.constant 0 : index
    %5 = vector.load %arg5[%c0_4, %c0_5, %c0_6] : memref<1x1x64xf32, #tpu.memory_space<vmem>>, vector<1x1x64xf32>
    %6 = vector.shape_cast %5 : vector<1x1x64xf32> to vector<1x64xf32>
    %c0_7 = arith.constant 0 : index
    %c0_8 = arith.constant 0 : index
    %c0_9 = arith.constant 0 : index
    %7 = vector.load %arg6[%c0_7, %c0_8, %c0_9] : memref<1x1x64xf32, #tpu.memory_space<vmem>>, vector<1x1x64xf32>
    %8 = vector.shape_cast %7 : vector<1x1x64xf32> to vector<1x64xf32>
    %cst = arith.constant dense<0.000000e+00> : vector<16xf32>
    %9 = vector.multi_reduction <add>, %4, %cst [1] : vector<16x64xf32> to vector<16xf32>
    %10 = vector.shape_cast %9 : vector<16xf32> to vector<16x1xf32>
    %cst_10 = arith.constant 6.400000e+01 : f32
    %11 = vector.broadcast %cst_10 : f32 to vector<16x1xf32>
    %12 = arith.divf %10, %11 : vector<16x1xf32>
    %13 = vector.broadcast %12 : vector<16x1xf32> to vector<16x64xf32>
    %14 = arith.subf %4, %13 : vector<16x64xf32>
    %15 = arith.mulf %14, %14 : vector<16x64xf32>
    %cst_11 = arith.constant dense<0.000000e+00> : vector<16xf32>
    %16 = vector.multi_reduction <add>, %15, %cst_11 [1] : vector<16x64xf32> to vector<16xf32>
    %17 = vector.shape_cast %16 : vector<16xf32> to vector<16x1xf32>
    %cst_12 = arith.constant 6.400000e+01 : f32
    %18 = vector.broadcast %cst_12 : f32 to vector<16x1xf32>
    %19 = arith.divf %17, %18 : vector<16x1xf32>
    %20 = vector.broadcast %12 : vector<16x1xf32> to vector<16x64xf32>
    %21 = arith.subf %4, %20 : vector<16x64xf32>
    %cst_13 = arith.constant 9.99999997E-7 : f32
    %22 = vector.broadcast %cst_13 : f32 to vector<16x1xf32>
    %23 = arith.addf %19, %22 : vector<16x1xf32>
    %24 = math.rsqrt %23 : vector<16x1xf32>
    %25 = vector.broadcast %24 : vector<16x1xf32> to vector<16x64xf32>
    %26 = arith.mulf %21, %25 : vector<16x64xf32>
    %27 = vector.broadcast %6 : vector<1x64xf32> to vector<16x64xf32>
    %28 = arith.mulf %26, %27 : vector<16x64xf32>
    %29 = vector.broadcast %8 : vector<1x64xf32> to vector<16x64xf32>
    %30 = arith.addf %28, %29 : vector<16x64xf32>
    %31 = arith.truncf %30 : vector<16x64xf32> to vector<16x64xbf16>
    %c0_14 = arith.constant 0 : index
    %c0_15 = arith.constant 0 : index
    %c0_16 = arith.constant 0 : index
    %c0_17 = arith.constant 0 : index
    %32 = vector.load %arg7[%c0_14, %c0_15, %c0_16, %c0_17] : memref<1x4x64x16xbf16, #tpu.memory_space<vmem>>, vector<1x1x64x16xbf16>
    %33 = vector.shape_cast %32 : vector<1x1x64x16xbf16> to vector<64x16xbf16>
    %cst_18 = arith.constant dense<0.000000e+00> : vector<16x16xf32>
    %34 = tpu.matmul %31, %33, %cst_18 {dimension_numbers = #tpu.dot_dimension_numbers<[1], [0], [0], [1], [0, 0, 1, 1], [], []>} : vector<16x64xbf16>, vector<64x16xbf16>, vector<16x16xf32> -> vector<16x16xf32>
    %c0_19 = arith.constant 0 : index
    %c0_20 = arith.constant 0 : index
    %c0_21 = arith.constant 0 : index
    %c0_22 = arith.constant 0 : index
    %35 = vector.load %arg10[%c0_19, %c0_20, %c0_21, %c0_22] : memref<1x4x1x16xf32, #tpu.memory_space<vmem>>, vector<1x1x1x16xf32>
    %36 = vector.shape_cast %35 : vector<1x1x1x16xf32> to vector<1x16xf32>
    %37 = vector.broadcast %36 : vector<1x16xf32> to vector<16x16xf32>
    %38 = arith.addf %34, %37 : vector<16x16xf32>
    %c0_23 = arith.constant 0 : index
    %c0_24 = arith.constant 0 : index
    %c0_25 = arith.constant 0 : index
    %c0_26 = arith.constant 0 : index
    %39 = vector.load %arg8[%c0_23, %c0_24, %c0_25, %c0_26] : memref<1x4x64x16xbf16, #tpu.memory_space<vmem>>, vector<1x1x64x16xbf16>
    %40 = vector.shape_cast %39 : vector<1x1x64x16xbf16> to vector<64x16xbf16>
    %cst_27 = arith.constant dense<0.000000e+00> : vector<16x16xf32>
    %41 = tpu.matmul %31, %40, %cst_27 {dimension_numbers = #tpu.dot_dimension_numbers<[1], [0], [0], [1], [0, 0, 1, 1], [], []>} : vector<16x64xbf16>, vector<64x16xbf16>, vector<16x16xf32> -> vector<16x16xf32>
    %c0_28 = arith.constant 0 : index
    %c0_29 = arith.constant 0 : index
    %c0_30 = arith.constant 0 : index
    %c0_31 = arith.constant 0 : index
    %42 = vector.load %arg11[%c0_28, %c0_29, %c0_30, %c0_31] : memref<1x4x1x16xf32, #tpu.memory_space<vmem>>, vector<1x1x1x16xf32>
    %43 = vector.shape_cast %42 : vector<1x1x1x16xf32> to vector<1x16xf32>
    %44 = vector.broadcast %43 : vector<1x16xf32> to vector<16x16xf32>
    %45 = arith.addf %41, %44 : vector<16x16xf32>
    %c0_32 = arith.constant 0 : index
    %c0_33 = arith.constant 0 : index
    %c0_34 = arith.constant 0 : index
    %c0_35 = arith.constant 0 : index
    %46 = vector.load %arg9[%c0_32, %c0_33, %c0_34, %c0_35] : memref<1x4x64x16xbf16, #tpu.memory_space<vmem>>, vector<1x1x64x16xbf16>
    %47 = vector.shape_cast %46 : vector<1x1x64x16xbf16> to vector<64x16xbf16>
    %cst_36 = arith.constant dense<0.000000e+00> : vector<16x16xf32>
    %48 = tpu.matmul %31, %47, %cst_36 {dimension_numbers = #tpu.dot_dimension_numbers<[1], [0], [0], [1], [0, 0, 1, 1], [], []>} : vector<16x64xbf16>, vector<64x16xbf16>, vector<16x16xf32> -> vector<16x16xf32>
    %c0_37 = arith.constant 0 : index
    %c0_38 = arith.constant 0 : index
    %c0_39 = arith.constant 0 : index
    %c0_40 = arith.constant 0 : index
    %49 = vector.load %arg12[%c0_37, %c0_38, %c0_39, %c0_40] : memref<1x4x1x16xf32, #tpu.memory_space<vmem>>, vector<1x1x1x16xf32>
    %50 = vector.shape_cast %49 : vector<1x1x1x16xf32> to vector<1x16xf32>
    %51 = vector.broadcast %50 : vector<1x16xf32> to vector<16x16xf32>
    %52 = arith.addf %48, %51 : vector<16x16xf32>
    %cst_41 = arith.constant dense<0.000000e+00> : vector<16x16xf32>
    %53 = tpu.matmul %38, %45, %cst_41 {dimension_numbers = #tpu.dot_dimension_numbers<[1], [1], [0], [0], [0, 0, 1, 0], [], []>} : vector<16x16xf32>, vector<16x16xf32>, vector<16x16xf32> -> vector<16x16xf32>
    %54 = arith.addf %53, %3 : vector<16x16xf32>
    %cst_42 = arith.constant dense<0xFF800000> : vector<16xf32>
    %55 = vector.multi_reduction <maximumf>, %54, %cst_42 [1] : vector<16x16xf32> to vector<16xf32>
    %56 = vector.shape_cast %55 : vector<16xf32> to vector<16x1xf32>
    %57 = vector.broadcast %56 : vector<16x1xf32> to vector<16x16xf32>
    %58 = arith.subf %54, %57 : vector<16x16xf32>
    %59 = math.exp %58 : vector<16x16xf32>
    %cst_43 = arith.constant dense<0.000000e+00> : vector<16xf32>
    %60 = vector.multi_reduction <add>, %59, %cst_43 [1] : vector<16x16xf32> to vector<16xf32>
    %61 = vector.shape_cast %60 : vector<16xf32> to vector<16x1xf32>
    %62 = tpu.reciprocal %61 {approx = true} : vector<16x1xf32> -> vector<16x1xf32>
    %63 = vector.broadcast %62 : vector<16x1xf32> to vector<16x16xf32>
    %64 = arith.mulf %59, %63 : vector<16x16xf32>
    %cst_44 = arith.constant dense<0.000000e+00> : vector<16x16xf32>
    %65 = tpu.matmul %64, %52, %cst_44 {dimension_numbers = #tpu.dot_dimension_numbers<[1], [0], [0], [1], [0, 0, 1, 1], [], []>} : vector<16x16xf32>, vector<16x16xf32>, vector<16x16xf32> -> vector<16x16xf32>
    %66 = arith.truncf %65 : vector<16x16xf32> to vector<16x16xbf16>
    %c0_45 = arith.constant 0 : index
    %c0_46 = arith.constant 0 : index
    %c0_47 = arith.constant 0 : index
    %c0_48 = arith.constant 0 : index
    %67 = vector.load %arg13[%c0_45, %c0_46, %c0_47, %c0_48] : memref<1x4x16x64xbf16, #tpu.memory_space<vmem>>, vector<1x1x16x64xbf16>
    %68 = vector.shape_cast %67 : vector<1x1x16x64xbf16> to vector<16x64xbf16>
    %cst_49 = arith.constant dense<0.000000e+00> : vector<16x64xf32>
    %69 = tpu.matmul %66, %68, %cst_49 {dimension_numbers = #tpu.dot_dimension_numbers<[1], [0], [0], [1], [0, 0, 1, 1], [], []>} : vector<16x16xbf16>, vector<16x64xbf16>, vector<16x64xf32> -> vector<16x64xf32>
    %70 = arith.addf %4, %69 : vector<16x64xf32>
    %c0_50 = arith.constant 0 : index
    %c1 = arith.constant 1 : index
    %c0_51 = arith.constant 0 : index
    %c0_52 = arith.constant 0 : index
    %71 = vector.load %arg7[%c0_50, %c1, %c0_51, %c0_52] : memref<1x4x64x16xbf16, #tpu.memory_space<vmem>>, vector<1x1x64x16xbf16>
    %72 = vector.shape_cast %71 : vector<1x1x64x16xbf16> to vector<64x16xbf16>
    %cst_53 = arith.constant dense<0.000000e+00> : vector<16x16xf32>
    %73 = tpu.matmul %31, %72, %cst_53 {dimension_numbers = #tpu.dot_dimension_numbers<[1], [0], [0], [1], [0, 0, 1, 1], [], []>} : vector<16x64xbf16>, vector<64x16xbf16>, vector<16x16xf32> -> vector<16x16xf32>
    %c0_54 = arith.constant 0 : index
    %c1_55 = arith.constant 1 : index
    %c0_56 = arith.constant 0 : index
    %c0_57 = arith.constant 0 : index
    %74 = vector.load %arg10[%c0_54, %c1_55, %c0_56, %c0_57] : memref<1x4x1x16xf32, #tpu.memory_space<vmem>>, vector<1x1x1x16xf32>
    %75 = vector.shape_cast %74 : vector<1x1x1x16xf32> to vector<1x16xf32>
    %76 = vector.broadcast %75 : vector<1x16xf32> to vector<16x16xf32>
    %77 = arith.addf %73, %76 : vector<16x16xf32>
    %c0_58 = arith.constant 0 : index
    %c1_59 = arith.constant 1 : index
    %c0_60 = arith.constant 0 : index
    %c0_61 = arith.constant 0 : index
    %78 = vector.load %arg8[%c0_58, %c1_59, %c0_60, %c0_61] : memref<1x4x64x16xbf16, #tpu.memory_space<vmem>>, vector<1x1x64x16xbf16>
    %79 = vector.shape_cast %78 : vector<1x1x64x16xbf16> to vector<64x16xbf16>
    %cst_62 = arith.constant dense<0.000000e+00> : vector<16x16xf32>
    %80 = tpu.matmul %31, %79, %cst_62 {dimension_numbers = #tpu.dot_dimension_numbers<[1], [0], [0], [1], [0, 0, 1, 1], [], []>} : vector<16x64xbf16>, vector<64x16xbf16>, vector<16x16xf32> -> vector<16x16xf32>
    %c0_63 = arith.constant 0 : index
    %c1_64 = arith.constant 1 : index
    %c0_65 = arith.constant 0 : index
    %c0_66 = arith.constant 0 : index
    %81 = vector.load %arg11[%c0_63, %c1_64, %c0_65, %c0_66] : memref<1x4x1x16xf32, #tpu.memory_space<vmem>>, vector<1x1x1x16xf32>
    %82 = vector.shape_cast %81 : vector<1x1x1x16xf32> to vector<1x16xf32>
    %83 = vector.broadcast %82 : vector<1x16xf32> to vector<16x16xf32>
    %84 = arith.addf %80, %83 : vector<16x16xf32>
    %c0_67 = arith.constant 0 : index
    %c1_68 = arith.constant 1 : index
    %c0_69 = arith.constant 0 : index
    %c0_70 = arith.constant 0 : index
    %85 = vector.load %arg9[%c0_67, %c1_68, %c0_69, %c0_70] : memref<1x4x64x16xbf16, #tpu.memory_space<vmem>>, vector<1x1x64x16xbf16>
    %86 = vector.shape_cast %85 : vector<1x1x64x16xbf16> to vector<64x16xbf16>
    %cst_71 = arith.constant dense<0.000000e+00> : vector<16x16xf32>
    %87 = tpu.matmul %31, %86, %cst_71 {dimension_numbers = #tpu.dot_dimension_numbers<[1], [0], [0], [1], [0, 0, 1, 1], [], []>} : vector<16x64xbf16>, vector<64x16xbf16>, vector<16x16xf32> -> vector<16x16xf32>
    %c0_72 = arith.constant 0 : index
    %c1_73 = arith.constant 1 : index
    %c0_74 = arith.constant 0 : index
    %c0_75 = arith.constant 0 : index
    %88 = vector.load %arg12[%c0_72, %c1_73, %c0_74, %c0_75] : memref<1x4x1x16xf32, #tpu.memory_space<vmem>>, vector<1x1x1x16xf32>
    %89 = vector.shape_cast %88 : vector<1x1x1x16xf32> to vector<1x16xf32>
    %90 = vector.broadcast %89 : vector<1x16xf32> to vector<16x16xf32>
    %91 = arith.addf %87, %90 : vector<16x16xf32>
    %cst_76 = arith.constant dense<0.000000e+00> : vector<16x16xf32>
    %92 = tpu.matmul %77, %84, %cst_76 {dimension_numbers = #tpu.dot_dimension_numbers<[1], [1], [0], [0], [0, 0, 1, 0], [], []>} : vector<16x16xf32>, vector<16x16xf32>, vector<16x16xf32> -> vector<16x16xf32>
    %93 = arith.addf %92, %3 : vector<16x16xf32>
    %cst_77 = arith.constant dense<0xFF800000> : vector<16xf32>
    %94 = vector.multi_reduction <maximumf>, %93, %cst_77 [1] : vector<16x16xf32> to vector<16xf32>
    %95 = vector.shape_cast %94 : vector<16xf32> to vector<16x1xf32>
    %96 = vector.broadcast %95 : vector<16x1xf32> to vector<16x16xf32>
    %97 = arith.subf %93, %96 : vector<16x16xf32>
    %98 = math.exp %97 : vector<16x16xf32>
    %cst_78 = arith.constant dense<0.000000e+00> : vector<16xf32>
    %99 = vector.multi_reduction <add>, %98, %cst_78 [1] : vector<16x16xf32> to vector<16xf32>
    %100 = vector.shape_cast %99 : vector<16xf32> to vector<16x1xf32>
    %101 = tpu.reciprocal %100 {approx = true} : vector<16x1xf32> -> vector<16x1xf32>
    %102 = vector.broadcast %101 : vector<16x1xf32> to vector<16x16xf32>
    %103 = arith.mulf %98, %102 : vector<16x16xf32>
    %cst_79 = arith.constant dense<0.000000e+00> : vector<16x16xf32>
    %104 = tpu.matmul %103, %91, %cst_79 {dimension_numbers = #tpu.dot_dimension_numbers<[1], [0], [0], [1], [0, 0, 1, 1], [], []>} : vector<16x16xf32>, vector<16x16xf32>, vector<16x16xf32> -> vector<16x16xf32>
    %105 = arith.truncf %104 : vector<16x16xf32> to vector<16x16xbf16>
    %c0_80 = arith.constant 0 : index
    %c1_81 = arith.constant 1 : index
    %c0_82 = arith.constant 0 : index
    %c0_83 = arith.constant 0 : index
    %106 = vector.load %arg13[%c0_80, %c1_81, %c0_82, %c0_83] : memref<1x4x16x64xbf16, #tpu.memory_space<vmem>>, vector<1x1x16x64xbf16>
    %107 = vector.shape_cast %106 : vector<1x1x16x64xbf16> to vector<16x64xbf16>
    %cst_84 = arith.constant dense<0.000000e+00> : vector<16x64xf32>
    %108 = tpu.matmul %105, %107, %cst_84 {dimension_numbers = #tpu.dot_dimension_numbers<[1], [0], [0], [1], [0, 0, 1, 1], [], []>} : vector<16x16xbf16>, vector<16x64xbf16>, vector<16x64xf32> -> vector<16x64xf32>
    %109 = arith.addf %70, %108 : vector<16x64xf32>
    %c0_85 = arith.constant 0 : index
    %c2 = arith.constant 2 : index
    %c0_86 = arith.constant 0 : index
    %c0_87 = arith.constant 0 : index
    %110 = vector.load %arg7[%c0_85, %c2, %c0_86, %c0_87] : memref<1x4x64x16xbf16, #tpu.memory_space<vmem>>, vector<1x1x64x16xbf16>
    %111 = vector.shape_cast %110 : vector<1x1x64x16xbf16> to vector<64x16xbf16>
    %cst_88 = arith.constant dense<0.000000e+00> : vector<16x16xf32>
    %112 = tpu.matmul %31, %111, %cst_88 {dimension_numbers = #tpu.dot_dimension_numbers<[1], [0], [0], [1], [0, 0, 1, 1], [], []>} : vector<16x64xbf16>, vector<64x16xbf16>, vector<16x16xf32> -> vector<16x16xf32>
    %c0_89 = arith.constant 0 : index
    %c2_90 = arith.constant 2 : index
    %c0_91 = arith.constant 0 : index
    %c0_92 = arith.constant 0 : index
    %113 = vector.load %arg10[%c0_89, %c2_90, %c0_91, %c0_92] : memref<1x4x1x16xf32, #tpu.memory_space<vmem>>, vector<1x1x1x16xf32>
    %114 = vector.shape_cast %113 : vector<1x1x1x16xf32> to vector<1x16xf32>
    %115 = vector.broadcast %114 : vector<1x16xf32> to vector<16x16xf32>
    %116 = arith.addf %112, %115 : vector<16x16xf32>
    %c0_93 = arith.constant 0 : index
    %c2_94 = arith.constant 2 : index
    %c0_95 = arith.constant 0 : index
    %c0_96 = arith.constant 0 : index
    %117 = vector.load %arg8[%c0_93, %c2_94, %c0_95, %c0_96] : memref<1x4x64x16xbf16, #tpu.memory_space<vmem>>, vector<1x1x64x16xbf16>
    %118 = vector.shape_cast %117 : vector<1x1x64x16xbf16> to vector<64x16xbf16>
    %cst_97 = arith.constant dense<0.000000e+00> : vector<16x16xf32>
    %119 = tpu.matmul %31, %118, %cst_97 {dimension_numbers = #tpu.dot_dimension_numbers<[1], [0], [0], [1], [0, 0, 1, 1], [], []>} : vector<16x64xbf16>, vector<64x16xbf16>, vector<16x16xf32> -> vector<16x16xf32>
    %c0_98 = arith.constant 0 : index
    %c2_99 = arith.constant 2 : index
    %c0_100 = arith.constant 0 : index
    %c0_101 = arith.constant 0 : index
    %120 = vector.load %arg11[%c0_98, %c2_99, %c0_100, %c0_101] : memref<1x4x1x16xf32, #tpu.memory_space<vmem>>, vector<1x1x1x16xf32>
    %121 = vector.shape_cast %120 : vector<1x1x1x16xf32> to vector<1x16xf32>
    %122 = vector.broadcast %121 : vector<1x16xf32> to vector<16x16xf32>
    %123 = arith.addf %119, %122 : vector<16x16xf32>
    %c0_102 = arith.constant 0 : index
    %c2_103 = arith.constant 2 : index
    %c0_104 = arith.constant 0 : index
    %c0_105 = arith.constant 0 : index
    %124 = vector.load %arg9[%c0_102, %c2_103, %c0_104, %c0_105] : memref<1x4x64x16xbf16, #tpu.memory_space<vmem>>, vector<1x1x64x16xbf16>
    %125 = vector.shape_cast %124 : vector<1x1x64x16xbf16> to vector<64x16xbf16>
    %cst_106 = arith.constant dense<0.000000e+00> : vector<16x16xf32>
    %126 = tpu.matmul %31, %125, %cst_106 {dimension_numbers = #tpu.dot_dimension_numbers<[1], [0], [0], [1], [0, 0, 1, 1], [], []>} : vector<16x64xbf16>, vector<64x16xbf16>, vector<16x16xf32> -> vector<16x16xf32>
    %c0_107 = arith.constant 0 : index
    %c2_108 = arith.constant 2 : index
    %c0_109 = arith.constant 0 : index
    %c0_110 = arith.constant 0 : index
    %127 = vector.load %arg12[%c0_107, %c2_108, %c0_109, %c0_110] : memref<1x4x1x16xf32, #tpu.memory_space<vmem>>, vector<1x1x1x16xf32>
    %128 = vector.shape_cast %127 : vector<1x1x1x16xf32> to vector<1x16xf32>
    %129 = vector.broadcast %128 : vector<1x16xf32> to vector<16x16xf32>
    %130 = arith.addf %126, %129 : vector<16x16xf32>
    %cst_111 = arith.constant dense<0.000000e+00> : vector<16x16xf32>
    %131 = tpu.matmul %116, %123, %cst_111 {dimension_numbers = #tpu.dot_dimension_numbers<[1], [1], [0], [0], [0, 0, 1, 0], [], []>} : vector<16x16xf32>, vector<16x16xf32>, vector<16x16xf32> -> vector<16x16xf32>
    %132 = arith.addf %131, %3 : vector<16x16xf32>
    %cst_112 = arith.constant dense<0xFF800000> : vector<16xf32>
    %133 = vector.multi_reduction <maximumf>, %132, %cst_112 [1] : vector<16x16xf32> to vector<16xf32>
    %134 = vector.shape_cast %133 : vector<16xf32> to vector<16x1xf32>
    %135 = vector.broadcast %134 : vector<16x1xf32> to vector<16x16xf32>
    %136 = arith.subf %132, %135 : vector<16x16xf32>
    %137 = math.exp %136 : vector<16x16xf32>
    %cst_113 = arith.constant dense<0.000000e+00> : vector<16xf32>
    %138 = vector.multi_reduction <add>, %137, %cst_113 [1] : vector<16x16xf32> to vector<16xf32>
    %139 = vector.shape_cast %138 : vector<16xf32> to vector<16x1xf32>
    %140 = tpu.reciprocal %139 {approx = true} : vector<16x1xf32> -> vector<16x1xf32>
    %141 = vector.broadcast %140 : vector<16x1xf32> to vector<16x16xf32>
    %142 = arith.mulf %137, %141 : vector<16x16xf32>
    %cst_114 = arith.constant dense<0.000000e+00> : vector<16x16xf32>
    %143 = tpu.matmul %142, %130, %cst_114 {dimension_numbers = #tpu.dot_dimension_numbers<[1], [0], [0], [1], [0, 0, 1, 1], [], []>} : vector<16x16xf32>, vector<16x16xf32>, vector<16x16xf32> -> vector<16x16xf32>
    %144 = arith.truncf %143 : vector<16x16xf32> to vector<16x16xbf16>
    %c0_115 = arith.constant 0 : index
    %c2_116 = arith.constant 2 : index
    %c0_117 = arith.constant 0 : index
    %c0_118 = arith.constant 0 : index
    %145 = vector.load %arg13[%c0_115, %c2_116, %c0_117, %c0_118] : memref<1x4x16x64xbf16, #tpu.memory_space<vmem>>, vector<1x1x16x64xbf16>
    %146 = vector.shape_cast %145 : vector<1x1x16x64xbf16> to vector<16x64xbf16>
    %cst_119 = arith.constant dense<0.000000e+00> : vector<16x64xf32>
    %147 = tpu.matmul %144, %146, %cst_119 {dimension_numbers = #tpu.dot_dimension_numbers<[1], [0], [0], [1], [0, 0, 1, 1], [], []>} : vector<16x16xbf16>, vector<16x64xbf16>, vector<16x64xf32> -> vector<16x64xf32>
    %148 = arith.addf %109, %147 : vector<16x64xf32>
    %c0_120 = arith.constant 0 : index
    %c3 = arith.constant 3 : index
    %c0_121 = arith.constant 0 : index
    %c0_122 = arith.constant 0 : index
    %149 = vector.load %arg7[%c0_120, %c3, %c0_121, %c0_122] : memref<1x4x64x16xbf16, #tpu.memory_space<vmem>>, vector<1x1x64x16xbf16>
    %150 = vector.shape_cast %149 : vector<1x1x64x16xbf16> to vector<64x16xbf16>
    %cst_123 = arith.constant dense<0.000000e+00> : vector<16x16xf32>
    %151 = tpu.matmul %31, %150, %cst_123 {dimension_numbers = #tpu.dot_dimension_numbers<[1], [0], [0], [1], [0, 0, 1, 1], [], []>} : vector<16x64xbf16>, vector<64x16xbf16>, vector<16x16xf32> -> vector<16x16xf32>
    %c0_124 = arith.constant 0 : index
    %c3_125 = arith.constant 3 : index
    %c0_126 = arith.constant 0 : index
    %c0_127 = arith.constant 0 : index
    %152 = vector.load %arg10[%c0_124, %c3_125, %c0_126, %c0_127] : memref<1x4x1x16xf32, #tpu.memory_space<vmem>>, vector<1x1x1x16xf32>
    %153 = vector.shape_cast %152 : vector<1x1x1x16xf32> to vector<1x16xf32>
    %154 = vector.broadcast %153 : vector<1x16xf32> to vector<16x16xf32>
    %155 = arith.addf %151, %154 : vector<16x16xf32>
    %c0_128 = arith.constant 0 : index
    %c3_129 = arith.constant 3 : index
    %c0_130 = arith.constant 0 : index
    %c0_131 = arith.constant 0 : index
    %156 = vector.load %arg8[%c0_128, %c3_129, %c0_130, %c0_131] : memref<1x4x64x16xbf16, #tpu.memory_space<vmem>>, vector<1x1x64x16xbf16>
    %157 = vector.shape_cast %156 : vector<1x1x64x16xbf16> to vector<64x16xbf16>
    %cst_132 = arith.constant dense<0.000000e+00> : vector<16x16xf32>
    %158 = tpu.matmul %31, %157, %cst_132 {dimension_numbers = #tpu.dot_dimension_numbers<[1], [0], [0], [1], [0, 0, 1, 1], [], []>} : vector<16x64xbf16>, vector<64x16xbf16>, vector<16x16xf32> -> vector<16x16xf32>
    %c0_133 = arith.constant 0 : index
    %c3_134 = arith.constant 3 : index
    %c0_135 = arith.constant 0 : index
    %c0_136 = arith.constant 0 : index
    %159 = vector.load %arg11[%c0_133, %c3_134, %c0_135, %c0_136] : memref<1x4x1x16xf32, #tpu.memory_space<vmem>>, vector<1x1x1x16xf32>
    %160 = vector.shape_cast %159 : vector<1x1x1x16xf32> to vector<1x16xf32>
    %161 = vector.broadcast %160 : vector<1x16xf32> to vector<16x16xf32>
    %162 = arith.addf %158, %161 : vector<16x16xf32>
    %c0_137 = arith.constant 0 : index
    %c3_138 = arith.constant 3 : index
    %c0_139 = arith.constant 0 : index
    %c0_140 = arith.constant 0 : index
    %163 = vector.load %arg9[%c0_137, %c3_138, %c0_139, %c0_140] : memref<1x4x64x16xbf16, #tpu.memory_space<vmem>>, vector<1x1x64x16xbf16>
    %164 = vector.shape_cast %163 : vector<1x1x64x16xbf16> to vector<64x16xbf16>
    %cst_141 = arith.constant dense<0.000000e+00> : vector<16x16xf32>
    %165 = tpu.matmul %31, %164, %cst_141 {dimension_numbers = #tpu.dot_dimension_numbers<[1], [0], [0], [1], [0, 0, 1, 1], [], []>} : vector<16x64xbf16>, vector<64x16xbf16>, vector<16x16xf32> -> vector<16x16xf32>
    %c0_142 = arith.constant 0 : index
    %c3_143 = arith.constant 3 : index
    %c0_144 = arith.constant 0 : index
    %c0_145 = arith.constant 0 : index
    %166 = vector.load %arg12[%c0_142, %c3_143, %c0_144, %c0_145] : memref<1x4x1x16xf32, #tpu.memory_space<vmem>>, vector<1x1x1x16xf32>
    %167 = vector.shape_cast %166 : vector<1x1x1x16xf32> to vector<1x16xf32>
    %168 = vector.broadcast %167 : vector<1x16xf32> to vector<16x16xf32>
    %169 = arith.addf %165, %168 : vector<16x16xf32>
    %cst_146 = arith.constant dense<0.000000e+00> : vector<16x16xf32>
    %170 = tpu.matmul %155, %162, %cst_146 {dimension_numbers = #tpu.dot_dimension_numbers<[1], [1], [0], [0], [0, 0, 1, 0], [], []>} : vector<16x16xf32>, vector<16x16xf32>, vector<16x16xf32> -> vector<16x16xf32>
    %171 = arith.addf %170, %3 : vector<16x16xf32>
    %cst_147 = arith.constant dense<0xFF800000> : vector<16xf32>
    %172 = vector.multi_reduction <maximumf>, %171, %cst_147 [1] : vector<16x16xf32> to vector<16xf32>
    %173 = vector.shape_cast %172 : vector<16xf32> to vector<16x1xf32>
    %174 = vector.broadcast %173 : vector<16x1xf32> to vector<16x16xf32>
    %175 = arith.subf %171, %174 : vector<16x16xf32>
    %176 = math.exp %175 : vector<16x16xf32>
    %cst_148 = arith.constant dense<0.000000e+00> : vector<16xf32>
    %177 = vector.multi_reduction <add>, %176, %cst_148 [1] : vector<16x16xf32> to vector<16xf32>
    %178 = vector.shape_cast %177 : vector<16xf32> to vector<16x1xf32>
    %179 = tpu.reciprocal %178 {approx = true} : vector<16x1xf32> -> vector<16x1xf32>
    %180 = vector.broadcast %179 : vector<16x1xf32> to vector<16x16xf32>
    %181 = arith.mulf %176, %180 : vector<16x16xf32>
    %cst_149 = arith.constant dense<0.000000e+00> : vector<16x16xf32>
    %182 = tpu.matmul %181, %169, %cst_149 {dimension_numbers = #tpu.dot_dimension_numbers<[1], [0], [0], [1], [0, 0, 1, 1], [], []>} : vector<16x16xf32>, vector<16x16xf32>, vector<16x16xf32> -> vector<16x16xf32>
    %183 = arith.truncf %182 : vector<16x16xf32> to vector<16x16xbf16>
    %c0_150 = arith.constant 0 : index
    %c3_151 = arith.constant 3 : index
    %c0_152 = arith.constant 0 : index
    %c0_153 = arith.constant 0 : index
    %184 = vector.load %arg13[%c0_150, %c3_151, %c0_152, %c0_153] : memref<1x4x16x64xbf16, #tpu.memory_space<vmem>>, vector<1x1x16x64xbf16>
    %185 = vector.shape_cast %184 : vector<1x1x16x64xbf16> to vector<16x64xbf16>
    %cst_154 = arith.constant dense<0.000000e+00> : vector<16x64xf32>
    %186 = tpu.matmul %183, %185, %cst_154 {dimension_numbers = #tpu.dot_dimension_numbers<[1], [0], [0], [1], [0, 0, 1, 1], [], []>} : vector<16x16xbf16>, vector<16x64xbf16>, vector<16x64xf32> -> vector<16x64xf32>
    %187 = arith.addf %148, %186 : vector<16x64xf32>
    %c0_155 = arith.constant 0 : index
    %c0_156 = arith.constant 0 : index
    %c0_157 = arith.constant 0 : index
    %188 = vector.load %arg14[%c0_155, %c0_156, %c0_157] : memref<1x1x64xf32, #tpu.memory_space<vmem>>, vector<1x1x64xf32>
    %189 = vector.shape_cast %188 : vector<1x1x64xf32> to vector<1x64xf32>
    %190 = vector.broadcast %189 : vector<1x64xf32> to vector<16x64xf32>
    %191 = arith.addf %187, %190 : vector<16x64xf32>
    %c0_158 = arith.constant 0 : index
    %c0_159 = arith.constant 0 : index
    %c0_160 = arith.constant 0 : index
    %192 = vector.load %arg15[%c0_158, %c0_159, %c0_160] : memref<1x1x64xf32, #tpu.memory_space<vmem>>, vector<1x1x64xf32>
    %193 = vector.shape_cast %192 : vector<1x1x64xf32> to vector<1x64xf32>
    %c0_161 = arith.constant 0 : index
    %c0_162 = arith.constant 0 : index
    %c0_163 = arith.constant 0 : index
    %194 = vector.load %arg16[%c0_161, %c0_162, %c0_163] : memref<1x1x64xf32, #tpu.memory_space<vmem>>, vector<1x1x64xf32>
    %195 = vector.shape_cast %194 : vector<1x1x64xf32> to vector<1x64xf32>
    %cst_164 = arith.constant dense<0.000000e+00> : vector<16xf32>
    %196 = vector.multi_reduction <add>, %191, %cst_164 [1] : vector<16x64xf32> to vector<16xf32>
    %197 = vector.shape_cast %196 : vector<16xf32> to vector<16x1xf32>
    %cst_165 = arith.constant 6.400000e+01 : f32
    %198 = vector.broadcast %cst_165 : f32 to vector<16x1xf32>
    %199 = arith.divf %197, %198 : vector<16x1xf32>
    %200 = vector.broadcast %199 : vector<16x1xf32> to vector<16x64xf32>
    %201 = arith.subf %191, %200 : vector<16x64xf32>
    %202 = arith.mulf %201, %201 : vector<16x64xf32>
    %cst_166 = arith.constant dense<0.000000e+00> : vector<16xf32>
    %203 = vector.multi_reduction <add>, %202, %cst_166 [1] : vector<16x64xf32> to vector<16xf32>
    %204 = vector.shape_cast %203 : vector<16xf32> to vector<16x1xf32>
    %cst_167 = arith.constant 6.400000e+01 : f32
    %205 = vector.broadcast %cst_167 : f32 to vector<16x1xf32>
    %206 = arith.divf %204, %205 : vector<16x1xf32>
    %207 = vector.broadcast %199 : vector<16x1xf32> to vector<16x64xf32>
    %208 = arith.subf %191, %207 : vector<16x64xf32>
    %cst_168 = arith.constant 9.99999997E-7 : f32
    %209 = vector.broadcast %cst_168 : f32 to vector<16x1xf32>
    %210 = arith.addf %206, %209 : vector<16x1xf32>
    %211 = math.rsqrt %210 : vector<16x1xf32>
    %212 = vector.broadcast %211 : vector<16x1xf32> to vector<16x64xf32>
    %213 = arith.mulf %208, %212 : vector<16x64xf32>
    %214 = vector.broadcast %193 : vector<1x64xf32> to vector<16x64xf32>
    %215 = arith.mulf %213, %214 : vector<16x64xf32>
    %216 = vector.broadcast %195 : vector<1x64xf32> to vector<16x64xf32>
    %217 = arith.addf %215, %216 : vector<16x64xf32>
    %218 = arith.truncf %217 : vector<16x64xf32> to vector<16x64xbf16>
    %c0_169 = arith.constant 0 : index
    %c0_170 = arith.constant 0 : index
    %c0_171 = arith.constant 0 : index
    %219 = vector.load %arg17[%c0_169, %c0_170, %c0_171] : memref<1x64x256xbf16, #tpu.memory_space<vmem>>, vector<1x64x256xbf16>
    %220 = vector.shape_cast %219 : vector<1x64x256xbf16> to vector<64x256xbf16>
    %cst_172 = arith.constant dense<0.000000e+00> : vector<16x256xf32>
    %221 = tpu.matmul %218, %220, %cst_172 {dimension_numbers = #tpu.dot_dimension_numbers<[1], [0], [0], [1], [0, 0, 1, 1], [], []>} : vector<16x64xbf16>, vector<64x256xbf16>, vector<16x256xf32> -> vector<16x256xf32>
    %c0_173 = arith.constant 0 : index
    %c0_174 = arith.constant 0 : index
    %c0_175 = arith.constant 0 : index
    %222 = vector.load %arg18[%c0_173, %c0_174, %c0_175] : memref<1x1x256xf32, #tpu.memory_space<vmem>>, vector<1x1x256xf32>
    %223 = vector.shape_cast %222 : vector<1x1x256xf32> to vector<1x256xf32>
    %224 = vector.broadcast %223 : vector<1x256xf32> to vector<16x256xf32>
    %225 = arith.addf %221, %224 : vector<16x256xf32>
    %cst_176 = arith.constant 5.000000e-01 : f32
    %226 = vector.broadcast %cst_176 : f32 to vector<16x256xf32>
    %227 = arith.mulf %226, %225 : vector<16x256xf32>
    %cst_177 = arith.constant 0.707106769 : f32
    %228 = vector.broadcast %cst_177 : f32 to vector<16x256xf32>
    %229 = arith.mulf %225, %228 : vector<16x256xf32>
    %230 = math.absf %229 : vector<16x256xf32>
    %cst_178 = arith.constant 0.327591091 : f32
    %231 = vector.broadcast %cst_178 : f32 to vector<16x256xf32>
    %232 = arith.mulf %231, %230 : vector<16x256xf32>
    %cst_179 = arith.constant 1.000000e+00 : f32
    %233 = vector.broadcast %cst_179 : f32 to vector<16x256xf32>
    %234 = arith.addf %233, %232 : vector<16x256xf32>
    %cst_180 = arith.constant 1.000000e+00 : f32
    %235 = vector.broadcast %cst_180 : f32 to vector<16x256xf32>
    %236 = arith.divf %235, %234 : vector<16x256xf32>
    %cst_181 = arith.constant 1.06140542 : f32
    %237 = vector.broadcast %cst_181 : f32 to vector<16x256xf32>
    %238 = arith.mulf %237, %236 : vector<16x256xf32>
    %cst_182 = arith.constant -1.45315206 : f32
    %239 = vector.broadcast %cst_182 : f32 to vector<16x256xf32>
    %240 = arith.addf %238, %239 : vector<16x256xf32>
    %241 = arith.mulf %240, %236 : vector<16x256xf32>
    %cst_183 = arith.constant 1.42141378 : f32
    %242 = vector.broadcast %cst_183 : f32 to vector<16x256xf32>
    %243 = arith.addf %241, %242 : vector<16x256xf32>
    %244 = arith.mulf %243, %236 : vector<16x256xf32>
    %cst_184 = arith.constant -0.284496725 : f32
    %245 = vector.broadcast %cst_184 : f32 to vector<16x256xf32>
    %246 = arith.addf %244, %245 : vector<16x256xf32>
    %247 = arith.mulf %246, %236 : vector<16x256xf32>
    %cst_185 = arith.constant 0.254829586 : f32
    %248 = vector.broadcast %cst_185 : f32 to vector<16x256xf32>
    %249 = arith.addf %247, %248 : vector<16x256xf32>
    %250 = arith.mulf %249, %236 : vector<16x256xf32>
    %cst_186 = arith.constant 0.000000e+00 : f32
    %251 = vector.broadcast %cst_186 : f32 to vector<16x256xf32>
    %252 = arith.subf %251, %230 : vector<16x256xf32>
    %253 = arith.mulf %252, %230 : vector<16x256xf32>
    %254 = math.exp %253 : vector<16x256xf32>
    %255 = arith.mulf %250, %254 : vector<16x256xf32>
    %cst_187 = arith.constant 1.000000e+00 : f32
    %256 = vector.broadcast %cst_187 : f32 to vector<16x256xf32>
    %257 = arith.subf %256, %255 : vector<16x256xf32>
    %cst_188 = arith.constant 0.000000e+00 : f32
    %258 = vector.broadcast %cst_188 : f32 to vector<16x256xf32>
    %259 = arith.cmpf olt, %229, %258 : vector<16x256xf32>
    %cst_189 = arith.constant 0.000000e+00 : f32
    %260 = vector.broadcast %cst_189 : f32 to vector<16x256xf32>
    %261 = arith.subf %260, %257 : vector<16x256xf32>
    %262 = arith.select %259, %261, %257 : vector<16x256xi1>, vector<16x256xf32>
    %cst_190 = arith.constant 1.000000e+00 : f32
    %263 = vector.broadcast %cst_190 : f32 to vector<16x256xf32>
    %264 = arith.addf %263, %262 : vector<16x256xf32>
    %265 = arith.mulf %227, %264 : vector<16x256xf32>
    %266 = arith.truncf %265 : vector<16x256xf32> to vector<16x256xbf16>
    %c0_191 = arith.constant 0 : index
    %c0_192 = arith.constant 0 : index
    %c0_193 = arith.constant 0 : index
    %267 = vector.load %arg19[%c0_191, %c0_192, %c0_193] : memref<1x256x64xbf16, #tpu.memory_space<vmem>>, vector<1x256x64xbf16>
    %268 = vector.shape_cast %267 : vector<1x256x64xbf16> to vector<256x64xbf16>
    %cst_194 = arith.constant dense<0.000000e+00> : vector<16x64xf32>
    %269 = tpu.matmul %266, %268, %cst_194 {dimension_numbers = #tpu.dot_dimension_numbers<[1], [0], [0], [1], [0, 0, 1, 1], [], []>} : vector<16x256xbf16>, vector<256x64xbf16>, vector<16x64xf32> -> vector<16x64xf32>
    %270 = arith.addf %191, %269 : vector<16x64xf32>
    %c0_195 = arith.constant 0 : index
    %c0_196 = arith.constant 0 : index
    %c0_197 = arith.constant 0 : index
    %271 = vector.load %arg20[%c0_195, %c0_196, %c0_197] : memref<1x1x64xf32, #tpu.memory_space<vmem>>, vector<1x1x64xf32>
    %272 = vector.shape_cast %271 : vector<1x1x64xf32> to vector<1x64xf32>
    %273 = vector.broadcast %272 : vector<1x64xf32> to vector<16x64xf32>
    %274 = arith.addf %270, %273 : vector<16x64xf32>
    %c0_198 = arith.constant 0 : index
    %c0_199 = arith.constant 0 : index
    %275 = vector.load %arg27[%c0_198, %c0_199] : memref<16x64xf32, #tpu.memory_space<vmem>>, vector<16x64xf32>
    tpu.vector_store %arg27[%c0_198, %c0_199], %274 {strides = array<i32>} : memref<16x64xf32, #tpu.memory_space<vmem>>, vector<16x64xf32>,
    %c1_i32 = arith.constant 1 : i32
    %276 = arith.cmpi eq, %arg0, %c1_i32 : i32
    %277 = arith.extui %276 : i1 to i32
    %c0_i32_200 = arith.constant 0 : i32
    %278 = arith.cmpi ne, %277, %c0_i32_200 : i32
    scf.if %278 {
      %279 = vector.extract_strided_slice %274 {offsets = [8, 0], sizes = [2, 64], strides = [1, 1]} : vector<16x64xf32> to vector<2x64xf32>
      %c0_201 = arith.constant 0 : index
      %c0_202 = arith.constant 0 : index
      %280 = vector.load %arg21[%c0_201, %c0_202] : memref<1x64xf32, #tpu.memory_space<vmem>>, vector<1x64xf32>
      %c0_203 = arith.constant 0 : index
      %c0_204 = arith.constant 0 : index
      %281 = vector.load %arg22[%c0_203, %c0_204] : memref<1x64xf32, #tpu.memory_space<vmem>>, vector<1x64xf32>
      %cst_205 = arith.constant dense<0.000000e+00> : vector<2xf32>
      %282 = vector.multi_reduction <add>, %279, %cst_205 [1] : vector<2x64xf32> to vector<2xf32>
      %283 = vector.shape_cast %282 : vector<2xf32> to vector<2x1xf32>
      %cst_206 = arith.constant 6.400000e+01 : f32
      %284 = vector.broadcast %cst_206 : f32 to vector<2x1xf32>
      %285 = arith.divf %283, %284 : vector<2x1xf32>
      %286 = vector.broadcast %285 : vector<2x1xf32> to vector<2x64xf32>
      %287 = arith.subf %279, %286 : vector<2x64xf32>
      %288 = arith.mulf %287, %287 : vector<2x64xf32>
      %cst_207 = arith.constant dense<0.000000e+00> : vector<2xf32>
      %289 = vector.multi_reduction <add>, %288, %cst_207 [1] : vector<2x64xf32> to vector<2xf32>
      %290 = vector.shape_cast %289 : vector<2xf32> to vector<2x1xf32>
      %cst_208 = arith.constant 6.400000e+01 : f32
      %291 = vector.broadcast %cst_208 : f32 to vector<2x1xf32>
      %292 = arith.divf %290, %291 : vector<2x1xf32>
      %293 = vector.broadcast %285 : vector<2x1xf32> to vector<2x64xf32>
      %294 = arith.subf %279, %293 : vector<2x64xf32>
      %cst_209 = arith.constant 9.99999997E-7 : f32
      %295 = vector.broadcast %cst_209 : f32 to vector<2x1xf32>
      %296 = arith.addf %292, %295 : vector<2x1xf32>
      %297 = math.rsqrt %296 : vector<2x1xf32>
      %298 = vector.broadcast %297 : vector<2x1xf32> to vector<2x64xf32>
      %299 = arith.mulf %294, %298 : vector<2x64xf32>
      %300 = vector.broadcast %280 : vector<1x64xf32> to vector<2x64xf32>
      %301 = arith.mulf %299, %300 : vector<2x64xf32>
      %302 = vector.broadcast %281 : vector<1x64xf32> to vector<2x64xf32>
      %303 = arith.addf %301, %302 : vector<2x64xf32>
      %cst_210 = arith.constant dense<0.000000e+00> : vector<64xf32>
      %304 = vector.multi_reduction <add>, %303, %cst_210 [0] : vector<2x64xf32> to vector<64xf32>
      %305 = vector.shape_cast %304 : vector<64xf32> to vector<1x64xf32>
      %cst_211 = arith.constant 2.000000e+00 : f32
      %306 = vector.broadcast %cst_211 : f32 to vector<1x64xf32>
      %307 = arith.divf %305, %306 : vector<1x64xf32>
      %308 = vector.broadcast %307 : vector<1x64xf32> to vector<2x64xf32>
      %309 = arith.subf %303, %308 : vector<2x64xf32>
      %310 = arith.mulf %309, %309 : vector<2x64xf32>
      %cst_212 = arith.constant dense<0.000000e+00> : vector<64xf32>
      %311 = vector.multi_reduction <add>, %310, %cst_212 [0] : vector<2x64xf32> to vector<64xf32>
      %312 = vector.shape_cast %311 : vector<64xf32> to vector<1x64xf32>
      %cst_213 = arith.constant 2.000000e+00 : f32
      %313 = vector.broadcast %cst_213 : f32 to vector<1x64xf32>
      %314 = arith.divf %312, %313 : vector<1x64xf32>
      %315 = vector.broadcast %307 : vector<1x64xf32> to vector<2x64xf32>
      %316 = arith.subf %303, %315 : vector<2x64xf32>
      %cst_214 = arith.constant 9.99999974E-6 : f32
      %317 = vector.broadcast %cst_214 : f32 to vector<1x64xf32>
      %318 = arith.addf %314, %317 : vector<1x64xf32>
      %319 = math.rsqrt %318 : vector<1x64xf32>
      %320 = vector.broadcast %319 : vector<1x64xf32> to vector<2x64xf32>
      %321 = arith.mulf %316, %320 : vector<2x64xf32>
      %c0_215 = arith.constant 0 : index
      %c0_216 = arith.constant 0 : index
      %322 = vector.load %arg23[%c0_215, %c0_216] : memref<1x64xf32, #tpu.memory_space<vmem>>, vector<1x64xf32>
      %323 = vector.broadcast %322 : vector<1x64xf32> to vector<2x64xf32>
      %324 = arith.mulf %321, %323 : vector<2x64xf32>
      %c0_217 = arith.constant 0 : index
      %c0_218 = arith.constant 0 : index
      %325 = vector.load %arg24[%c0_217, %c0_218] : memref<1x64xf32, #tpu.memory_space<vmem>>, vector<1x64xf32>
      %326 = vector.broadcast %325 : vector<1x64xf32> to vector<2x64xf32>
      %327 = arith.addf %324, %326 : vector<2x64xf32>
      %c0_219 = arith.constant 0 : index
      %c0_220 = arith.constant 0 : index
      %328 = vector.load %arg25[%c0_219, %c0_220] : memref<64x64xf32, #tpu.memory_space<vmem>>, vector<64x64xf32>
      %cst_221 = arith.constant dense<0.000000e+00> : vector<2x64xf32>
      %329 = tpu.matmul %327, %328, %cst_221 {dimension_numbers = #tpu.dot_dimension_numbers<[1], [0], [0], [1], [0, 0, 1, 1], [], []>} : vector<2x64xf32>, vector<64x64xf32>, vector<2x64xf32> -> vector<2x64xf32>
      %330 = tpu.concatenate %329, %303 in 1 : vector<2x64xf32>, vector<2x64xf32> -> vector<2x128xf32>
      %cst_222 = arith.constant 0.000000e+00 : f32
      %331 = vector.broadcast %cst_222 : f32 to vector<6x128xf32>
      %332 = tpu.concatenate %330, %331 in 0 : vector<2x128xf32>, vector<6x128xf32> -> vector<8x128xf32>
      %c0_223 = arith.constant 0 : index
      %c0_224 = arith.constant 0 : index
      %333 = vector.load %arg26[%c0_223, %c0_224] : memref<8x128xf32, #tpu.memory_space<vmem>>, vector<8x128xf32>
      tpu.vector_store %arg26[%c0_223, %c0_224], %332 {strides = array<i32>} : memref<8x128xf32, #tpu.memory_space<vmem>>, vector<8x128xf32>,
    } else {
    }
    return
  }
  func.func @transform_0(%arg0: i32) -> (i32, i32) {
    %c0_i32 = arith.constant 0 : i32
    %c0_i32_0 = arith.constant 0 : i32
    %c0_i32_1 = arith.constant 0 : i32
    return %c0_i32, %c0_i32_0 : i32, i32
  }
  func.func @transform_1(%arg0: i32) -> (i32, i32) {
    %c0_i32 = arith.constant 0 : i32
    %c0_i32_0 = arith.constant 0 : i32
    %c0_i32_1 = arith.constant 0 : i32
    return %c0_i32, %c0_i32_0 : i32, i32
  }
  func.func @transform_2(%arg0: i32) -> (i32, i32) {
    %c0_i32 = arith.constant 0 : i32
    %c0_i32_0 = arith.constant 0 : i32
    %c0_i32_1 = arith.constant 0 : i32
    return %c0_i32, %c0_i32_0 : i32, i32
  }
  func.func @transform_3(%arg0: i32) -> (i32, i32) {
    %c0_i32 = arith.constant 0 : i32
    %c0_i32_0 = arith.constant 0 : i32
    %c0_i32_1 = arith.constant 0 : i32
    return %c0_i32, %c0_i32_0 : i32, i32
  }
  func.func @transform_4(%arg0: i32) -> (i32, i32, i32) {
    %c0_i32 = arith.constant 0 : i32
    %c0_i32_0 = arith.constant 0 : i32
    %c0_i32_1 = arith.constant 0 : i32
    return %arg0, %c0_i32, %c0_i32_0 : i32, i32, i32
  }
  func.func @transform_5(%arg0: i32) -> (i32, i32, i32) {
    %c0_i32 = arith.constant 0 : i32
    %c0_i32_0 = arith.constant 0 : i32
    %c0_i32_1 = arith.constant 0 : i32
    return %arg0, %c0_i32, %c0_i32_0 : i32, i32, i32
  }
  func.func @transform_6(%arg0: i32) -> (i32, i32, i32, i32) {
    %c0_i32 = arith.constant 0 : i32
    %c0_i32_0 = arith.constant 0 : i32
    %c0_i32_1 = arith.constant 0 : i32
    %c0_i32_2 = arith.constant 0 : i32
    return %arg0, %c0_i32, %c0_i32_0, %c0_i32_1 : i32, i32, i32, i32
  }
  func.func @transform_7(%arg0: i32) -> (i32, i32, i32, i32) {
    %c0_i32 = arith.constant 0 : i32
    %c0_i32_0 = arith.constant 0 : i32
    %c0_i32_1 = arith.constant 0 : i32
    %c0_i32_2 = arith.constant 0 : i32
    return %arg0, %c0_i32, %c0_i32_0, %c0_i32_1 : i32, i32, i32, i32
  }
  func.func @transform_8(%arg0: i32) -> (i32, i32, i32, i32) {
    %c0_i32 = arith.constant 0 : i32
    %c0_i32_0 = arith.constant 0 : i32
    %c0_i32_1 = arith.constant 0 : i32
    %c0_i32_2 = arith.constant 0 : i32
    return %arg0, %c0_i32, %c0_i32_0, %c0_i32_1 : i32, i32, i32, i32
  }
  func.func @transform_9(%arg0: i32) -> (i32, i32, i32, i32) {
    %c0_i32 = arith.constant 0 : i32
    %c0_i32_0 = arith.constant 0 : i32
    %c0_i32_1 = arith.constant 0 : i32
    %c0_i32_2 = arith.constant 0 : i32
    return %arg0, %c0_i32, %c0_i32_0, %c0_i32_1 : i32, i32, i32, i32
  }
  func.func @transform_10(%arg0: i32) -> (i32, i32, i32, i32) {
    %c0_i32 = arith.constant 0 : i32
    %c0_i32_0 = arith.constant 0 : i32
    %c0_i32_1 = arith.constant 0 : i32
    %c0_i32_2 = arith.constant 0 : i32
    return %arg0, %c0_i32, %c0_i32_0, %c0_i32_1 : i32, i32, i32, i32
  }
  func.func @transform_11(%arg0: i32) -> (i32, i32, i32, i32) {
    %c0_i32 = arith.constant 0 : i32
    %c0_i32_0 = arith.constant 0 : i32
    %c0_i32_1 = arith.constant 0 : i32
    %c0_i32_2 = arith.constant 0 : i32
    return %arg0, %c0_i32, %c0_i32_0, %c0_i32_1 : i32, i32, i32, i32
  }
  func.func @transform_12(%arg0: i32) -> (i32, i32, i32, i32) {
    %c0_i32 = arith.constant 0 : i32
    %c0_i32_0 = arith.constant 0 : i32
    %c0_i32_1 = arith.constant 0 : i32
    %c0_i32_2 = arith.constant 0 : i32
    return %arg0, %c0_i32, %c0_i32_0, %c0_i32_1 : i32, i32, i32, i32
  }
  func.func @transform_13(%arg0: i32) -> (i32, i32, i32) {
    %c0_i32 = arith.constant 0 : i32
    %c0_i32_0 = arith.constant 0 : i32
    %c0_i32_1 = arith.constant 0 : i32
    return %arg0, %c0_i32, %c0_i32_0 : i32, i32, i32
  }
  func.func @transform_14(%arg0: i32) -> (i32, i32, i32) {
    %c0_i32 = arith.constant 0 : i32
    %c0_i32_0 = arith.constant 0 : i32
    %c0_i32_1 = arith.constant 0 : i32
    return %arg0, %c0_i32, %c0_i32_0 : i32, i32, i32
  }
  func.func @transform_15(%arg0: i32) -> (i32, i32, i32) {
    %c0_i32 = arith.constant 0 : i32
    %c0_i32_0 = arith.constant 0 : i32
    %c0_i32_1 = arith.constant 0 : i32
    return %arg0, %c0_i32, %c0_i32_0 : i32, i32, i32
  }
  func.func @transform_16(%arg0: i32) -> (i32, i32, i32) {
    %c0_i32 = arith.constant 0 : i32
    %c0_i32_0 = arith.constant 0 : i32
    %c0_i32_1 = arith.constant 0 : i32
    return %arg0, %c0_i32, %c0_i32_0 : i32, i32, i32
  }
  func.func @transform_17(%arg0: i32) -> (i32, i32, i32) {
    %c0_i32 = arith.constant 0 : i32
    %c0_i32_0 = arith.constant 0 : i32
    %c0_i32_1 = arith.constant 0 : i32
    return %arg0, %c0_i32, %c0_i32_0 : i32, i32, i32
  }
  func.func @transform_18(%arg0: i32) -> (i32, i32, i32) {
    %c0_i32 = arith.constant 0 : i32
    %c0_i32_0 = arith.constant 0 : i32
    %c0_i32_1 = arith.constant 0 : i32
    return %arg0, %c0_i32, %c0_i32_0 : i32, i32, i32
  }
  func.func @transform_19(%arg0: i32) -> (i32, i32, i32) {
    %c0_i32 = arith.constant 0 : i32
    %c0_i32_0 = arith.constant 0 : i32
    %c0_i32_1 = arith.constant 0 : i32
    return %arg0, %c0_i32, %c0_i32_0 : i32, i32, i32
  }
  func.func @transform_20(%arg0: i32) -> (i32, i32) {
    %c0_i32 = arith.constant 0 : i32
    %c0_i32_0 = arith.constant 0 : i32
    %c0_i32_1 = arith.constant 0 : i32
    return %c0_i32, %c0_i32_0 : i32, i32
  }
  func.func @transform_21(%arg0: i32) -> (i32, i32) {
    %c0_i32 = arith.constant 0 : i32
    %c0_i32_0 = arith.constant 0 : i32
    %c0_i32_1 = arith.constant 0 : i32
    return %c0_i32, %c0_i32_0 : i32, i32
  }
  func.func @transform_22(%arg0: i32) -> (i32, i32) {
    %c0_i32 = arith.constant 0 : i32
    %c0_i32_0 = arith.constant 0 : i32
    %c0_i32_1 = arith.constant 0 : i32
    return %c0_i32, %c0_i32_0 : i32, i32
  }
  func.func @transform_23(%arg0: i32) -> (i32, i32) {
    %c0_i32 = arith.constant 0 : i32
    %c0_i32_0 = arith.constant 0 : i32
    %c0_i32_1 = arith.constant 0 : i32
    return %c0_i32, %c0_i32_0 : i32, i32
  }
  func.func @transform_24(%arg0: i32) -> (i32, i32) {
    %c0_i32 = arith.constant 0 : i32
    %c0_i32_0 = arith.constant 0 : i32
    %c0_i32_1 = arith.constant 0 : i32
    return %c0_i32, %c0_i32_0 : i32, i32
  }
  func.func @transform_25(%arg0: i32) -> (i32, i32) {
    %c0_i32 = arith.constant 0 : i32
    %c0_i32_0 = arith.constant 0 : i32
    %c0_i32_1 = arith.constant 0 : i32
    return %c0_i32, %c0_i32_0 : i32, i32
  }
}

</mosaic_0001>

<llo_original>
// kernel: build_transformer_forward.1
$region0: #{build_transformer_forward.1}
  #allocation0 [shape = 'u32[]', space=smem, size = 0x4, offset = 0x4, fixed_abs, tag = 'smem constant byte address 0x4 - core index']
  #allocation1 [shape = 'u32[144,128]{1,0:T(1,128)}', space=vmem, size = 0x12000, scoped, tag = 'internal scratch']
  #allocation2 [shape = 'f32[16,64]{1,0:T(8,128)}', space=vmem, size = 0x2000, scoped, tag = 'scratch operand']
  %s0 = inlined_call_operand.vmem [shape: f32[8,768], index: 0, kind: input, shape index: {}]
  %s1 = inlined_call_operand.vmem [shape: f32[16,64], index: 1, kind: input, shape index: {}]
  %s2 = inlined_call_operand.vmem [shape: f32[16,16], index: 2, kind: input, shape index: {}]
  %s3 = inlined_call_operand.vmem [shape: bf16[768,64], index: 3, kind: input, shape index: {}]
  %s4 = inlined_call_operand.vmem [shape: f32[2,1,64], index: 4, kind: input, shape index: {}]
  %s5 = inlined_call_operand.vmem [shape: f32[2,1,64], index: 5, kind: input, shape index: {}]
  %s6 = inlined_call_operand.vmem [shape: bf16[2,4,64,16], index: 6, kind: input, shape index: {}]
  %s7 = inlined_call_operand.vmem [shape: bf16[2,4,64,16], index: 7, kind: input, shape index: {}]
  %s8 = inlined_call_operand.vmem [shape: bf16[2,4,64,16], index: 8, kind: input, shape index: {}]
  %s9 = inlined_call_operand.vmem [shape: f32[2,4,1,16], index: 9, kind: input, shape index: {}]
  %s10 = inlined_call_operand.vmem [shape: f32[2,4,1,16], index: 10, kind: input, shape index: {}]
  %s11 = inlined_call_operand.vmem [shape: f32[2,4,1,16], index: 11, kind: input, shape index: {}]
  %s12 = inlined_call_operand.vmem [shape: bf16[2,4,16,64], index: 12, kind: input, shape index: {}]
  %s13 = inlined_call_operand.vmem [shape: f32[2,1,64], index: 13, kind: input, shape index: {}]
  %s14 = inlined_call_operand.vmem [shape: f32[2,1,64], index: 14, kind: input, shape index: {}]
  %s15 = inlined_call_operand.vmem [shape: f32[2,1,64], index: 15, kind: input, shape index: {}]
  %s16 = inlined_call_operand.vmem [shape: bf16[2,64,256], index: 16, kind: input, shape index: {}]
  %s17 = inlined_call_operand.vmem [shape: f32[2,1,256], index: 17, kind: input, shape index: {}]
  %s18 = inlined_call_operand.vmem [shape: bf16[2,256,64], index: 18, kind: input, shape index: {}]
  %s19 = inlined_call_operand.vmem [shape: f32[2,1,64], index: 19, kind: input, shape index: {}]
  %s20 = inlined_call_operand.vmem [shape: f32[1,64], index: 20, kind: input, shape index: {}]
  %s21 = inlined_call_operand.vmem [shape: f32[1,64], index: 21, kind: input, shape index: {}]
  %s22 = inlined_call_operand.vmem [shape: f32[1,64], index: 22, kind: input, shape index: {}]
  %s23 = inlined_call_operand.vmem [shape: f32[1,64], index: 23, kind: input, shape index: {}]
  %s24 = inlined_call_operand.vmem [shape: f32[64,64], index: 24, kind: input, shape index: {}]
  %s25 = inlined_call_operand.vmem [shape: f32[8,128], index: 25, kind: output, shape index: {}]
  %s26 = sld [smem:[#allocation0]]
  $region141: #{build_transformer_forward.1} parent=0
    _
  %s28 = ssub.s32 1, %s26
  %s29 = scalar_select 0, %s28, %s26
  loop: start=0, step=1, limit=4
  $region2: #{build_transformer_forward.1} parent=0 // loop_pre_header
    _
  $region3: #{build_transformer_forward.1} parent=0 // loop_header
    %s31 = sphi 0, %s35
    %p32 = scmp.ge.s32.totalorder %s31, 4
    %s39 = sphi 0, %s39
    %s41 = sphi 0, %s39
    %s42 = sphi 0, %s41
    %s56 = sphi 0, %s42
    %s60 = sphi 0, %s60
    %s62 = sphi 0, %s60
    %s63 = sphi 0, %s62
    %s77 = sphi 0, %s63
    %s81 = sphi 0, %s81
    %s83 = sphi 0, %s81
    %s84 = sphi 0, %s83
    %s98 = sphi 0, %s84
    %s102 = sphi 0, %s102
    %s104 = sphi 0, %s102
    %s105 = sphi 0, %s104
    %s119 = sphi 0, %s105
    %s125 = sphi 0, %s127
    %s128 = sphi 0, %s125
    %s129 = sphi 0, %s128
    %s145 = sphi 0, %s129
    %s151 = sphi 0, %s153
    %s154 = sphi 0, %s151
    %s155 = sphi 0, %s154
    %s171 = sphi 0, %s155
    %s177 = sphi 0, %s179
    %s180 = sphi 0, %s177
    %s181 = sphi 0, %s180
    %s197 = sphi 0, %s181
    %s203 = sphi 0, %s205
    %s206 = sphi 0, %s203
    %s207 = sphi 0, %s206
    %s223 = sphi 0, %s207
    %s229 = sphi 0, %s231
    %s232 = sphi 0, %s229
    %s233 = sphi 0, %s232
    %s249 = sphi 0, %s233
    %s255 = sphi 0, %s257
    %s258 = sphi 0, %s255
    %s259 = sphi 0, %s258
    %s275 = sphi 0, %s259
    %s281 = sphi 0, %s283
    %s284 = sphi 0, %s281
    %s285 = sphi 0, %s284
    %s301 = sphi 0, %s285
    %s307 = sphi 0, %s309
    %s310 = sphi 0, %s307
    %s311 = sphi 0, %s310
    %s327 = sphi 0, %s311
    %s333 = sphi 0, %s335
    %s336 = sphi 0, %s333
    %s337 = sphi 0, %s336
    %s353 = sphi 0, %s337
    %s359 = sphi 0, %s361
    %s362 = sphi 0, %s359
    %s363 = sphi 0, %s362
    %s379 = sphi 0, %s363
    %s385 = sphi 0, %s387
    %s388 = sphi 0, %s385
    %s389 = sphi 0, %s388
    %s405 = sphi 0, %s389
    %s411 = sphi 0, %s413
    %s414 = sphi 0, %s411
    %s415 = sphi 0, %s414
    %s431 = sphi 0, %s415
    %s437 = sphi 0, %s439
    %s440 = sphi 0, %s437
    %s441 = sphi 0, %s440
    %s457 = sphi 0, %s441
    %s463 = sphi 0, %s465
    %s466 = sphi 0, %s463
    %s467 = sphi 0, %s466
    %s483 = sphi 0, %s467
    %s489 = sphi 0, %s491
    %s492 = sphi 0, %s489
    %s493 = sphi 0, %s492
    %s509 = sphi 0, %s493
    %s515 = sphi 0, %s517
    %s518 = sphi 0, %s515
    %s519 = sphi 0, %s518
    %s535 = sphi 0, %s519
    %s539 = sphi 0, %s539
    %s541 = sphi 0, %s539
    %s542 = sphi 0, %s541
    %s556 = sphi 0, %s542
    %s560 = sphi 0, %s560
    %s562 = sphi 0, %s560
    %s563 = sphi 0, %s562
    %s577 = sphi 0, %s563
    %s581 = sphi 0, %s581
    %s583 = sphi 0, %s581
    %s584 = sphi 0, %s583
    %s598 = sphi 0, %s584
    %s602 = sphi 0, %s602
    %s604 = sphi 0, %s602
    %s605 = sphi 0, %s604
    %s619 = sphi 0, %s605
    %s623 = sphi 0, %s623
    %s625 = sphi 0, %s623
    %s626 = sphi 0, %s625
    %s640 = sphi 0, %s626
    %s644 = sphi 0, %s644
    %s646 = sphi 0, %s644
    %s647 = sphi 0, %s646
    %s661 = sphi 0, %s647
  $region4: #{build_transformer_forward.1} parent=0 // loop_header_branch
    %34 = sbr.rel (%p32) target = $region8
  $region5: #{build_transformer_forward.1} parent=0 // loop_body
    %s36 = ssub.s32 %s31, 1
    %s37 = ssub.s32 %s31, 2
    %s38 = sadd.s32 %s31, 1
    %s40 = sadd.s32 %s39, 1
    %p43 = scmp.eq.s32.totalorder %s31, 1
    %p44 = scmp.ne.s32.totalorder %s39, %s41
    %p45 = scmp.eq.s32.totalorder %s31, 0
    %p46 = por %p44, %p45
    %p47 = scmp.ne.s32.totalorder %s39, %s41
    %p48 = scmp.eq.s32.totalorder %s36, 1
    %p49 = por %p47, %p48
    %p50 = scmp.ne.s32.totalorder %s41, %s42
    %p51 = scmp.eq.s32.totalorder %s36, 0
    %p52 = por %p50, %p51
    %p53 = scmp.ne.s32.totalorder %s41, %s42
    %p54 = scmp.eq.s32.totalorder %s37, 1
    %p55 = por %p53, %p54
    %p57 = scmp.ne.s32.totalorder %s42, %s56
    %p58 = scmp.eq.s32.totalorder %s37, 0
    %p59 = por %p57, %p58
    %s61 = sadd.s32 %s60, 1
    %p64 = scmp.eq.s32.totalorder %s31, 1
    %p65 = scmp.ne.s32.totalorder %s60, %s62
    %p66 = scmp.eq.s32.totalorder %s31, 0
    %p67 = por %p65, %p66
    %p68 = scmp.ne.s32.totalorder %s60, %s62
    %p69 = scmp.eq.s32.totalorder %s36, 1
    %p70 = por %p68, %p69
    %p71 = scmp.ne.s32.totalorder %s62, %s63
    %p72 = scmp.eq.s32.totalorder %s36, 0
    %p73 = por %p71, %p72
    %p74 = scmp.ne.s32.totalorder %s62, %s63
    %p75 = scmp.eq.s32.totalorder %s37, 1
    %p76 = por %p74, %p75
    %p78 = scmp.ne.s32.totalorder %s63, %s77
    %p79 = scmp.eq.s32.totalorder %s37, 0
    %p80 = por %p78, %p79
    %s82 = sadd.s32 %s81, 1
    %p85 = scmp.eq.s32.totalorder %s31, 1
    %p86 = scmp.ne.s32.totalorder %s81, %s83
    %p87 = scmp.eq.s32.totalorder %s31, 0
    %p88 = por %p86, %p87
    %p89 = scmp.ne.s32.totalorder %s81, %s83
    %p90 = scmp.eq.s32.totalorder %s36, 1
    %p91 = por %p89, %p90
    %p92 = scmp.ne.s32.totalorder %s83, %s84
    %p93 = scmp.eq.s32.totalorder %s36, 0
    %p94 = por %p92, %p93
    %p95 = scmp.ne.s32.totalorder %s83, %s84
    %p96 = scmp.eq.s32.totalorder %s37, 1
    %p97 = por %p95, %p96
    %p99 = scmp.ne.s32.totalorder %s84, %s98
    %p100 = scmp.eq.s32.totalorder %s37, 0
    %p101 = por %p99, %p100
    %s103 = sadd.s32 %s102, 1
    %p106 = scmp.eq.s32.totalorder %s31, 1
    %p107 = scmp.ne.s32.totalorder %s102, %s104
    %p108 = scmp.eq.s32.totalorder %s31, 0
    %p109 = por %p107, %p108
    %p110 = scmp.ne.s32.totalorder %s102, %s104
    %p111 = scmp.eq.s32.totalorder %s36, 1
    %p112 = por %p110, %p111
    %p113 = scmp.ne.s32.totalorder %s104, %s105
    %p114 = scmp.eq.s32.totalorder %s36, 0
    %p115 = por %p113, %p114
    %p116 = scmp.ne.s32.totalorder %s104, %s105
    %p117 = scmp.eq.s32.totalorder %s37, 1
    %p118 = por %p116, %p117
    %p120 = scmp.ne.s32.totalorder %s105, %s119
    %p121 = scmp.eq.s32.totalorder %s37, 0
    %p122 = por %p120, %p121
    %s123 = ssub.s32 %s31, %s38
    %p124 = scmp.eq.s32.totalorder %s123, 0
    %s126 = sadd.s32 %s125, 1
    %s127 = scalar_select %p124, %s125, %s126
    %p130 = pneg %p124
    %p131 = scmp.eq.s32.totalorder %s31, 1
    %p132 = por %p130, %p131
    %p133 = scmp.ne.s32.totalorder %s125, %s128
    %p134 = scmp.eq.s32.totalorder %s31, 0
    %p135 = por %p133, %p134
    %p136 = scmp.ne.s32.totalorder %s125, %s128
    %p137 = scmp.eq.s32.totalorder %s36, 1
    %p138 = por %p136, %p137
    %p139 = scmp.ne.s32.totalorder %s128, %s129
    %p140 = scmp.eq.s32.totalorder %s36, 0
    %p141 = por %p139, %p140
    %p142 = scmp.ne.s32.totalorder %s128, %s129
    %p143 = scmp.eq.s32.totalorder %s37, 1
    %p144 = por %p142, %p143
    %p146 = scmp.ne.s32.totalorder %s129, %s145
    %p147 = scmp.eq.s32.totalorder %s37, 0
    %p148 = por %p146, %p147
    %s149 = ssub.s32 %s31, %s38
    %p150 = scmp.eq.s32.totalorder %s149, 0
    %s152 = sadd.s32 %s151, 1
    %s153 = scalar_select %p150, %s151, %s152
    %p156 = pneg %p150
    %p157 = scmp.eq.s32.totalorder %s31, 1
    %p158 = por %p156, %p157
    %p159 = scmp.ne.s32.totalorder %s151, %s154
    %p160 = scmp.eq.s32.totalorder %s31, 0
    %p161 = por %p159, %p160
    %p162 = scmp.ne.s32.totalorder %s151, %s154
    %p163 = scmp.eq.s32.totalorder %s36, 1
    %p164 = por %p162, %p163
    %p165 = scmp.ne.s32.totalorder %s154, %s155
    %p166 = scmp.eq.s32.totalorder %s36, 0
    %p167 = por %p165, %p166
    %p168 = scmp.ne.s32.totalorder %s154, %s155
    %p169 = scmp.eq.s32.totalorder %s37, 1
    %p170 = por %p168, %p169
    %p172 = scmp.ne.s32.totalorder %s155, %s171
    %p173 = scmp.eq.s32.totalorder %s37, 0
    %p174 = por %p172, %p173
    %s175 = ssub.s32 %s31, %s38
    %p176 = scmp.eq.s32.totalorder %s175, 0
    %s178 = sadd.s32 %s177, 1
    %s179 = scalar_select %p176, %s177, %s178
    %p182 = pneg %p176
    %p183 = scmp.eq.s32.totalorder %s31, 1
    %p184 = por %p182, %p183
    %p185 = scmp.ne.s32.totalorder %s177, %s180
    %p186 = scmp.eq.s32.totalorder %s31, 0
    %p187 = por %p185, %p186
    %p188 = scmp.ne.s32.totalorder %s177, %s180
    %p189 = scmp.eq.s32.totalorder %s36, 1
    %p190 = por %p188, %p189
    %p191 = scmp.ne.s32.totalorder %s180, %s181
    %p192 = scmp.eq.s32.totalorder %s36, 0
    %p193 = por %p191, %p192
    %p194 = scmp.ne.s32.totalorder %s180, %s181
    %p195 = scmp.eq.s32.totalorder %s37, 1
    %p196 = por %p194, %p195
    %p198 = scmp.ne.s32.totalorder %s181, %s197
    %p199 = scmp.eq.s32.totalorder %s37, 0
    %p200 = por %p198, %p199
    %s201 = ssub.s32 %s31, %s38
    %p202 = scmp.eq.s32.totalorder %s201, 0
    %s204 = sadd.s32 %s203, 1
    %s205 = scalar_select %p202, %s203, %s204
    %p208 = pneg %p202
    %p209 = scmp.eq.s32.totalorder %s31, 1
    %p210 = por %p208, %p209
    %p211 = scmp.ne.s32.totalorder %s203, %s206
    %p212 = scmp.eq.s32.totalorder %s31, 0
    %p213 = por %p211, %p212
    %p214 = scmp.ne.s32.totalorder %s203, %s206
    %p215 = scmp.eq.s32.totalorder %s36, 1
    %p216 = por %p214, %p215
    %p217 = scmp.ne.s32.totalorder %s206, %s207
    %p218 = scmp.eq.s32.totalorder %s36, 0
    %p219 = por %p217, %p218
    %p220 = scmp.ne.s32.totalorder %s206, %s207
    %p221 = scmp.eq.s32.totalorder %s37, 1
    %p222 = por %p220, %p221
    %p224 = scmp.ne.s32.totalorder %s207, %s223
    %p225 = scmp.eq.s32.totalorder %s37, 0
    %p226 = por %p224, %p225
    %s227 = ssub.s32 %s31, %s38
    %p228 = scmp.eq.s32.totalorder %s227, 0
    %s230 = sadd.s32 %s229, 1
    %s231 = scalar_select %p228, %s229, %s230
    %p234 = pneg %p228
    %p235 = scmp.eq.s32.totalorder %s31, 1
    %p236 = por %p234, %p235
    %p237 = scmp.ne.s32.totalorder %s229, %s232
    %p238 = scmp.eq.s32.totalorder %s31, 0
    %p239 = por %p237, %p238
    %p240 = scmp.ne.s32.totalorder %s229, %s232
    %p241 = scmp.eq.s32.totalorder %s36, 1
    %p242 = por %p240, %p241
    %p243 = scmp.ne.s32.totalorder %s232, %s233
    %p244 = scmp.eq.s32.totalorder %s36, 0
    %p245 = por %p243, %p244
    %p246 = scmp.ne.s32.totalorder %s232, %s233
    %p247 = scmp.eq.s32.totalorder %s37, 1
    %p248 = por %p246, %p247
    %p250 = scmp.ne.s32.totalorder %s233, %s249
    %p251 = scmp.eq.s32.totalorder %s37, 0
    %p252 = por %p250, %p251
    %s253 = ssub.s32 %s31, %s38
    %p254 = scmp.eq.s32.totalorder %s253, 0
    %s256 = sadd.s32 %s255, 1
    %s257 = scalar_select %p254, %s255, %s256
    %p260 = pneg %p254
    %p261 = scmp.eq.s32.totalorder %s31, 1
    %p262 = por %p260, %p261
    %p263 = scmp.ne.s32.totalorder %s255, %s258
    %p264 = scmp.eq.s32.totalorder %s31, 0
    %p265 = por %p263, %p264
    %p266 = scmp.ne.s32.totalorder %s255, %s258
    %p267 = scmp.eq.s32.totalorder %s36, 1
    %p268 = por %p266, %p267
    %p269 = scmp.ne.s32.totalorder %s258, %s259
    %p270 = scmp.eq.s32.totalorder %s36, 0
    %p271 = por %p269, %p270
    %p272 = scmp.ne.s32.totalorder %s258, %s259
    %p273 = scmp.eq.s32.totalorder %s37, 1
    %p274 = por %p272, %p273
    %p276 = scmp.ne.s32.totalorder %s259, %s275
    %p277 = scmp.eq.s32.totalorder %s37, 0
    %p278 = por %p276, %p277
    %s279 = ssub.s32 %s31, %s38
    %p280 = scmp.eq.s32.totalorder %s279, 0
    %s282 = sadd.s32 %s281, 1
    %s283 = scalar_select %p280, %s281, %s282
    %p286 = pneg %p280
    %p287 = scmp.eq.s32.totalorder %s31, 1
    %p288 = por %p286, %p287
    %p289 = scmp.ne.s32.totalorder %s281, %s284
    %p290 = scmp.eq.s32.totalorder %s31, 0
    %p291 = por %p289, %p290
    %p292 = scmp.ne.s32.totalorder %s281, %s284
    %p293 = scmp.eq.s32.totalorder %s36, 1
    %p294 = por %p292, %p293
    %p295 = scmp.ne.s32.totalorder %s284, %s285
    %p296 = scmp.eq.s32.totalorder %s36, 0
    %p297 = por %p295, %p296
    %p298 = scmp.ne.s32.totalorder %s284, %s285
    %p299 = scmp.eq.s32.totalorder %s37, 1
    %p300 = por %p298, %p299
    %p302 = scmp.ne.s32.totalorder %s285, %s301
    %p303 = scmp.eq.s32.totalorder %s37, 0
    %p304 = por %p302, %p303
    %s305 = ssub.s32 %s31, %s38
    %p306 = scmp.eq.s32.totalorder %s305, 0
    %s308 = sadd.s32 %s307, 1
    %s309 = scalar_select %p306, %s307, %s308
    %p312 = pneg %p306
    %p313 = scmp.eq.s32.totalorder %s31, 1
    %p314 = por %p312, %p313
    %p315 = scmp.ne.s32.totalorder %s307, %s310
    %p316 = scmp.eq.s32.totalorder %s31, 0
    %p317 = por %p315, %p316
    %p318 = scmp.ne.s32.totalorder %s307, %s310
    %p319 = scmp.eq.s32.totalorder %s36, 1
    %p320 = por %p318, %p319
    %p321 = scmp.ne.s32.totalorder %s310, %s311
    %p322 = scmp.eq.s32.totalorder %s36, 0
    %p323 = por %p321, %p322
    %p324 = scmp.ne.s32.totalorder %s310, %s311
    %p325 = scmp.eq.s32.totalorder %s37, 1
    %p326 = por %p324, %p325
    %p328 = scmp.ne.s32.totalorder %s311, %s327
    %p329 = scmp.eq.s32.totalorder %s37, 0
    %p330 = por %p328, %p329
    %s331 = ssub.s32 %s31, %s38
    %p332 = scmp.eq.s32.totalorder %s331, 0
    %s334 = sadd.s32 %s333, 1
    %s335 = scalar_select %p332, %s333, %s334
    %p338 = pneg %p332
    %p339 = scmp.eq.s32.totalorder %s31, 1
    %p340 = por %p338, %p339
    %p341 = scmp.ne.s32.totalorder %s333, %s336
    %p342 = scmp.eq.s32.totalorder %s31, 0
    %p343 = por %p341, %p342
    %p344 = scmp.ne.s32.totalorder %s333, %s336
    %p345 = scmp.eq.s32.totalorder %s36, 1
    %p346 = por %p344, %p345
    %p347 = scmp.ne.s32.totalorder %s336, %s337
    %p348 = scmp.eq.s32.totalorder %s36, 0
    %p349 = por %p347, %p348
    %p350 = scmp.ne.s32.totalorder %s336, %s337
    %p351 = scmp.eq.s32.totalorder %s37, 1
    %p352 = por %p350, %p351
    %p354 = scmp.ne.s32.totalorder %s337, %s353
    %p355 = scmp.eq.s32.totalorder %s37, 0
    %p356 = por %p354, %p355
    %s357 = ssub.s32 %s31, %s38
    %p358 = scmp.eq.s32.totalorder %s357, 0
    %s360 = sadd.s32 %s359, 1
    %s361 = scalar_select %p358, %s359, %s360
    %p364 = pneg %p358
    %p365 = scmp.eq.s32.totalorder %s31, 1
    %p366 = por %p364, %p365
    %p367 = scmp.ne.s32.totalorder %s359, %s362
    %p368 = scmp.eq.s32.totalorder %s31, 0
    %p369 = por %p367, %p368
    %p370 = scmp.ne.s32.totalorder %s359, %s362
    %p371 = scmp.eq.s32.totalorder %s36, 1
    %p372 = por %p370, %p371
    %p373 = scmp.ne.s32.totalorder %s362, %s363
    %p374 = scmp.eq.s32.totalorder %s36, 0
    %p375 = por %p373, %p374
    %p376 = scmp.ne.s32.totalorder %s362, %s363
    %p377 = scmp.eq.s32.totalorder %s37, 1
    %p378 = por %p376, %p377
    %p380 = scmp.ne.s32.totalorder %s363, %s379
    %p381 = scmp.eq.s32.totalorder %s37, 0
    %p382 = por %p380, %p381
    %s383 = ssub.s32 %s31, %s38
    %p384 = scmp.eq.s32.totalorder %s383, 0
    %s386 = sadd.s32 %s385, 1
    %s387 = scalar_select %p384, %s385, %s386
    %p390 = pneg %p384
    %p391 = scmp.eq.s32.totalorder %s31, 1
    %p392 = por %p390, %p391
    %p393 = scmp.ne.s32.totalorder %s385, %s388
    %p394 = scmp.eq.s32.totalorder %s31, 0
    %p395 = por %p393, %p394
    %p396 = scmp.ne.s32.totalorder %s385, %s388
    %p397 = scmp.eq.s32.totalorder %s36, 1
    %p398 = por %p396, %p397
    %p399 = scmp.ne.s32.totalorder %s388, %s389
    %p400 = scmp.eq.s32.totalorder %s36, 0
    %p401 = por %p399, %p400
    %p402 = scmp.ne.s32.totalorder %s388, %s389
    %p403 = scmp.eq.s32.totalorder %s37, 1
    %p404 = por %p402, %p403
    %p406 = scmp.ne.s32.totalorder %s389, %s405
    %p407 = scmp.eq.s32.totalorder %s37, 0
    %p408 = por %p406, %p407
    %s409 = ssub.s32 %s31, %s38
    %p410 = scmp.eq.s32.totalorder %s409, 0
    %s412 = sadd.s32 %s411, 1
    %s413 = scalar_select %p410, %s411, %s412
    %p416 = pneg %p410
    %p417 = scmp.eq.s32.totalorder %s31, 1
    %p418 = por %p416, %p417
    %p419 = scmp.ne.s32.totalorder %s411, %s414
    %p420 = scmp.eq.s32.totalorder %s31, 0
    %p421 = por %p419, %p420
    %p422 = scmp.ne.s32.totalorder %s411, %s414
    %p423 = scmp.eq.s32.totalorder %s36, 1
    %p424 = por %p422, %p423
    %p425 = scmp.ne.s32.totalorder %s414, %s415
    %p426 = scmp.eq.s32.totalorder %s36, 0
    %p427 = por %p425, %p426
    %p428 = scmp.ne.s32.totalorder %s414, %s415
    %p429 = scmp.eq.s32.totalorder %s37, 1
    %p430 = por %p428, %p429
    %p432 = scmp.ne.s32.totalorder %s415, %s431
    %p433 = scmp.eq.s32.totalorder %s37, 0
    %p434 = por %p432, %p433
    %s435 = ssub.s32 %s31, %s38
    %p436 = scmp.eq.s32.totalorder %s435, 0
    %s438 = sadd.s32 %s437, 1
    %s439 = scalar_select %p436, %s437, %s438
    %p442 = pneg %p436
    %p443 = scmp.eq.s32.totalorder %s31, 1
    %p444 = por %p442, %p443
    %p445 = scmp.ne.s32.totalorder %s437, %s440
    %p446 = scmp.eq.s32.totalorder %s31, 0
    %p447 = por %p445, %p446
    %p448 = scmp.ne.s32.totalorder %s437, %s440
    %p449 = scmp.eq.s32.totalorder %s36, 1
    %p450 = por %p448, %p449
    %p451 = scmp.ne.s32.totalorder %s440, %s441
    %p452 = scmp.eq.s32.totalorder %s36, 0
    %p453 = por %p451, %p452
    %p454 = scmp.ne.s32.totalorder %s440, %s441
    %p455 = scmp.eq.s32.totalorder %s37, 1
    %p456 = por %p454, %p455
    %p458 = scmp.ne.s32.totalorder %s441, %s457
    %p459 = scmp.eq.s32.totalorder %s37, 0
    %p460 = por %p458, %p459
    %s461 = ssub.s32 %s31, %s38
    %p462 = scmp.eq.s32.totalorder %s461, 0
    %s464 = sadd.s32 %s463, 1
    %s465 = scalar_select %p462, %s463, %s464
    %p468 = pneg %p462
    %p469 = scmp.eq.s32.totalorder %s31, 1
    %p470 = por %p468, %p469
    %p471 = scmp.ne.s32.totalorder %s463, %s466
    %p472 = scmp.eq.s32.totalorder %s31, 0
    %p473 = por %p471, %p472
    %p474 = scmp.ne.s32.totalorder %s463, %s466
    %p475 = scmp.eq.s32.totalorder %s36, 1
    %p476 = por %p474, %p475
    %p477 = scmp.ne.s32.totalorder %s466, %s467
    %p478 = scmp.eq.s32.totalorder %s36, 0
    %p479 = por %p477, %p478
    %p480 = scmp.ne.s32.totalorder %s466, %s467
    %p481 = scmp.eq.s32.totalorder %s37, 1
    %p482 = por %p480, %p481
    %p484 = scmp.ne.s32.totalorder %s467, %s483
    %p485 = scmp.eq.s32.totalorder %s37, 0
    %p486 = por %p484, %p485
    %s487 = ssub.s32 %s31, %s38
    %p488 = scmp.eq.s32.totalorder %s487, 0
    %s490 = sadd.s32 %s489, 1
    %s491 = scalar_select %p488, %s489, %s490
    %p494 = pneg %p488
    %p495 = scmp.eq.s32.totalorder %s31, 1
    %p496 = por %p494, %p495
    %p497 = scmp.ne.s32.totalorder %s489, %s492
    %p498 = scmp.eq.s32.totalorder %s31, 0
    %p499 = por %p497, %p498
    %p500 = scmp.ne.s32.totalorder %s489, %s492
    %p501 = scmp.eq.s32.totalorder %s36, 1
    %p502 = por %p500, %p501
    %p503 = scmp.ne.s32.totalorder %s492, %s493
    %p504 = scmp.eq.s32.totalorder %s36, 0
    %p505 = por %p503, %p504
    %p506 = scmp.ne.s32.totalorder %s492, %s493
    %p507 = scmp.eq.s32.totalorder %s37, 1
    %p508 = por %p506, %p507
    %p510 = scmp.ne.s32.totalorder %s493, %s509
    %p511 = scmp.eq.s32.totalorder %s37, 0
    %p512 = por %p510, %p511
    %s513 = ssub.s32 %s31, %s38
    %p514 = scmp.eq.s32.totalorder %s513, 0
    %s516 = sadd.s32 %s515, 1
    %s517 = scalar_select %p514, %s515, %s516
    %p520 = pneg %p514
    %p521 = scmp.eq.s32.totalorder %s31, 1
    %p522 = por %p520, %p521
    %p523 = scmp.ne.s32.totalorder %s515, %s518
    %p524 = scmp.eq.s32.totalorder %s31, 0
    %p525 = por %p523, %p524
    %p526 = scmp.ne.s32.totalorder %s515, %s518
    %p527 = scmp.eq.s32.totalorder %s36, 1
    %p528 = por %p526, %p527
    %p529 = scmp.ne.s32.totalorder %s518, %s519
    %p530 = scmp.eq.s32.totalorder %s36, 0
    %p531 = por %p529, %p530
    %p532 = scmp.ne.s32.totalorder %s518, %s519
    %p533 = scmp.eq.s32.totalorder %s37, 1
    %p534 = por %p532, %p533
    %p536 = scmp.ne.s32.totalorder %s519, %s535
    %p537 = scmp.eq.s32.totalorder %s37, 0
    %p538 = por %p536, %p537
    %s540 = sadd.s32 %s539, 1
    %p543 = scmp.eq.s32.totalorder %s31, 1
    %p544 = scmp.ne.s32.totalorder %s539, %s541
    %p545 = scmp.eq.s32.totalorder %s31, 0
    %p546 = por %p544, %p545
    %p547 = scmp.ne.s32.totalorder %s539, %s541
    %p548 = scmp.eq.s32.totalorder %s36, 1
    %p549 = por %p547, %p548
    %p550 = scmp.ne.s32.totalorder %s541, %s542
    %p551 = scmp.eq.s32.totalorder %s36, 0
    %p552 = por %p550, %p551
    %p553 = scmp.ne.s32.totalorder %s541, %s542
    %p554 = scmp.eq.s32.totalorder %s37, 1
    %p555 = por %p553, %p554
    %p557 = scmp.ne.s32.totalorder %s542, %s556
    %p558 = scmp.eq.s32.totalorder %s37, 0
    %p559 = por %p557, %p558
    %s561 = sadd.s32 %s560, 1
    %p564 = scmp.eq.s32.totalorder %s31, 1
    %p565 = scmp.ne.s32.totalorder %s560, %s562
    %p566 = scmp.eq.s32.totalorder %s31, 0
    %p567 = por %p565, %p566
    %p568 = scmp.ne.s32.totalorder %s560, %s562
    %p569 = scmp.eq.s32.totalorder %s36, 1
    %p570 = por %p568, %p569
    %p571 = scmp.ne.s32.totalorder %s562, %s563
    %p572 = scmp.eq.s32.totalorder %s36, 0
    %p573 = por %p571, %p572
    %p574 = scmp.ne.s32.totalorder %s562, %s563
    %p575 = scmp.eq.s32.totalorder %s37, 1
    %p576 = por %p574, %p575
    %p578 = scmp.ne.s32.totalorder %s563, %s577
    %p579 = scmp.eq.s32.totalorder %s37, 0
    %p580 = por %p578, %p579
    %s582 = sadd.s32 %s581, 1
    %p585 = scmp.eq.s32.totalorder %s31, 1
    %p586 = scmp.ne.s32.totalorder %s581, %s583
    %p587 = scmp.eq.s32.totalorder %s31, 0
    %p588 = por %p586, %p587
    %p589 = scmp.ne.s32.totalorder %s581, %s583
    %p590 = scmp.eq.s32.totalorder %s36, 1
    %p591 = por %p589, %p590
    %p592 = scmp.ne.s32.totalorder %s583, %s584
    %p593 = scmp.eq.s32.totalorder %s36, 0
    %p594 = por %p592, %p593
    %p595 = scmp.ne.s32.totalorder %s583, %s584
    %p596 = scmp.eq.s32.totalorder %s37, 1
    %p597 = por %p595, %p596
    %p599 = scmp.ne.s32.totalorder %s584, %s598
    %p600 = scmp.eq.s32.totalorder %s37, 0
    %p601 = por %p599, %p600
    %s603 = sadd.s32 %s602, 1
    %p606 = scmp.eq.s32.totalorder %s31, 1
    %p607 = scmp.ne.s32.totalorder %s602, %s604
    %p608 = scmp.eq.s32.totalorder %s31, 0
    %p609 = por %p607, %p608
    %p610 = scmp.ne.s32.totalorder %s602, %s604
    %p611 = scmp.eq.s32.totalorder %s36, 1
    %p612 = por %p610, %p611
    %p613 = scmp.ne.s32.totalorder %s604, %s605
    %p614 = scmp.eq.s32.totalorder %s36, 0
    %p615 = por %p613, %p614
    %p616 = scmp.ne.s32.totalorder %s604, %s605
    %p617 = scmp.eq.s32.totalorder %s37, 1
    %p618 = por %p616, %p617
    %p620 = scmp.ne.s32.totalorder %s605, %s619
    %p621 = scmp.eq.s32.totalorder %s37, 0
    %p622 = por %p620, %p621
    %s624 = sadd.s32 %s623, 1
    %p627 = scmp.eq.s32.totalorder %s31, 1
    %p628 = scmp.ne.s32.totalorder %s623, %s625
    %p629 = scmp.eq.s32.totalorder %s31, 0
    %p630 = por %p628, %p629
    %p631 = scmp.ne.s32.totalorder %s623, %s625
    %p632 = scmp.eq.s32.totalorder %s36, 1
    %p633 = por %p631, %p632
    %p634 = scmp.ne.s32.totalorder %s625, %s626
    %p635 = scmp.eq.s32.totalorder %s36, 0
    %p636 = por %p634, %p635
    %p637 = scmp.ne.s32.totalorder %s625, %s626
    %p638 = scmp.eq.s32.totalorder %s37, 1
    %p639 = por %p637, %p638
    %p641 = scmp.ne.s32.totalorder %s626, %s640
    %p642 = scmp.eq.s32.totalorder %s37, 0
    %p643 = por %p641, %p642
    %s645 = sadd.s32 %s644, 1
    %p648 = scmp.eq.s32.totalorder %s31, 1
    %p649 = scmp.ne.s32.totalorder %s644, %s646
    %p650 = scmp.eq.s32.totalorder %s31, 0
    %p651 = por %p649, %p650
    %p652 = scmp.ne.s32.totalorder %s644, %s646
    %p653 = scmp.eq.s32.totalorder %s36, 1
    %p654 = por %p652, %p653
    %p655 = scmp.ne.s32.totalorder %s646, %s647
    %p656 = scmp.eq.s32.totalorder %s36, 0
    %p657 = por %p655, %p656
    %p658 = scmp.ne.s32.totalorder %s646, %s647
    %p659 = scmp.eq.s32.totalorder %s37, 1
    %p660 = por %p658, %p659
    %p662 = scmp.ne.s32.totalorder %s647, %s661
    %p663 = scmp.eq.s32.totalorder %s37, 0
    %p664 = por %p662, %p663
    %p665 = scmp.le.s32.totalorder 1, %s31
    %p666 = scmp.lt.s32.totalorder %s31, 3
    %p667 = pnand %p665, %p666
    %p668 = pneg %p667
    // Predicated region
    $region9: #{build_transformer_forward.1} parent=5 // pred_check
      _
    $region10: #{build_transformer_forward.1} parent=5 // pred_check_branch
      %670 = sbr.rel (%p667) target = $region12
    $region11: #{build_transformer_forward.1} parent=5 // pred_region
      %s671 = ssub.s32 %s31, 1
      // Predicated region
      $region13: #{build_transformer_forward.1} parent=11 // pred_check
        %p672 = pneg %p52
      $region14: #{build_transformer_forward.1} parent=11 // pred_check_branch
        %674 = sbr.rel (%p672) target = $region16
      $region15: #{build_transformer_forward.1} parent=11 // pred_region
        _
      $region16: #{build_transformer_forward.1} parent=11 // pred_fallthru
        _
      // Predicated region
      $region17: #{build_transformer_forward.1} parent=11 // pred_check
        %p675 = pneg %p73
      $region18: #{build_transformer_forward.1} parent=11 // pred_check_branch
        %677 = sbr.rel (%p675) target = $region20
      $region19: #{build_transformer_forward.1} parent=11 // pred_region
        _
      $region20: #{build_transformer_forward.1} parent=11 // pred_fallthru
        _
      // Predicated region
      $region21: #{build_transformer_forward.1} parent=11 // pred_check
        %p678 = pneg %p94
      $region22: #{build_transformer_forward.1} parent=11 // pred_check_branch
        %680 = sbr.rel (%p678) target = $region24
      $region23: #{build_transformer_forward.1} parent=11 // pred_region
        _
      $region24: #{build_transformer_forward.1} parent=11 // pred_fallthru
        _
      // Predicated region
      $region25: #{build_transformer_forward.1} parent=11 // pred_check
        %p681 = pneg %p115
      $region26: #{build_transformer_forward.1} parent=11 // pred_check_branch
        %683 = sbr.rel (%p681) target = $region28
      $region27: #{build_transformer_forward.1} parent=11 // pred_region
        _
      $region28: #{build_transformer_forward.1} parent=11 // pred_fallthru
        _
      // Predicated region
      $region29: #{build_transformer_forward.1} parent=11 // pred_check
        %p684 = pneg %p552
      $region30: #{build_transformer_forward.1} parent=11 // pred_check_branch
        %686 = sbr.rel (%p684) target = $region32
      $region31: #{build_transformer_forward.1} parent=11 // pred_region
        _
      $region32: #{build_transformer_forward.1} parent=11 // pred_fallthru
        _
      // Predicated region
      $region33: #{build_transformer_forward.1} parent=11 // pred_check
        %p687 = pneg %p573
      $region34: #{build_transformer_forward.1} parent=11 // pred_check_branch
        %689 = sbr.rel (%p687) target = $region36
      $region35: #{build_transformer_forward.1} parent=11 // pred_region
        _
      $region36: #{build_transformer_forward.1} parent=11 // pred_fallthru
        _
      // Predicated region
      $region37: #{build_transformer_forward.1} parent=11 // pred_check
        %p690 = pneg %p594
      $region38: #{build_transformer_forward.1} parent=11 // pred_check_branch
        %692 = sbr.rel (%p690) target = $region40
      $region39: #{build_transformer_forward.1} parent=11 // pred_region
        _
      $region40: #{build_transformer_forward.1} parent=11 // pred_fallthru
        _
      // Predicated region
      $region41: #{build_transformer_forward.1} parent=11 // pred_check
        %p693 = pneg %p615
      $region42: #{build_transformer_forward.1} parent=11 // pred_check_branch
        %695 = sbr.rel (%p693) target = $region44
      $region43: #{build_transformer_forward.1} parent=11 // pred_region
        _
      $region44: #{build_transformer_forward.1} parent=11 // pred_fallthru
        _
      // Predicated region
      $region45: #{build_transformer_forward.1} parent=11 // pred_check
        %p696 = pneg %p636
      $region46: #{build_transformer_forward.1} parent=11 // pred_check_branch
        %698 = sbr.rel (%p696) target = $region48
      $region47: #{build_transformer_forward.1} parent=11 // pred_region
        _
      $region48: #{build_transformer_forward.1} parent=11 // pred_fallthru
        _
    $region12: #{build_transformer_forward.1} parent=5 // pred_fallthru
      _
    %p699 = scmp.lt.s32.totalorder %s31, 2
    // Predicated region
    $region49: #{build_transformer_forward.1} parent=5 // pred_check
      %p700 = pneg %p699
    $region50: #{build_transformer_forward.1} parent=5 // pred_check_branch
      %702 = sbr.rel (%p700) target = $region52
    $region51: #{build_transformer_forward.1} parent=5 // pred_region
      // Predicated region
      $region53: #{build_transformer_forward.1} parent=51 // pred_check
        %p703 = pneg %p135
      $region54: #{build_transformer_forward.1} parent=51 // pred_check_branch
        %705 = sbr.rel (%p703) target = $region56
      $region55: #{build_transformer_forward.1} parent=51 // pred_region
        %p706 = scmp.lt.s32.totalorder %s31, 1
        %s707 = scalar_select %p706, %s31, 1
        %s708 = scalar_lea.vmem %s4, %s707
      $region56: #{build_transformer_forward.1} parent=51 // pred_fallthru
        _
      // Predicated region
      $region57: #{build_transformer_forward.1} parent=51 // pred_check
        %p709 = pneg %p161
      $region58: #{build_transformer_forward.1} parent=51 // pred_check_branch
        %711 = sbr.rel (%p709) target = $region60
      $region59: #{build_transformer_forward.1} parent=51 // pred_region
        %p712 = scmp.lt.s32.totalorder %s31, 1
        %s713 = scalar_select %p712, %s31, 1
        %s714 = scalar_lea.vmem %s5, %s713
      $region60: #{build_transformer_forward.1} parent=51 // pred_fallthru
        _
      // Predicated region
      $region61: #{build_transformer_forward.1} parent=51 // pred_check
        %p715 = pneg %p187
      $region62: #{build_transformer_forward.1} parent=51 // pred_check_branch
        %717 = sbr.rel (%p715) target = $region64
      $region63: #{build_transformer_forward.1} parent=51 // pred_region
        %p718 = scmp.lt.s32.totalorder %s31, 1
        %s719 = scalar_select %p718, %s31, 1
        %s720 = smul.addr %s719, 32
        %s721 = smul.addr %s720, 4
        %s722 = scalar_lea.vmem %s6, %s721
      $region64: #{build_transformer_forward.1} parent=51 // pred_fallthru
        _
      // Predicated region
      $region65: #{build_transformer_forward.1} parent=51 // pred_check
        %p723 = pneg %p213
      $region66: #{build_transformer_forward.1} parent=51 // pred_check_branch
        %725 = sbr.rel (%p723) target = $region68
      $region67: #{build_transformer_forward.1} parent=51 // pred_region
        %p726 = scmp.lt.s32.totalorder %s31, 1
        %s727 = scalar_select %p726, %s31, 1
        %s728 = smul.addr %s727, 32
        %s729 = smul.addr %s728, 4
        %s730 = scalar_lea.vmem %s7, %s729
      $region68: #{build_transformer_forward.1} parent=51 // pred_fallthru
        _
      // Predicated region
      $region69: #{build_transformer_forward.1} parent=51 // pred_check
        %p731 = pneg %p239
      $region70: #{build_transformer_forward.1} parent=51 // pred_check_branch
        %733 = sbr.rel (%p731) target = $region72
      $region71: #{build_transformer_forward.1} parent=51 // pred_region
        %p734 = scmp.lt.s32.totalorder %s31, 1
        %s735 = scalar_select %p734, %s31, 1
        %s736 = smul.addr %s735, 32
        %s737 = smul.addr %s736, 4
        %s738 = scalar_lea.vmem %s8, %s737
      $region72: #{build_transformer_forward.1} parent=51 // pred_fallthru
        _
      // Predicated region
      $region73: #{build_transformer_forward.1} parent=51 // pred_check
        %p739 = pneg %p265
      $region74: #{build_transformer_forward.1} parent=51 // pred_check_branch
        %741 = sbr.rel (%p739) target = $region76
      $region75: #{build_transformer_forward.1} parent=51 // pred_region
        %p742 = scmp.lt.s32.totalorder %s31, 1
        %s743 = scalar_select %p742, %s31, 1
        %s744 = smul.addr %s743, 4
        %s745 = scalar_lea.vmem %s9, %s744
      $region76: #{build_transformer_forward.1} parent=51 // pred_fallthru
        _
      // Predicated region
      $region77: #{build_transformer_forward.1} parent=51 // pred_check
        %p746 = pneg %p291
      $region78: #{build_transformer_forward.1} parent=51 // pred_check_branch
        %748 = sbr.rel (%p746) target = $region80
      $region79: #{build_transformer_forward.1} parent=51 // pred_region
        %p749 = scmp.lt.s32.totalorder %s31, 1
        %s750 = scalar_select %p749, %s31, 1
        %s751 = smul.addr %s750, 4
        %s752 = scalar_lea.vmem %s10, %s751
      $region80: #{build_transformer_forward.1} parent=51 // pred_fallthru
        _
      // Predicated region
      $region81: #{build_transformer_forward.1} parent=51 // pred_check
        %p753 = pneg %p317
      $region82: #{build_transformer_forward.1} parent=51 // pred_check_branch
        %755 = sbr.rel (%p753) target = $region84
      $region83: #{build_transformer_forward.1} parent=51 // pred_region
        %p756 = scmp.lt.s32.totalorder %s31, 1
        %s757 = scalar_select %p756, %s31, 1
        %s758 = smul.addr %s757, 4
        %s759 = scalar_lea.vmem %s11, %s758
      $region84: #{build_transformer_forward.1} parent=51 // pred_fallthru
        _
      // Predicated region
      $region85: #{build_transformer_forward.1} parent=51 // pred_check
        %p760 = pneg %p343
      $region86: #{build_transformer_forward.1} parent=51 // pred_check_branch
        %762 = sbr.rel (%p760) target = $region88
      $region87: #{build_transformer_forward.1} parent=51 // pred_region
        %p763 = scmp.lt.s32.totalorder %s31, 1
        %s764 = scalar_select %p763, %s31, 1
        %s765 = smul.addr %s764, 8
        %s766 = smul.addr %s765, 4
        %s767 = scalar_lea.vmem %s12, %s766
      $region88: #{build_transformer_forward.1} parent=51 // pred_fallthru
        _
      // Predicated region
      $region89: #{build_transformer_forward.1} parent=51 // pred_check
        %p768 = pneg %p369
      $region90: #{build_transformer_forward.1} parent=51 // pred_check_branch
        %770 = sbr.rel (%p768) target = $region92
      $region91: #{build_transformer_forward.1} parent=51 // pred_region
        %p771 = scmp.lt.s32.totalorder %s31, 1
        %s772 = scalar_select %p771, %s31, 1
        %s773 = scalar_lea.vmem %s13, %s772
      $region92: #{build_transformer_forward.1} parent=51 // pred_fallthru
        _
      // Predicated region
      $region93: #{build_transformer_forward.1} parent=51 // pred_check
        %p774 = pneg %p395
      $region94: #{build_transformer_forward.1} parent=51 // pred_check_branch
        %776 = sbr.rel (%p774) target = $region96
      $region95: #{build_transformer_forward.1} parent=51 // pred_region
        %p777 = scmp.lt.s32.totalorder %s31, 1
        %s778 = scalar_select %p777, %s31, 1
        %s779 = scalar_lea.vmem %s14, %s778
      $region96: #{build_transformer_forward.1} parent=51 // pred_fallthru
        _
      // Predicated region
      $region97: #{build_transformer_forward.1} parent=51 // pred_check
        %p780 = pneg %p421
      $region98: #{build_transformer_forward.1} parent=51 // pred_check_branch
        %782 = sbr.rel (%p780) target = $region100
      $region99: #{build_transformer_forward.1} parent=51 // pred_region
        %p783 = scmp.lt.s32.totalorder %s31, 1
        %s784 = scalar_select %p783, %s31, 1
        %s785 = scalar_lea.vmem %s15, %s784
      $region100: #{build_transformer_forward.1} parent=51 // pred_fallthru
        _
      // Predicated region
      $region101: #{build_transformer_forward.1} parent=51 // pred_check
        %p786 = pneg %p447
      $region102: #{build_transformer_forward.1} parent=51 // pred_check_branch
        %788 = sbr.rel (%p786) target = $region104
      $region103: #{build_transformer_forward.1} parent=51 // pred_region
        %p789 = scmp.lt.s32.totalorder %s31, 1
        %s790 = scalar_select %p789, %s31, 1
        %s791 = smul.addr %s790, 16
        %s792 = smul.addr %s791, 4
        %s793 = scalar_lea.vmem %s16, %s792
      $region104: #{build_transformer_forward.1} parent=51 // pred_fallthru
        _
      // Predicated region
      $region105: #{build_transformer_forward.1} parent=51 // pred_check
        %p794 = pneg %p473
      $region106: #{build_transformer_forward.1} parent=51 // pred_check_branch
        %796 = sbr.rel (%p794) target = $region108
      $region107: #{build_transformer_forward.1} parent=51 // pred_region
        %p797 = scmp.lt.s32.totalorder %s31, 1
        %s798 = scalar_select %p797, %s31, 1
        %s799 = smul.addr %s798, 2
        %s800 = scalar_lea.vmem %s17, %s799
      $region108: #{build_transformer_forward.1} parent=51 // pred_fallthru
        _
      // Predicated region
      $region109: #{build_transformer_forward.1} parent=51 // pred_check
        %p801 = pneg %p499
      $region110: #{build_transformer_forward.1} parent=51 // pred_check_branch
        %803 = sbr.rel (%p801) target = $region112
      $region111: #{build_transformer_forward.1} parent=51 // pred_region
        %p804 = scmp.lt.s32.totalorder %s31, 1
        %s805 = scalar_select %p804, %s31, 1
        %s806 = smul.addr %s805, 32
        %s807 = smul.addr %s806, 4
        %s808 = scalar_lea.vmem %s18, %s807
      $region112: #{build_transformer_forward.1} parent=51 // pred_fallthru
        _
      // Predicated region
      $region113: #{build_transformer_forward.1} parent=51 // pred_check
        %p809 = pneg %p525
      $region114: #{build_transformer_forward.1} parent=51 // pred_check_branch
        %811 = sbr.rel (%p809) target = $region116
      $region115: #{build_transformer_forward.1} parent=51 // pred_region
        %p812 = scmp.lt.s32.totalorder %s31, 1
        %s813 = scalar_select %p812, %s31, 1
        %s814 = scalar_lea.vmem %s19, %s813
      $region116: #{build_transformer_forward.1} parent=51 // pred_fallthru
        _
    $region52: #{build_transformer_forward.1} parent=5 // pred_fallthru
      _
    %p815 = scmp.le.s32.totalorder 1, %s31
    %p816 = scmp.lt.s32.totalorder %s31, 3
    %p817 = pnand %p815, %p816
    %p818 = pneg %p817
    // Predicated region
    $region117: #{build_transformer_forward.1} parent=5 // pred_check
      _
    $region118: #{build_transformer_forward.1} parent=5 // pred_check_branch
      %820 = sbr.rel (%p817) target = $region120
    $region119: #{build_transformer_forward.1} parent=5 // pred_region
      %s821 = ssub.s32 %s31, 1
      %p822 = pneg %p52
      %p823 = pneg %p49
      %p824 = pneg %p73
      %p825 = pneg %p70
      %p826 = pneg %p94
      %p827 = pneg %p91
      %p828 = pneg %p115
      %p829 = pneg %p112
      %p830 = scmp.lt.s32.totalorder %s36, 1
      %s831 = scalar_select %p830, %s36, 1
      %s832 = scalar_lea.vmem %s4, %s831
      %p833 = pneg %p141
      %p834 = pneg %p138
      %p835 = scmp.lt.s32.totalorder %s36, 1
      %s836 = scalar_select %p835, %s36, 1
      %s837 = scalar_lea.vmem %s5, %s836
      %p838 = pneg %p167
      %p839 = pneg %p164
      %p840 = scmp.lt.s32.totalorder %s36, 1
      %s841 = scalar_select %p840, %s36, 1
      %s842 = smul.addr %s841, 32
      %s843 = smul.addr %s842, 4
      %s844 = scalar_lea.vmem %s6, %s843
      %p845 = pneg %p193
      %p846 = pneg %p190
      %p847 = scmp.lt.s32.totalorder %s36, 1
      %s848 = scalar_select %p847, %s36, 1
      %s849 = smul.addr %s848, 32
      %s850 = smul.addr %s849, 4
      %s851 = scalar_lea.vmem %s7, %s850
      %p852 = pneg %p219
      %p853 = pneg %p216
      %p854 = scmp.lt.s32.totalorder %s36, 1
      %s855 = scalar_select %p854, %s36, 1
      %s856 = smul.addr %s855, 32
      %s857 = smul.addr %s856, 4
      %s858 = scalar_lea.vmem %s8, %s857
      %p859 = pneg %p245
      %p860 = pneg %p242
      %p861 = scmp.lt.s32.totalorder %s36, 1
      %s862 = scalar_select %p861, %s36, 1
      %s863 = smul.addr %s862, 4
      %s864 = scalar_lea.vmem %s9, %s863
      %p865 = pneg %p271
      %p866 = pneg %p268
      %p867 = scmp.lt.s32.totalorder %s36, 1
      %s868 = scalar_select %p867, %s36, 1
      %s869 = smul.addr %s868, 4
      %s870 = scalar_lea.vmem %s10, %s869
      %p871 = pneg %p297
      %p872 = pneg %p294
      %p873 = scmp.lt.s32.totalorder %s36, 1
      %s874 = scalar_select %p873, %s36, 1
      %s875 = smul.addr %s874, 4
      %s876 = scalar_lea.vmem %s11, %s875
      %p877 = pneg %p323
      %p878 = pneg %p320
      %p879 = scmp.lt.s32.totalorder %s36, 1
      %s880 = scalar_select %p879, %s36, 1
      %s881 = smul.addr %s880, 8
      %s882 = smul.addr %s881, 4
      %s883 = scalar_lea.vmem %s12, %s882
      %p884 = pneg %p349
      %p885 = pneg %p346
      %p886 = scmp.lt.s32.totalorder %s36, 1
      %s887 = scalar_select %p886, %s36, 1
      %s888 = scalar_lea.vmem %s13, %s887
      %p889 = pneg %p375
      %p890 = pneg %p372
      %p891 = scmp.lt.s32.totalorder %s36, 1
      %s892 = scalar_select %p891, %s36, 1
      %s893 = scalar_lea.vmem %s14, %s892
      %p894 = pneg %p401
      %p895 = pneg %p398
      %p896 = scmp.lt.s32.totalorder %s36, 1
      %s897 = scalar_select %p896, %s36, 1
      %s898 = scalar_lea.vmem %s15, %s897
      %p899 = pneg %p427
      %p900 = pneg %p424
      %p901 = scmp.lt.s32.totalorder %s36, 1
      %s902 = scalar_select %p901, %s36, 1
      %s903 = smul.addr %s902, 16
      %s904 = smul.addr %s903, 4
      %s905 = scalar_lea.vmem %s16, %s904
      %p906 = pneg %p453
      %p907 = pneg %p450
      %p908 = scmp.lt.s32.totalorder %s36, 1
      %s909 = scalar_select %p908, %s36, 1
      %s910 = smul.addr %s909, 2
      %s911 = scalar_lea.vmem %s17, %s910
      %p912 = pneg %p479
      %p913 = pneg %p476
      %p914 = scmp.lt.s32.totalorder %s36, 1
      %s915 = scalar_select %p914, %s36, 1
      %s916 = smul.addr %s915, 32
      %s917 = smul.addr %s916, 4
      %s918 = scalar_lea.vmem %s18, %s917
      %p919 = pneg %p505
      %p920 = pneg %p502
      %p921 = scmp.lt.s32.totalorder %s36, 1
      %s922 = scalar_select %p921, %s36, 1
      %s923 = scalar_lea.vmem %s19, %s922
      %p924 = pneg %p531
      %p925 = pneg %p528
      %p926 = pneg %p552
      %p927 = pneg %p549
      %p928 = pneg %p573
      %p929 = pneg %p570
      %p930 = pneg %p594
      %p931 = pneg %p591
      %p932 = pneg %p615
      %p933 = pneg %p612
      %p934 = pneg %p636
      %p935 = pneg %p633
      %p936 = pneg %p657
      %p937 = pneg %p654
      %p938 = scmp.lt.s32.totalorder %s36, 1
      %s939 = scalar_select %p938, %s36, 1
      %s940 = scalar_lea.vmem %s4, %s939
      %p941 = scmp.lt.s32.totalorder %s36, 1
      %s942 = scalar_select %p941, %s36, 1
      %s943 = scalar_lea.vmem %s5, %s942
      %p944 = scmp.lt.s32.totalorder %s36, 1
      %s945 = scalar_select %p944, %s36, 1
      %s946 = smul.addr %s945, 32
      %s947 = smul.addr %s946, 4
      %s948 = scalar_lea.vmem %s6, %s947
      %p949 = scmp.lt.s32.totalorder %s36, 1
      %s950 = scalar_select %p949, %s36, 1
      %s951 = smul.addr %s950, 32
      %s952 = smul.addr %s951, 4
      %s953 = scalar_lea.vmem %s7, %s952
      %p954 = scmp.lt.s32.totalorder %s36, 1
      %s955 = scalar_select %p954, %s36, 1
      %s956 = smul.addr %s955, 32
      %s957 = smul.addr %s956, 4
      %s958 = scalar_lea.vmem %s8, %s957
      %p959 = scmp.lt.s32.totalorder %s36, 1
      %s960 = scalar_select %p959, %s36, 1
      %s961 = smul.addr %s960, 4
      %s962 = scalar_lea.vmem %s9, %s961
      %p963 = scmp.lt.s32.totalorder %s36, 1
      %s964 = scalar_select %p963, %s36, 1
      %s965 = smul.addr %s964, 4
      %s966 = scalar_lea.vmem %s10, %s965
      %p967 = scmp.lt.s32.totalorder %s36, 1
      %s968 = scalar_select %p967, %s36, 1
      %s969 = smul.addr %s968, 4
      %s970 = scalar_lea.vmem %s11, %s969
      %p971 = scmp.lt.s32.totalorder %s36, 1
      %s972 = scalar_select %p971, %s36, 1
      %s973 = smul.addr %s972, 8
      %s974 = smul.addr %s973, 4
      %s975 = scalar_lea.vmem %s12, %s974
      %p976 = scmp.lt.s32.totalorder %s36, 1
      %s977 = scalar_select %p976, %s36, 1
      %s978 = scalar_lea.vmem %s13, %s977
      %p979 = scmp.lt.s32.totalorder %s36, 1
      %s980 = scalar_select %p979, %s36, 1
      %s981 = scalar_lea.vmem %s14, %s980
      %p982 = scmp.lt.s32.totalorder %s36, 1
      %s983 = scalar_select %p982, %s36, 1
      %s984 = scalar_lea.vmem %s15, %s983
      %p985 = scmp.lt.s32.totalorder %s36, 1
      %s986 = scalar_select %p985, %s36, 1
      %s987 = smul.addr %s986, 16
      %s988 = smul.addr %s987, 4
      %s989 = scalar_lea.vmem %s16, %s988
      %p990 = scmp.lt.s32.totalorder %s36, 1
      %s991 = scalar_select %p990, %s36, 1
      %s992 = smul.addr %s991, 2
      %s993 = scalar_lea.vmem %s17, %s992
      %p994 = scmp.lt.s32.totalorder %s36, 1
      %s995 = scalar_select %p994, %s36, 1
      %s996 = smul.addr %s995, 32
      %s997 = smul.addr %s996, 4
      %s998 = scalar_lea.vmem %s18, %s997
      %p999 = scmp.lt.s32.totalorder %s36, 1
      %s1000 = scalar_select %p999, %s36, 1
      %s1001 = scalar_lea.vmem %s19, %s1000
      %p1003 = scmp.eq.s32.totalorder %s36, 0
      // Predicated region
      $region121: #{build_transformer_forward.1} parent=119 // pred_check
        %p1004 = pneg %p1003
      $region122: #{build_transformer_forward.1} parent=119 // pred_check_branch
        %1006 = sbr.rel (%p1004) target = $region124
      $region123: #{build_transformer_forward.1} parent=119 // pred_region
        %v1007 = vld [vmem:[%s0] sm:$0xff]
        %v1008 = vld [vmem:[%s0 + $0x8] sm:$0xff]
        %v1009 = vld [vmem:[%s0 + $0x10] sm:$0xff]
        %v1010 = vld [vmem:[%s0 + $0x18] sm:$0xff]
        %v1011 = vld [vmem:[%s0 + $0x20] sm:$0xff]
        %v1012 = vld [vmem:[%s0 + $0x28] sm:$0xff]
        %v1013 = vpack.c.bf16 %v1007, %v1007
        %v1014 = vpack.c.bf16 %v1008, %v1008
        %v1015 = vpack.c.bf16 %v1009, %v1009
        %v1016 = vpack.c.bf16 %v1010, %v1010
        %v1017 = vpack.c.bf16 %v1011, %v1011
        %v1018 = vpack.c.bf16 %v1012, %v1012
        %v1019 = vld [vmem:[%s3] sm:$0xf]
        %v1020 = vld [vmem:[%s3 + $0x4] sm:$0xf]
        %v1021 = vld [vmem:[%s3 + $0x8] sm:$0xf]
        %v1022 = vld [vmem:[%s3 + $0xc] sm:$0xf]
        %v1023 = vld [vmem:[%s3 + $0x10] sm:$0xf]
        %v1024 = vld [vmem:[%s3 + $0x14] sm:$0xf]
        %v1025 = vld [vmem:[%s3 + $0x18] sm:$0xf]
        %v1026 = vld [vmem:[%s3 + $0x1c] sm:$0xf]
        %v1027 = vld [vmem:[%s3 + $0x20] sm:$0xf]
        %v1028 = vld [vmem:[%s3 + $0x24] sm:$0xf]
        %v1029 = vld [vmem:[%s3 + $0x28] sm:$0xf]
        %v1030 = vld [vmem:[%s3 + $0x2c] sm:$0xf]
        %v1031 = vld [vmem:[%s3 + $0x30] sm:$0xf]
        %v1032 = vld [vmem:[%s3 + $0x34] sm:$0xf]
        %v1033 = vld [vmem:[%s3 + $0x38] sm:$0xf]
        %v1034 = vld [vmem:[%s3 + $0x3c] sm:$0xf]
        %v1035 = vld [vmem:[%s3 + $0x40] sm:$0xf]
        %v1036 = vld [vmem:[%s3 + $0x44] sm:$0xf]
        %v1037 = vld [vmem:[%s3 + $0x48] sm:$0xf]
        %v1038 = vld [vmem:[%s3 + $0x4c] sm:$0xf]
        %v1039 = vld [vmem:[%s3 + $0x50] sm:$0xf]
        %v1040 = vld [vmem:[%s3 + $0x54] sm:$0xf]
        %v1041 = vld [vmem:[%s3 + $0x58] sm:$0xf]
        %v1042 = vld [vmem:[%s3 + $0x5c] sm:$0xf]
        %v1043 = vld [vmem:[%s3 + $0x60] sm:$0xf]
        %v1044 = vld [vmem:[%s3 + $0x64] sm:$0xf]
        %v1045 = vld [vmem:[%s3 + $0x68] sm:$0xf]
        %v1046 = vld [vmem:[%s3 + $0x6c] sm:$0xf]
        %v1047 = vld [vmem:[%s3 + $0x70] sm:$0xf]
        %v1048 = vld [vmem:[%s3 + $0x74] sm:$0xf]
        %v1049 = vld [vmem:[%s3 + $0x78] sm:$0xf]
        %v1050 = vld [vmem:[%s3 + $0x7c] sm:$0xf]
        %v1051 = vld [vmem:[%s3 + $0x80] sm:$0xf]
        %v1052 = vld [vmem:[%s3 + $0x84] sm:$0xf]
        %v1053 = vld [vmem:[%s3 + $0x88] sm:$0xf]
        %v1054 = vld [vmem:[%s3 + $0x8c] sm:$0xf]
        %v1055 = vld [vmem:[%s3 + $0x90] sm:$0xf]
        %v1056 = vld [vmem:[%s3 + $0x94] sm:$0xf]
        %v1057 = vld [vmem:[%s3 + $0x98] sm:$0xf]
        %v1058 = vld [vmem:[%s3 + $0x9c] sm:$0xf]
        %v1059 = vld [vmem:[%s3 + $0xa0] sm:$0xf]
        %v1060 = vld [vmem:[%s3 + $0xa4] sm:$0xf]
        %v1061 = vld [vmem:[%s3 + $0xa8] sm:$0xf]
        %v1062 = vld [vmem:[%s3 + $0xac] sm:$0xf]
        %v1063 = vld [vmem:[%s3 + $0xb0] sm:$0xf]
        %v1064 = vld [vmem:[%s3 + $0xb4] sm:$0xf]
        %v1065 = vld [vmem:[%s3 + $0xb8] sm:$0xf]
        %v1066 = vld [vmem:[%s3 + $0xbc] sm:$0xf]
        %v1067 = vld [vmem:[%s3 + $0xc0] sm:$0xf]
        %v1068 = vld [vmem:[%s3 + $0xc4] sm:$0xf]
        %v1069 = vld [vmem:[%s3 + $0xc8] sm:$0xf]
        %v1070 = vld [vmem:[%s3 + $0xcc] sm:$0xf]
        %v1071 = vld [vmem:[%s3 + $0xd0] sm:$0xf]
        %v1072 = vld [vmem:[%s3 + $0xd4] sm:$0xf]
        %v1073 = vld [vmem:[%s3 + $0xd8] sm:$0xf]
        %v1074 = vld [vmem:[%s3 + $0xdc] sm:$0xf]
        %v1075 = vld [vmem:[%s3 + $0xe0] sm:$0xf]
        %v1076 = vld [vmem:[%s3 + $0xe4] sm:$0xf]
        %v1077 = vld [vmem:[%s3 + $0xe8] sm:$0xf]
        %v1078 = vld [vmem:[%s3 + $0xec] sm:$0xf]
        %v1079 = vld [vmem:[%s3 + $0xf0] sm:$0xf]
        %v1080 = vld [vmem:[%s3 + $0xf4] sm:$0xf]
        %v1081 = vld [vmem:[%s3 + $0xf8] sm:$0xf]
        %v1082 = vld [vmem:[%s3 + $0xfc] sm:$0xf]
        %v1083 = vld [vmem:[%s3 + $0x100] sm:$0xf]
        %v1084 = vld [vmem:[%s3 + $0x104] sm:$0xf]
        %v1085 = vld [vmem:[%s3 + $0x108] sm:$0xf]
        %v1086 = vld [vmem:[%s3 + $0x10c] sm:$0xf]
        %v1087 = vld [vmem:[%s3 + $0x110] sm:$0xf]
        %v1088 = vld [vmem:[%s3 + $0x114] sm:$0xf]
        %v1089 = vld [vmem:[%s3 + $0x118] sm:$0xf]
        %v1090 = vld [vmem:[%s3 + $0x11c] sm:$0xf]
        %v1091 = vld [vmem:[%s3 + $0x120] sm:$0xf]
        %v1092 = vld [vmem:[%s3 + $0x124] sm:$0xf]
        %v1093 = vld [vmem:[%s3 + $0x128] sm:$0xf]
        %v1094 = vld [vmem:[%s3 + $0x12c] sm:$0xf]
        %v1095 = vld [vmem:[%s3 + $0x130] sm:$0xf]
        %v1096 = vld [vmem:[%s3 + $0x134] sm:$0xf]
        %v1097 = vld [vmem:[%s3 + $0x138] sm:$0xf]
        %v1098 = vld [vmem:[%s3 + $0x13c] sm:$0xf]
        %v1099 = vld [vmem:[%s3 + $0x140] sm:$0xf]
        %v1100 = vld [vmem:[%s3 + $0x144] sm:$0xf]
        %v1101 = vld [vmem:[%s3 + $0x148] sm:$0xf]
        %v1102 = vld [vmem:[%s3 + $0x14c] sm:$0xf]
        %v1103 = vld [vmem:[%s3 + $0x150] sm:$0xf]
        %v1104 = vld [vmem:[%s3 + $0x154] sm:$0xf]
        %v1105 = vld [vmem:[%s3 + $0x158] sm:$0xf]
        %v1106 = vld [vmem:[%s3 + $0x15c] sm:$0xf]
        %v1107 = vld [vmem:[%s3 + $0x160] sm:$0xf]
        %v1108 = vld [vmem:[%s3 + $0x164] sm:$0xf]
        %v1109 = vld [vmem:[%s3 + $0x168] sm:$0xf]
        %v1110 = vld [vmem:[%s3 + $0x16c] sm:$0xf]
        %v1111 = vld [vmem:[%s3 + $0x170] sm:$0xf]
        %v1112 = vld [vmem:[%s3 + $0x174] sm:$0xf]
        %v1113 = vld [vmem:[%s3 + $0x178] sm:$0xf]
        %v1114 = vld [vmem:[%s3 + $0x17c] sm:$0xf]
        %v1211 = vunpack.c.l.b16 %v1019
        %v1212 = vunpack.c.l.b16 %v1020
        %v1213 = vunpack.c.l.b16 %v1021
        %v1214 = vunpack.c.l.b16 %v1022
        %v1215 = vunpack.c.l.b16 %v1023
        %v1216 = vunpack.c.l.b16 %v1024
        %v1217 = vunpack.c.l.b16 %v1025
        %v1218 = vunpack.c.l.b16 %v1026
        %v1219 = vunpack.c.l.b16 %v1027
        %v1220 = vunpack.c.l.b16 %v1028
        %v1221 = vunpack.c.l.b16 %v1029
        %v1222 = vunpack.c.l.b16 %v1030
        %v1223 = vunpack.c.l.b16 %v1031
        %v1224 = vunpack.c.l.b16 %v1032
        %v1225 = vunpack.c.l.b16 %v1033
        %v1226 = vunpack.c.l.b16 %v1034
        %v1227 = vunpack.c.l.b16 %v1035
        %v1228 = vunpack.c.l.b16 %v1036
        %v1229 = vunpack.c.l.b16 %v1037
        %v1230 = vunpack.c.l.b16 %v1038
        %v1231 = vunpack.c.l.b16 %v1039
        %v1232 = vunpack.c.l.b16 %v1040
        %v1233 = vunpack.c.l.b16 %v1041
        %v1234 = vunpack.c.l.b16 %v1042
        %v1235 = vunpack.c.l.b16 %v1043
        %v1236 = vunpack.c.l.b16 %v1044
        %v1237 = vunpack.c.l.b16 %v1045
        %v1238 = vunpack.c.l.b16 %v1046
        %v1239 = vunpack.c.l.b16 %v1047
        %v1240 = vunpack.c.l.b16 %v1048
        %v1241 = vunpack.c.l.b16 %v1049
        %v1242 = vunpack.c.l.b16 %v1050
        %v1243 = vunpack.c.l.b16 %v1051
        %v1244 = vunpack.c.l.b16 %v1052
        %v1245 = vunpack.c.l.b16 %v1053
        %v1246 = vunpack.c.l.b16 %v1054
        %v1247 = vunpack.c.l.b16 %v1055
        %v1248 = vunpack.c.l.b16 %v1056
        %v1249 = vunpack.c.l.b16 %v1057
        %v1250 = vunpack.c.l.b16 %v1058
        %v1251 = vunpack.c.l.b16 %v1059
        %v1252 = vunpack.c.l.b16 %v1060
        %v1253 = vunpack.c.l.b16 %v1061
        %v1254 = vunpack.c.l.b16 %v1062
        %v1255 = vunpack.c.l.b16 %v1063
        %v1256 = vunpack.c.l.b16 %v1064
        %v1257 = vunpack.c.l.b16 %v1065
        %v1258 = vunpack.c.l.b16 %v1066
        %v1259 = vunpack.c.l.b16 %v1067
        %v1260 = vunpack.c.l.b16 %v1068
        %v1261 = vunpack.c.l.b16 %v1069
        %v1262 = vunpack.c.l.b16 %v1070
        %v1263 = vunpack.c.l.b16 %v1071
        %v1264 = vunpack.c.l.b16 %v1072
        %v1265 = vunpack.c.l.b16 %v1073
        %v1266 = vunpack.c.l.b16 %v1074
        %v1267 = vunpack.c.l.b16 %v1075
        %v1268 = vunpack.c.l.b16 %v1076
        %v1269 = vunpack.c.l.b16 %v1077
        %v1270 = vunpack.c.l.b16 %v1078
        %v1271 = vunpack.c.l.b16 %v1079
        %v1272 = vunpack.c.l.b16 %v1080
        %v1273 = vunpack.c.l.b16 %v1081
        %v1274 = vunpack.c.l.b16 %v1082
        %v1275 = vunpack.c.l.b16 %v1083
        %v1276 = vunpack.c.l.b16 %v1084
        %v1277 = vunpack.c.l.b16 %v1085
        %v1278 = vunpack.c.l.b16 %v1086
        %v1279 = vunpack.c.l.b16 %v1087
        %v1280 = vunpack.c.l.b16 %v1088
        %v1281 = vunpack.c.l.b16 %v1089
        %v1282 = vunpack.c.l.b16 %v1090
        %v1283 = vunpack.c.l.b16 %v1091
        %v1284 = vunpack.c.l.b16 %v1092
        %v1285 = vunpack.c.l.b16 %v1093
        %v1286 = vunpack.c.l.b16 %v1094
        %v1287 = vunpack.c.l.b16 %v1095
        %v1288 = vunpack.c.l.b16 %v1096
        %v1289 = vunpack.c.l.b16 %v1097
        %v1290 = vunpack.c.l.b16 %v1098
        %v1291 = vunpack.c.l.b16 %v1099
        %v1292 = vunpack.c.l.b16 %v1100
        %v1293 = vunpack.c.l.b16 %v1101
        %v1294 = vunpack.c.l.b16 %v1102
        %v1295 = vunpack.c.l.b16 %v1103
        %v1296 = vunpack.c.l.b16 %v1104
        %v1297 = vunpack.c.l.b16 %v1105
        %v1298 = vunpack.c.l.b16 %v1106
        %v1299 = vunpack.c.l.b16 %v1107
        %v1300 = vunpack.c.l.b16 %v1108
        %v1301 = vunpack.c.l.b16 %v1109
        %v1302 = vunpack.c.l.b16 %v1110
        %v1303 = vunpack.c.l.b16 %v1111
        %v1304 = vunpack.c.l.b16 %v1112
        %v1305 = vunpack.c.l.b16 %v1113
        %v1306 = vunpack.c.l.b16 %v1114
        %v1307 = vpack.c.b16 %v1212, %v1211
        %v1308 = vpack.c.b16 %v1214, %v1213
        %v1309 = vpack.c.b16 %v1216, %v1215
        %v1310 = vpack.c.b16 %v1218, %v1217
        %v1311 = vpack.c.b16 %v1220, %v1219
        %v1312 = vpack.c.b16 %v1222, %v1221
        %v1313 = vpack.c.b16 %v1224, %v1223
        %v1314 = vpack.c.b16 %v1226, %v1225
        %v1315 = vpack.c.b16 %v1228, %v1227
        %v1316 = vpack.c.b16 %v1230, %v1229
        %v1317 = vpack.c.b16 %v1232, %v1231
        %v1318 = vpack.c.b16 %v1234, %v1233
        %v1319 = vpack.c.b16 %v1236, %v1235
        %v1320 = vpack.c.b16 %v1238, %v1237
        %v1321 = vpack.c.b16 %v1240, %v1239
        %v1322 = vpack.c.b16 %v1242, %v1241
        %v1323 = vpack.c.b16 %v1244, %v1243
        %v1324 = vpack.c.b16 %v1246, %v1245
        %v1325 = vpack.c.b16 %v1248, %v1247
        %v1326 = vpack.c.b16 %v1250, %v1249
        %v1327 = vpack.c.b16 %v1252, %v1251
        %v1328 = vpack.c.b16 %v1254, %v1253
        %v1329 = vpack.c.b16 %v1256, %v1255
        %v1330 = vpack.c.b16 %v1258, %v1257
        %v1331 = vpack.c.b16 %v1260, %v1259
        %v1332 = vpack.c.b16 %v1262, %v1261
        %v1333 = vpack.c.b16 %v1264, %v1263
        %v1334 = vpack.c.b16 %v1266, %v1265
        %v1335 = vpack.c.b16 %v1268, %v1267
        %v1336 = vpack.c.b16 %v1270, %v1269
        %v1337 = vpack.c.b16 %v1272, %v1271
        %v1338 = vpack.c.b16 %v1274, %v1273
        %v1339 = vpack.c.b16 %v1276, %v1275
        %v1340 = vpack.c.b16 %v1278, %v1277
        %v1341 = vpack.c.b16 %v1280, %v1279
        %v1342 = vpack.c.b16 %v1282, %v1281
        %v1343 = vpack.c.b16 %v1284, %v1283
        %v1344 = vpack.c.b16 %v1286, %v1285
        %v1345 = vpack.c.b16 %v1288, %v1287
        %v1346 = vpack.c.b16 %v1290, %v1289
        %v1347 = vpack.c.b16 %v1292, %v1291
        %v1348 = vpack.c.b16 %v1294, %v1293
        %v1349 = vpack.c.b16 %v1296, %v1295
        %v1350 = vpack.c.b16 %v1298, %v1297
        %v1351 = vpack.c.b16 %v1300, %v1299
        %v1352 = vpack.c.b16 %v1302, %v1301
        %v1353 = vpack.c.b16 %v1304, %v1303
        %v1354 = vpack.c.b16 %v1306, %v1305
        %1403 = vmatprep.subr.bf16.mxu0 0
        %1404 = vmatpush1.bf16.msra.mxu0 %v1307
        %1405 = vmatprep.subr.bf16.mxu0 0
        %1406 = vmatpush1.bf16.msra.mxu0 %v1308
        %1407 = vmatprep.subr.bf16.mxu0 0
        %1408 = vmatpush1.bf16.msra.mxu0 %v1309
        %1409 = vmatprep.subr.bf16.mxu0 0
        %1410 = vmatpush1.bf16.msra.mxu0 %v1310
        %1411 = vmatprep.subr.bf16.mxu0 0
        %1412 = vmatpush1.bf16.msra.mxu0 %v1311
        %1413 = vmatprep.subr.bf16.mxu0 0
        %1414 = vmatpush1.bf16.msra.mxu0 %v1312
        %1415 = vmatprep.subr.bf16.mxu0 0
        %1416 = vmatpush1.bf16.msra.mxu0 %v1313
        %1417 = vmatprep.subr.bf16.mxu0 0
        %1418 = vmatpush1.bf16.msra.mxu0 %v1314
        %1419 = vmatprep.subr.bf16.mxu0 0
        %1420 = vmatpush1.bf16.msra.mxu0 %v1315
        %1421 = vmatprep.subr.bf16.mxu0 0
        %1422 = vmatpush1.bf16.msra.mxu0 %v1316
        %1423 = vmatprep.subr.bf16.mxu0 0
        %1424 = vmatpush1.bf16.msra.mxu0 %v1317
        %1425 = vmatprep.subr.bf16.mxu0 0
        %1426 = vmatpush1.bf16.msra.mxu0 %v1318
        %1427 = vmatprep.subr.bf16.mxu0 0
        %1428 = vmatpush1.bf16.msra.mxu0 %v1319
        %1429 = vmatprep.subr.bf16.mxu0 0
        %1430 = vmatpush1.bf16.msra.mxu0 %v1320
        %1431 = vmatprep.subr.bf16.mxu0 0
        %1432 = vmatpush1.bf16.msra.mxu0 %v1321
        %1433 = vmatprep.subr.bf16.mxu0 0
        %1434 = vmatpush1.bf16.msra.mxu0 %v1322
        %1435 = vmatprep.mubr.bf16.mxu0 %v1014
        %1436 = vmatmul.mubr.bf16.gmra.mrb[0].mxu0 %v1013
        %v1437 = vpop.f32.mrb[0].mxu0
        %v1438 = vadd.f32 0.0, %v1437
        %v1439 = vpop.f32.mrb[0].mxu0
        %v1440 = vpop.f32.mrb[0].mxu0
        %v1441 = vpop.f32.mrb[0].mxu0
        %1442 = vdwg.mxu0
        %1443 = vmatprep.subr.bf16.mxu0 0
        %1444 = vmatpush1.bf16.msra.mxu0 %v1323
        %1445 = vmatprep.subr.bf16.mxu0 0
        %1446 = vmatpush1.bf16.msra.mxu0 %v1324
        %1447 = vmatprep.subr.bf16.mxu0 0
        %1448 = vmatpush1.bf16.msra.mxu0 %v1325
        %1449 = vmatprep.subr.bf16.mxu0 0
        %1450 = vmatpush1.bf16.msra.mxu0 %v1326
        %1451 = vmatprep.subr.bf16.mxu0 0
        %1452 = vmatpush1.bf16.msra.mxu0 %v1327
        %1453 = vmatprep.subr.bf16.mxu0 0
        %1454 = vmatpush1.bf16.msra.mxu0 %v1328
        %1455 = vmatprep.subr.bf16.mxu0 0
        %1456 = vmatpush1.bf16.msra.mxu0 %v1329
        %1457 = vmatprep.subr.bf16.mxu0 0
        %1458 = vmatpush1.bf16.msra.mxu0 %v1330
        %1459 = vmatprep.subr.bf16.mxu0 0
        %1460 = vmatpush1.bf16.msra.mxu0 %v1331
        %1461 = vmatprep.subr.bf16.mxu0 0
        %1462 = vmatpush1.bf16.msra.mxu0 %v1332
        %1463 = vmatprep.subr.bf16.mxu0 0
        %1464 = vmatpush1.bf16.msra.mxu0 %v1333
        %1465 = vmatprep.subr.bf16.mxu0 0
        %1466 = vmatpush1.bf16.msra.mxu0 %v1334
        %1467 = vmatprep.subr.bf16.mxu0 0
        %1468 = vmatpush1.bf16.msra.mxu0 %v1335
        %1469 = vmatprep.subr.bf16.mxu0 0
        %1470 = vmatpush1.bf16.msra.mxu0 %v1336
        %1471 = vmatprep.subr.bf16.mxu0 0
        %1472 = vmatpush1.bf16.msra.mxu0 %v1337
        %1473 = vmatprep.subr.bf16.mxu0 0
        %1474 = vmatpush1.bf16.msra.mxu0 %v1338
        %1475 = vmatprep.mubr.bf16.mxu0 %v1016
        %1476 = vmatmul.mubr.bf16.gmra.mrb[0].mxu0 %v1015
        %v1477 = vpop.f32.mrb[0].mxu0
        %v1478 = vadd.f32 %v1438, %v1477
        %v1479 = vpop.f32.mrb[0].mxu0
        %v1480 = vpop.f32.mrb[0].mxu0
        %v1481 = vpop.f32.mrb[0].mxu0
        %1482 = vdwg.mxu0
        %1483 = vmatprep.subr.bf16.mxu0 0
        %1484 = vmatpush1.bf16.msra.mxu0 %v1339
        %1485 = vmatprep.subr.bf16.mxu0 0
        %1486 = vmatpush1.bf16.msra.mxu0 %v1340
        %1487 = vmatprep.subr.bf16.mxu0 0
        %1488 = vmatpush1.bf16.msra.mxu0 %v1341
        %1489 = vmatprep.subr.bf16.mxu0 0
        %1490 = vmatpush1.bf16.msra.mxu0 %v1342
        %1491 = vmatprep.subr.bf16.mxu0 0
        %1492 = vmatpush1.bf16.msra.mxu0 %v1343
        %1493 = vmatprep.subr.bf16.mxu0 0
        %1494 = vmatpush1.bf16.msra.mxu0 %v1344
        %1495 = vmatprep.subr.bf16.mxu0 0
        %1496 = vmatpush1.bf16.msra.mxu0 %v1345
        %1497 = vmatprep.subr.bf16.mxu0 0
        %1498 = vmatpush1.bf16.msra.mxu0 %v1346
        %1499 = vmatprep.subr.bf16.mxu0 0
        %1500 = vmatpush1.bf16.msra.mxu0 %v1347
        %1501 = vmatprep.subr.bf16.mxu0 0
        %1502 = vmatpush1.bf16.msra.mxu0 %v1348
        %1503 = vmatprep.subr.bf16.mxu0 0
        %1504 = vmatpush1.bf16.msra.mxu0 %v1349
        %1505 = vmatprep.subr.bf16.mxu0 0
        %1506 = vmatpush1.bf16.msra.mxu0 %v1350
        %1507 = vmatprep.subr.bf16.mxu0 0
        %1508 = vmatpush1.bf16.msra.mxu0 %v1351
        %1509 = vmatprep.subr.bf16.mxu0 0
        %1510 = vmatpush1.bf16.msra.mxu0 %v1352
        %1511 = vmatprep.subr.bf16.mxu0 0
        %1512 = vmatpush1.bf16.msra.mxu0 %v1353
        %1513 = vmatprep.subr.bf16.mxu0 0
        %1514 = vmatpush1.bf16.msra.mxu0 %v1354
        %1515 = vmatprep.mubr.bf16.mxu0 %v1018
        %1516 = vmatmul.mubr.bf16.gmra.mrb[0].mxu0 %v1017
        %v1517 = vpop.f32.mrb[0].mxu0
        %v1518 = vadd.f32 %v1478, %v1517
        %v1519 = vpop.f32.mrb[0].mxu0
        %v1520 = vpop.f32.mrb[0].mxu0
        %v1521 = vpop.f32.mrb[0].mxu0
        %1522 = vdwg.mxu0
        %v1523 = vld [vmem:[%s1] sm:$0xff]
        %v1524 = vld [vmem:[%s1 + $0x8] sm:$0xff]
        %v1525 = vadd.f32 %v1523, %v1518
        %v1526 = vadd.f32 %v1524, 0.0
        %vm1527 = vcmask 523264
        %1528 = vst.msk [vmem:[#allocation2] sm:$0xff] %vm1527, %v1525
        %1529 = vst.msk [vmem:[#allocation2 + $0x8] sm:$0xff] %vm1527, %v1526
      $region124: #{build_transformer_forward.1} parent=119 // pred_fallthru
        _
      %v1530 = vld [vmem:[%s2] sm:$0xff]
      %v1531 = vld [vmem:[%s2 + $0x8] sm:$0xff]
      %v1532 = vld [vmem:[#allocation2] sm:$0xff]
      %v1533 = vld [vmem:[#allocation2 + $0x8] sm:$0xff]
      %v1534 = vld [vmem:[%s940] sm:$0x1]
      %v1535 = vld [vmem:[%s943] sm:$0x1]
      %vm1536 = vcmask 523264
      %v1537 = vsel %vm1536, %v1532, 0.0
      %1538 = vadd.xlane.f32.xlu0 %v1537
      %v1539 = vpop.xlane.xlu0 %1538
      %v1540 = vsel %vm1536, %v1533, 0.0
      %1541 = vadd.xlane.f32.xlu0 %v1540
      %v1542 = vpop.xlane.xlu0 %1541
      %v1543 = vrcp.pop 64.0
      %v1544 = vmul.f32 %v1539, %v1543
      %v1545 = vmul.f32 %v1542, %v1543
      %v1546 = vsub.f32 %v1532, %v1544
      %v1547 = vsub.f32 %v1533, %v1545
      %v1548 = vmul.f32 %v1546, %v1546
      %v1549 = vmul.f32 %v1547, %v1547
      %v1550 = vsel %vm1536, %v1548, 0.0
      %1551 = vadd.xlane.f32.xlu0 %v1550
      %v1552 = vpop.xlane.xlu0 %1551
      %v1553 = vsel %vm1536, %v1549, 0.0
      %1554 = vadd.xlane.f32.xlu0 %v1553
      %v1555 = vpop.xlane.xlu0 %1554
      %v1556 = vmul.f32 %v1552, %v1543
      %v1557 = vmul.f32 %v1555, %v1543
      %v1558 = vadd.f32 %v1556, 1e-06
      %v1559 = vadd.f32 %v1557, 1e-06
      %v1560 = vrsqrt.pop %v1558
      %v1561 = vrsqrt.pop %v1559
      %v1562 = vmul.f32 %v1546, %v1560
      %v1563 = vmul.f32 %v1547, %v1561
      %v1565 = vlaneseq
      %v1566 = vshrl.u32 %v1565, 7
      %v1567 = vsub.s32 0, %v1566
      %v1568 = vrot.slane %v1534, %v1567
      %v1570 = vmul.f32 %v1562, %v1568
      %v1571 = vmul.f32 %v1563, %v1568
      %v1573 = vlaneseq
      %v1574 = vshrl.u32 %v1573, 7
      %v1575 = vsub.s32 0, %v1574
      %v1576 = vrot.slane %v1535, %v1575
      %v1578 = vadd.f32 %v1570, %v1576
      %v1579 = vadd.f32 %v1571, %v1576
      %v1580 = vpack.c.bf16 %v1579, %v1578
      %v1581 = vld [vmem:[%s948] sm:$0xf]
      %v1582 = vld [vmem:[%s948 + $0x4] sm:$0xf]
      %v1583 = vld [vmem:[%s948 + $0x8] sm:$0xf]
      %v1584 = vld [vmem:[%s948 + $0xc] sm:$0xf]
      %v1585 = vld [vmem:[%s948 + $0x10] sm:$0xf]
      %v1586 = vld [vmem:[%s948 + $0x14] sm:$0xf]
      %v1587 = vld [vmem:[%s948 + $0x18] sm:$0xf]
      %v1588 = vld [vmem:[%s948 + $0x1c] sm:$0xf]
      %v1589 = vld [vmem:[%s962] sm:$0x1]
      %v1591 = vlaneseq
      %v1592 = vshrl.u32 %v1591, 7
      %v1593 = vsub.s32 0, %v1592
      %v1594 = vrot.slane %v1589, %v1593
      %v1604 = vunpack.c.l.b16 %v1581
      %v1605 = vunpack.c.l.b16 %v1582
      %v1606 = vunpack.c.l.b16 %v1583
      %v1607 = vunpack.c.l.b16 %v1584
      %v1608 = vunpack.c.l.b16 %v1585
      %v1609 = vunpack.c.l.b16 %v1586
      %v1610 = vunpack.c.l.b16 %v1587
      %v1611 = vunpack.c.l.b16 %v1588
      %v1612 = vpack.c.b16 %v1605, %v1604
      %v1613 = vpack.c.b16 %v1607, %v1606
      %v1614 = vpack.c.b16 %v1609, %v1608
      %v1615 = vpack.c.b16 %v1611, %v1610
      %v1621 = vsel %vm1536, %v1580, 0
      %1623 = vmatprep.subr.bf16.mxu0 0
      %1624 = vmatpush1.bf16.msra.mxu0 %v1612
      %1625 = vmatprep.subr.bf16.mxu0 0
      %1626 = vmatpush1.bf16.msra.mxu0 %v1613
      %1627 = vmatprep.subr.bf16.mxu0 0
      %1628 = vmatpush1.bf16.msra.mxu0 %v1614
      %1629 = vmatprep.subr.bf16.mxu0 0
      %1630 = vmatpush1.bf16.msra.mxu0 %v1615
      %1631 = vmatprep.subr.bf16.mxu0 0
      %1632 = vmatpush1.bf16.msra.mxu0 0
      %1633 = vmatprep.subr.bf16.mxu0 0
      %1634 = vmatpush1.bf16.msra.mxu0 0
      %1635 = vmatprep.subr.bf16.mxu0 0
      %1636 = vmatpush1.bf16.msra.mxu0 0
      %1637 = vmatprep.subr.bf16.mxu0 0
      %1638 = vmatpush1.bf16.msra.mxu0 0
      %1639 = vmatprep.subr.bf16.mxu0 0
      %1640 = vmatpush1.bf16.msra.mxu0 0
      %1641 = vmatprep.subr.bf16.mxu0 0
      %1642 = vmatpush1.bf16.msra.mxu0 0
      %1643 = vmatprep.subr.bf16.mxu0 0
      %1644 = vmatpush1.bf16.msra.mxu0 0
      %1645 = vmatprep.subr.bf16.mxu0 0
      %1646 = vmatpush1.bf16.msra.mxu0 0
      %1647 = vmatprep.subr.bf16.mxu0 0
      %1648 = vmatpush1.bf16.msra.mxu0 0
      %1649 = vmatprep.subr.bf16.mxu0 0
      %1650 = vmatpush1.bf16.msra.mxu0 0
      %1651 = vmatprep.subr.bf16.mxu0 0
      %1652 = vmatpush1.bf16.msra.mxu0 0
      %1653 = vmatprep.subr.bf16.mxu0 0
      %1654 = vmatpush1.bf16.msra.mxu0 0
      %1655 = vmatprep.mubr.bf16.mxu0 0
      %1656 = vmatmul.mubr.bf16.gmra.mrb[0].mxu0 %v1621
      %v1657 = vpop.f32.mrb[0].mxu0
      %v1658 = vadd.f32 %v1594, %v1657
      %v1659 = vpop.f32.mrb[0].mxu0
      %v1660 = vpop.f32.mrb[0].mxu0
      %v1661 = vadd.f32 %v1594, %v1660
      %v1662 = vpop.f32.mrb[0].mxu0
      %1663 = vdwg.mxu0
      %v1664 = vld [vmem:[%s953] sm:$0xf]
      %v1665 = vld [vmem:[%s953 + $0x4] sm:$0xf]
      %v1666 = vld [vmem:[%s953 + $0x8] sm:$0xf]
      %v1667 = vld [vmem:[%s953 + $0xc] sm:$0xf]
      %v1668 = vld [vmem:[%s953 + $0x10] sm:$0xf]
      %v1669 = vld [vmem:[%s953 + $0x14] sm:$0xf]
      %v1670 = vld [vmem:[%s953 + $0x18] sm:$0xf]
      %v1671 = vld [vmem:[%s953 + $0x1c] sm:$0xf]
      %v1672 = vld [vmem:[%s966] sm:$0x1]
      %v1674 = vlaneseq
      %v1675 = vshrl.u32 %v1674, 7
      %v1676 = vsub.s32 0, %v1675
      %v1677 = vrot.slane %v1672, %v1676
      %v1687 = vunpack.c.l.b16 %v1664
      %v1688 = vunpack.c.l.b16 %v1665
      %v1689 = vunpack.c.l.b16 %v1666
      %v1690 = vunpack.c.l.b16 %v1667
      %v1691 = vunpack.c.l.b16 %v1668
      %v1692 = vunpack.c.l.b16 %v1669
      %v1693 = vunpack.c.l.b16 %v1670
      %v1694 = vunpack.c.l.b16 %v1671
      %v1695 = vpack.c.b16 %v1688, %v1687
      %v1696 = vpack.c.b16 %v1690, %v1689
      %v1697 = vpack.c.b16 %v1692, %v1691
      %v1698 = vpack.c.b16 %v1694, %v1693
      %1703 = vmatprep.subr.bf16.mxu0 0
      %1704 = vmatpush1.bf16.msra.mxu0 %v1695
      %1705 = vmatprep.subr.bf16.mxu0 0
      %1706 = vmatpush1.bf16.msra.mxu0 %v1696
      %1707 = vmatprep.subr.bf16.mxu0 0
      %1708 = vmatpush1.bf16.msra.mxu0 %v1697
      %1709 = vmatprep.subr.bf16.mxu0 0
      %1710 = vmatpush1.bf16.msra.mxu0 %v1698
      %1711 = vmatprep.subr.bf16.mxu0 0
      %1712 = vmatpush1.bf16.msra.mxu0 0
      %1713 = vmatprep.subr.bf16.mxu0 0
      %1714 = vmatpush1.bf16.msra.mxu0 0
      %1715 = vmatprep.subr.bf16.mxu0 0
      %1716 = vmatpush1.bf16.msra.mxu0 0
      %1717 = vmatprep.subr.bf16.mxu0 0
      %1718 = vmatpush1.bf16.msra.mxu0 0
      %1719 = vmatprep.subr.bf16.mxu0 0
      %1720 = vmatpush1.bf16.msra.mxu0 0
      %1721 = vmatprep.subr.bf16.mxu0 0
      %1722 = vmatpush1.bf16.msra.mxu0 0
      %1723 = vmatprep.subr.bf16.mxu0 0
      %1724 = vmatpush1.bf16.msra.mxu0 0
      %1725 = vmatprep.subr.bf16.mxu0 0
      %1726 = vmatpush1.bf16.msra.mxu0 0
      %1727 = vmatprep.subr.bf16.mxu0 0
      %1728 = vmatpush1.bf16.msra.mxu0 0
      %1729 = vmatprep.subr.bf16.mxu0 0
      %1730 = vmatpush1.bf16.msra.mxu0 0
      %1731 = vmatprep.subr.bf16.mxu0 0
      %1732 = vmatpush1.bf16.msra.mxu0 0
      %1733 = vmatprep.subr.bf16.mxu0 0
      %1734 = vmatpush1.bf16.msra.mxu0 0
      %1735 = vmatprep.mubr.bf16.mxu0 0
      %1736 = vmatmul.mubr.bf16.gmra.mrb[0].mxu0 %v1621
      %v1737 = vpop.f32.mrb[0].mxu0
      %v1738 = vadd.f32 %v1677, %v1737
      %v1739 = vpop.f32.mrb[0].mxu0
      %v1740 = vpop.f32.mrb[0].mxu0
      %v1741 = vadd.f32 %v1677, %v1740
      %v1742 = vpop.f32.mrb[0].mxu0
      %1743 = vdwg.mxu0
      %v1744 = vld [vmem:[%s958] sm:$0xf]
      %v1745 = vld [vmem:[%s958 + $0x4] sm:$0xf]
      %v1746 = vld [vmem:[%s958 + $0x8] sm:$0xf]
      %v1747 = vld [vmem:[%s958 + $0xc] sm:$0xf]
      %v1748 = vld [vmem:[%s958 + $0x10] sm:$0xf]
      %v1749 = vld [vmem:[%s958 + $0x14] sm:$0xf]
      %v1750 = vld [vmem:[%s958 + $0x18] sm:$0xf]
      %v1751 = vld [vmem:[%s958 + $0x1c] sm:$0xf]
      %v1752 = vld [vmem:[%s970] sm:$0x1]
      %v1754 = vlaneseq
      %v1755 = vshrl.u32 %v1754, 7
      %v1756 = vsub.s32 0, %v1755
      %v1757 = vrot.slane %v1752, %v1756
      %v1767 = vunpack.c.l.b16 %v1744
      %v1768 = vunpack.c.l.b16 %v1745
      %v1769 = vunpack.c.l.b16 %v1746
      %v1770 = vunpack.c.l.b16 %v1747
      %v1771 = vunpack.c.l.b16 %v1748
      %v1772 = vunpack.c.l.b16 %v1749
      %v1773 = vunpack.c.l.b16 %v1750
      %v1774 = vunpack.c.l.b16 %v1751
      %v1775 = vpack.c.b16 %v1768, %v1767
      %v1776 = vpack.c.b16 %v1770, %v1769
      %v1777 = vpack.c.b16 %v1772, %v1771
      %v1778 = vpack.c.b16 %v1774, %v1773
      %1783 = vmatprep.subr.bf16.mxu0 0
      %1784 = vmatpush1.bf16.msra.mxu0 %v1775
      %1785 = vmatprep.subr.bf16.mxu0 0
      %1786 = vmatpush1.bf16.msra.mxu0 %v1776
      %1787 = vmatprep.subr.bf16.mxu0 0
      %1788 = vmatpush1.bf16.msra.mxu0 %v1777
      %1789 = vmatprep.subr.bf16.mxu0 0
      %1790 = vmatpush1.bf16.msra.mxu0 %v1778
      %1791 = vmatprep.subr.bf16.mxu0 0
      %1792 = vmatpush1.bf16.msra.mxu0 0
      %1793 = vmatprep.subr.bf16.mxu0 0
      %1794 = vmatpush1.bf16.msra.mxu0 0
      %1795 = vmatprep.subr.bf16.mxu0 0
      %1796 = vmatpush1.bf16.msra.mxu0 0
      %1797 = vmatprep.subr.bf16.mxu0 0
      %1798 = vmatpush1.bf16.msra.mxu0 0
      %1799 = vmatprep.subr.bf16.mxu0 0
      %1800 = vmatpush1.bf16.msra.mxu0 0
      %1801 = vmatprep.subr.bf16.mxu0 0
      %1802 = vmatpush1.bf16.msra.mxu0 0
      %1803 = vmatprep.subr.bf16.mxu0 0
      %1804 = vmatpush1.bf16.msra.mxu0 0
      %1805 = vmatprep.subr.bf16.mxu0 0
      %1806 = vmatpush1.bf16.msra.mxu0 0
      %1807 = vmatprep.subr.bf16.mxu0 0
      %1808 = vmatpush1.bf16.msra.mxu0 0
      %1809 = vmatprep.subr.bf16.mxu0 0
      %1810 = vmatpush1.bf16.msra.mxu0 0
      %1811 = vmatprep.subr.bf16.mxu0 0
      %1812 = vmatpush1.bf16.msra.mxu0 0
      %1813 = vmatprep.subr.bf16.mxu0 0
      %1814 = vmatpush1.bf16.msra.mxu0 0
      %1815 = vmatprep.mubr.bf16.mxu0 0
      %1816 = vmatmul.mubr.bf16.gmra.mrb[0].mxu0 %v1621
      %v1817 = vpop.f32.mrb[0].mxu0
      %v1818 = vadd.f32 %v1757, %v1817
      %v1819 = vpop.f32.mrb[0].mxu0
      %v1820 = vpop.f32.mrb[0].mxu0
      %v1821 = vadd.f32 %v1757, %v1820
      %v1822 = vpop.f32.mrb[0].mxu0
      %1823 = vdwg.mxu0
      %vm1824 = vcmask 130048
      %v1826 = vsel %vm1824, %v1658, 0
      %v1829 = vsel %vm1824, %v1661, 0
      %v1832 = vsel %vm1824, %v1738, 0
      %v1835 = vsel %vm1824, %v1741, 0
      %1837 = vmatprep.subr.mxu0 0.0
      %1838 = vmatpush1.xpose.msra.mxu0 %v1832
      %1839 = vmatprep.subr.mxu0 0.0
      %1840 = vmatpush1.xpose.msra.mxu0 %v1835
      %1841 = vmatprep.subr.mxu0 0.0
      %1842 = vmatpush1.xpose.msra.mxu0 0.0
      %1843 = vmatprep.subr.mxu0 0.0
      %1844 = vmatpush1.xpose.msra.mxu0 0.0
      %1845 = vmatprep.subr.mxu0 0.0
      %1846 = vmatpush1.xpose.msra.mxu0 0.0
      %1847 = vmatprep.subr.mxu0 0.0
      %1848 = vmatpush1.xpose.msra.mxu0 0.0
      %1849 = vmatprep.subr.mxu0 0.0
      %1850 = vmatpush1.xpose.msra.mxu0 0.0
      %1851 = vmatprep.subr.mxu0 0.0
      %1852 = vmatpush1.xpose.msra.mxu0 0.0
      %1853 = vmatprep.subr.mxu0 0.0
      %1854 = vmatpush1.xpose.msra.mxu0 0.0
      %1855 = vmatprep.subr.mxu0 0.0
      %1856 = vmatpush1.xpose.msra.mxu0 0.0
      %1857 = vmatprep.subr.mxu0 0.0
      %1858 = vmatpush1.xpose.msra.mxu0 0.0
      %1859 = vmatprep.subr.mxu0 0.0
      %1860 = vmatpush1.xpose.msra.mxu0 0.0
      %1861 = vmatprep.subr.mxu0 0.0
      %1862 = vmatpush1.xpose.msra.mxu0 0.0
      %1863 = vmatprep.subr.mxu0 0.0
      %1864 = vmatpush1.xpose.msra.mxu0 0.0
      %1865 = vmatprep.subr.mxu0 0.0
      %1866 = vmatpush1.xpose.msra.mxu0 0.0
      %1867 = vmatprep.subr.mxu0 0.0
      %1868 = vmatpush1.xpose.msra.mxu0 0.0
      %1869 = vmatprep.subr.mxu0 0.0
      %1870 = vmatpush1.xpose.msra.mxu0 0.0
      %1871 = vmatprep.subr.mxu0 0.0
      %1872 = vmatpush1.xpose.msra.mxu0 0.0
      %1873 = vmatprep.subr.mxu0 0.0
      %1874 = vmatpush1.xpose.msra.mxu0 0.0
      %1875 = vmatprep.subr.mxu0 0.0
      %1876 = vmatpush1.xpose.msra.mxu0 0.0
      %1877 = vmatprep.subr.mxu0 0.0
      %1878 = vmatpush1.xpose.msra.mxu0 0.0
      %1879 = vmatprep.subr.mxu0 0.0
      %1880 = vmatpush1.xpose.msra.mxu0 0.0
      %1881 = vmatprep.subr.mxu0 0.0
      %1882 = vmatpush1.xpose.msra.mxu0 0.0
      %1883 = vmatprep.subr.mxu0 0.0
      %1884 = vmatpush1.xpose.msra.mxu0 0.0
      %1885 = vmatprep.subr.mxu0 0.0
      %1886 = vmatpush1.xpose.msra.mxu0 0.0
      %1887 = vmatprep.subr.mxu0 0.0
      %1888 = vmatpush1.xpose.msra.mxu0 0.0
      %1889 = vmatprep.subr.mxu0 0.0
      %1890 = vmatpush1.xpose.msra.mxu0 0.0
      %1891 = vmatprep.subr.mxu0 0.0
      %1892 = vmatpush1.xpose.msra.mxu0 0.0
      %1893 = vmatprep.subr.mxu0 0.0
      %1894 = vmatpush1.xpose.msra.mxu0 0.0
      %1895 = vmatprep.subr.mxu0 0.0
      %1896 = vmatpush1.xpose.msra.mxu0 0.0
      %1897 = vmatprep.subr.mxu0 0.0
      %1898 = vmatpush1.xpose.msra.mxu0 0.0
      %1899 = vmatprep.subr.mxu0 0.0
      %1900 = vmatpush1.xpose.msra.mxu0 0.0
      %1901 = vmatprep.mubr.f32.mxu0 0.0
      %1902 = vmatmul.mubr.f32.gmra.mrb[0].mxu0 %v1826
      %v1903 = vpop.f32.mrb[0].mxu0
      %v1904 = vadd.f32 %v1530, %v1903
      %v1905 = vpop.f32.mrb[0].mxu0
      %1906 = vmatprep.mubr.f32.mxu0 0.0
      %1907 = vmatmul.mubr.f32.gmra.mrb[0].mxu0 %v1829
      %v1908 = vpop.f32.mrb[0].mxu0
      %v1909 = vadd.f32 %v1531, %v1908
      %v1910 = vpop.f32.mrb[0].mxu0
      %1911 = vdwg.mxu0
      %v1912 = vsel %vm1824, %v1904, -inf
      %1913 = vmax.xlane.f32.xlu0 %v1912
      %v1914 = vpop.xlane.xlu0 %1913
      %v1915 = vsel %vm1824, %v1909, -inf
      %1916 = vmax.xlane.f32.xlu0 %v1915
      %v1917 = vpop.xlane.xlu0 %1916
      %v1918 = vsub.f32 %v1904, %v1914
      %v1919 = vsub.f32 %v1909, %v1917
      %v1920 = vmul.f32 %v1918, 1.442695
      %v1921 = vpow.pop %v1920
      %v1922 = vmul.f32 %v1919, 1.442695
      %v1923 = vpow.pop %v1922
      %v1924 = vsel %vm1824, %v1921, 0.0
      %1925 = vadd.xlane.f32.xlu0 %v1924
      %v1926 = vpop.xlane.xlu0 %1925
      %v1927 = vsel %vm1824, %v1923, 0.0
      %1928 = vadd.xlane.f32.xlu0 %v1927
      %v1929 = vpop.xlane.xlu0 %1928
      %v1930 = vrcp.pop %v1926
      %v1931 = vrcp.pop %v1929
      %v1932 = vmul.f32 %v1921, %v1930
      %v1933 = vmul.f32 %v1923, %v1931
      %v1935 = vsel %vm1824, %v1932, 0
      %v1938 = vsel %vm1824, %v1933, 0
      %1940 = vmatprep.subr.mxu0 0.0
      %1941 = vmatpush1.msra.mxu0 %v1818
      %1942 = vmatprep.subr.mxu0 0.0
      %1943 = vmatpush1.msra.mxu0 %v1821
      %1944 = vmatprep.subr.mxu0 0.0
      %1945 = vmatpush1.msra.mxu0 0.0
      %1946 = vmatprep.subr.mxu0 0.0
      %1947 = vmatpush1.msra.mxu0 0.0
      %1948 = vmatprep.subr.mxu0 0.0
      %1949 = vmatpush1.msra.mxu0 0.0
      %1950 = vmatprep.subr.mxu0 0.0
      %1951 = vmatpush1.msra.mxu0 0.0
      %1952 = vmatprep.subr.mxu0 0.0
      %1953 = vmatpush1.msra.mxu0 0.0
      %1954 = vmatprep.subr.mxu0 0.0
      %1955 = vmatpush1.msra.mxu0 0.0
      %1956 = vmatprep.subr.mxu0 0.0
      %1957 = vmatpush1.msra.mxu0 0.0
      %1958 = vmatprep.subr.mxu0 0.0
      %1959 = vmatpush1.msra.mxu0 0.0
      %1960 = vmatprep.subr.mxu0 0.0
      %1961 = vmatpush1.msra.mxu0 0.0
      %1962 = vmatprep.subr.mxu0 0.0
      %1963 = vmatpush1.msra.mxu0 0.0
      %1964 = vmatprep.subr.mxu0 0.0
      %1965 = vmatpush1.msra.mxu0 0.0
      %1966 = vmatprep.subr.mxu0 0.0
      %1967 = vmatpush1.msra.mxu0 0.0
      %1968 = vmatprep.subr.mxu0 0.0
      %1969 = vmatpush1.msra.mxu0 0.0
      %1970 = vmatprep.subr.mxu0 0.0
      %1971 = vmatpush1.msra.mxu0 0.0
      %1972 = vmatprep.subr.mxu0 0.0
      %1973 = vmatpush1.msra.mxu0 0.0
      %1974 = vmatprep.subr.mxu0 0.0
      %1975 = vmatpush1.msra.mxu0 0.0
      %1976 = vmatprep.subr.mxu0 0.0
      %1977 = vmatpush1.msra.mxu0 0.0
      %1978 = vmatprep.subr.mxu0 0.0
      %1979 = vmatpush1.msra.mxu0 0.0
      %1980 = vmatprep.subr.mxu0 0.0
      %1981 = vmatpush1.msra.mxu0 0.0
      %1982 = vmatprep.subr.mxu0 0.0
      %1983 = vmatpush1.msra.mxu0 0.0
      %1984 = vmatprep.subr.mxu0 0.0
      %1985 = vmatpush1.msra.mxu0 0.0
      %1986 = vmatprep.subr.mxu0 0.0
      %1987 = vmatpush1.msra.mxu0 0.0
      %1988 = vmatprep.subr.mxu0 0.0
      %1989 = vmatpush1.msra.mxu0 0.0
      %1990 = vmatprep.subr.mxu0 0.0
      %1991 = vmatpush1.msra.mxu0 0.0
      %1992 = vmatprep.subr.mxu0 0.0
      %1993 = vmatpush1.msra.mxu0 0.0
      %1994 = vmatprep.subr.mxu0 0.0
      %1995 = vmatpush1.msra.mxu0 0.0
      %1996 = vmatprep.subr.mxu0 0.0
      %1997 = vmatpush1.msra.mxu0 0.0
      %1998 = vmatprep.subr.mxu0 0.0
      %1999 = vmatpush1.msra.mxu0 0.0
      %2000 = vmatprep.subr.mxu0 0.0
      %2001 = vmatpush1.msra.mxu0 0.0
      %2002 = vmatprep.subr.mxu0 0.0
      %2003 = vmatpush1.msra.mxu0 0.0
      %2004 = vmatprep.mubr.f32.mxu0 0.0
      %2005 = vmatmul.mubr.f32.gmra.mrb[0].mxu0 %v1935
      %v2006 = vpop.f32.mrb[0].mxu0
      %v2007 = vadd.f32 0.0, %v2006
      %v2008 = vpop.f32.mrb[0].mxu0
      %2009 = vmatprep.mubr.f32.mxu0 0.0
      %2010 = vmatmul.mubr.f32.gmra.mrb[0].mxu0 %v1938
      %v2011 = vpop.f32.mrb[0].mxu0
      %v2012 = vadd.f32 0.0, %v2011
      %v2013 = vpop.f32.mrb[0].mxu0
      %2014 = vdwg.mxu0
      %v2015 = vpack.c.bf16 %v2012, %v2007
      %v2016 = vld [vmem:[%s975] sm:$0xf]
      %v2017 = vld [vmem:[%s975 + $0x4] sm:$0xf]
      %v2020 = vunpack.c.l.b16 %v2016
      %v2021 = vunpack.c.l.b16 %v2017
      %v2022 = vpack.c.b16 %v2021, %v2020
      %v2025 = vsel %vm1824, %v2015, 0
      %2027 = vmatprep.subr.bf16.mxu0 0
      %2028 = vmatpush1.bf16.msra.mxu0 %v2022
      %2029 = vmatprep.subr.bf16.mxu0 0
      %2030 = vmatpush1.bf16.msra.mxu0 0
      %2031 = vmatprep.subr.bf16.mxu0 0
      %2032 = vmatpush1.bf16.msra.mxu0 0
      %2033 = vmatprep.subr.bf16.mxu0 0
      %2034 = vmatpush1.bf16.msra.mxu0 0
      %2035 = vmatprep.subr.bf16.mxu0 0
      %2036 = vmatpush1.bf16.msra.mxu0 0
      %2037 = vmatprep.subr.bf16.mxu0 0
      %2038 = vmatpush1.bf16.msra.mxu0 0
      %2039 = vmatprep.subr.bf16.mxu0 0
      %2040 = vmatpush1.bf16.msra.mxu0 0
      %2041 = vmatprep.subr.bf16.mxu0 0
      %2042 = vmatpush1.bf16.msra.mxu0 0
      %2043 = vmatprep.subr.bf16.mxu0 0
      %2044 = vmatpush1.bf16.msra.mxu0 0
      %2045 = vmatprep.subr.bf16.mxu0 0
      %2046 = vmatpush1.bf16.msra.mxu0 0
      %2047 = vmatprep.subr.bf16.mxu0 0
      %2048 = vmatpush1.bf16.msra.mxu0 0
      %2049 = vmatprep.subr.bf16.mxu0 0
      %2050 = vmatpush1.bf16.msra.mxu0 0
      %2051 = vmatprep.subr.bf16.mxu0 0
      %2052 = vmatpush1.bf16.msra.mxu0 0
      %2053 = vmatprep.subr.bf16.mxu0 0
      %2054 = vmatpush1.bf16.msra.mxu0 0
      %2055 = vmatprep.subr.bf16.mxu0 0
      %2056 = vmatpush1.bf16.msra.mxu0 0
      %2057 = vmatprep.subr.bf16.mxu0 0
      %2058 = vmatpush1.bf16.msra.mxu0 0
      %2059 = vmatprep.mubr.bf16.mxu0 0
      %2060 = vmatmul.mubr.bf16.gmra.mrb[0].mxu0 %v2025
      %v2061 = vpop.f32.mrb[0].mxu0
      %v2062 = vadd.f32 0.0, %v2061
      %v2063 = vpop.f32.mrb[0].mxu0
      %v2064 = vpop.f32.mrb[0].mxu0
      %v2065 = vadd.f32 0.0, %v2064
      %v2066 = vpop.f32.mrb[0].mxu0
      %2067 = vdwg.mxu0
      %v2068 = vadd.f32 %v1532, %v2062
      %v2069 = vadd.f32 %v1533, %v2065
      %s2070 = scalar_lea.vmem %s948, 32
      %v2071 = vld [vmem:[%s2070] sm:$0xf]
      %v2072 = vld [vmem:[%s2070 + $0x4] sm:$0xf]
      %v2073 = vld [vmem:[%s2070 + $0x8] sm:$0xf]
      %v2074 = vld [vmem:[%s2070 + $0xc] sm:$0xf]
      %v2075 = vld [vmem:[%s2070 + $0x10] sm:$0xf]
      %v2076 = vld [vmem:[%s2070 + $0x14] sm:$0xf]
      %v2077 = vld [vmem:[%s2070 + $0x18] sm:$0xf]
      %v2078 = vld [vmem:[%s2070 + $0x1c] sm:$0xf]
      %s2079 = scalar_lea.vmem %s962, 1
      %v2080 = vld [vmem:[%s2079] sm:$0x1]
      %v2082 = vlaneseq
      %v2083 = vshrl.u32 %v2082, 7
      %v2084 = vsub.s32 0, %v2083
      %v2085 = vrot.slane %v2080, %v2084
      %v2095 = vunpack.c.l.b16 %v2071
      %v2096 = vunpack.c.l.b16 %v2072
      %v2097 = vunpack.c.l.b16 %v2073
      %v2098 = vunpack.c.l.b16 %v2074
      %v2099 = vunpack.c.l.b16 %v2075
      %v2100 = vunpack.c.l.b16 %v2076
      %v2101 = vunpack.c.l.b16 %v2077
      %v2102 = vunpack.c.l.b16 %v2078
      %v2103 = vpack.c.b16 %v2096, %v2095
      %v2104 = vpack.c.b16 %v2098, %v2097
      %v2105 = vpack.c.b16 %v2100, %v2099
      %v2106 = vpack.c.b16 %v2102, %v2101
      %2111 = vmatprep.subr.bf16.mxu0 0
      %2112 = vmatpush1.bf16.msra.mxu0 %v2103
      %2113 = vmatprep.subr.bf16.mxu0 0
      %2114 = vmatpush1.bf16.msra.mxu0 %v2104
      %2115 = vmatprep.subr.bf16.mxu0 0
      %2116 = vmatpush1.bf16.msra.mxu0 %v2105
      %2117 = vmatprep.subr.bf16.mxu0 0
      %2118 = vmatpush1.bf16.msra.mxu0 %v2106
      %2119 = vmatprep.subr.bf16.mxu0 0
      %2120 = vmatpush1.bf16.msra.mxu0 0
      %2121 = vmatprep.subr.bf16.mxu0 0
      %2122 = vmatpush1.bf16.msra.mxu0 0
      %2123 = vmatprep.subr.bf16.mxu0 0
      %2124 = vmatpush1.bf16.msra.mxu0 0
      %2125 = vmatprep.subr.bf16.mxu0 0
      %2126 = vmatpush1.bf16.msra.mxu0 0
      %2127 = vmatprep.subr.bf16.mxu0 0
      %2128 = vmatpush1.bf16.msra.mxu0 0
      %2129 = vmatprep.subr.bf16.mxu0 0
      %2130 = vmatpush1.bf16.msra.mxu0 0
      %2131 = vmatprep.subr.bf16.mxu0 0
      %2132 = vmatpush1.bf16.msra.mxu0 0
      %2133 = vmatprep.subr.bf16.mxu0 0
      %2134 = vmatpush1.bf16.msra.mxu0 0
      %2135 = vmatprep.subr.bf16.mxu0 0
      %2136 = vmatpush1.bf16.msra.mxu0 0
      %2137 = vmatprep.subr.bf16.mxu0 0
      %2138 = vmatpush1.bf16.msra.mxu0 0
      %2139 = vmatprep.subr.bf16.mxu0 0
      %2140 = vmatpush1.bf16.msra.mxu0 0
      %2141 = vmatprep.subr.bf16.mxu0 0
      %2142 = vmatpush1.bf16.msra.mxu0 0
      %2143 = vmatprep.mubr.bf16.mxu0 0
      %2144 = vmatmul.mubr.bf16.gmra.mrb[0].mxu0 %v1621
      %v2145 = vpop.f32.mrb[0].mxu0
      %v2146 = vadd.f32 %v2085, %v2145
      %v2147 = vpop.f32.mrb[0].mxu0
      %v2148 = vpop.f32.mrb[0].mxu0
      %v2149 = vadd.f32 %v2085, %v2148
      %v2150 = vpop.f32.mrb[0].mxu0
      %2151 = vdwg.mxu0
      %s2152 = scalar_lea.vmem %s953, 32
      %v2153 = vld [vmem:[%s2152] sm:$0xf]
      %v2154 = vld [vmem:[%s2152 + $0x4] sm:$0xf]
      %v2155 = vld [vmem:[%s2152 + $0x8] sm:$0xf]
      %v2156 = vld [vmem:[%s2152 + $0xc] sm:$0xf]
      %v2157 = vld [vmem:[%s2152 + $0x10] sm:$0xf]
      %v2158 = vld [vmem:[%s2152 + $0x14] sm:$0xf]
      %v2159 = vld [vmem:[%s2152 + $0x18] sm:$0xf]
      %v2160 = vld [vmem:[%s2152 + $0x1c] sm:$0xf]
      %s2161 = scalar_lea.vmem %s966, 1
      %v2162 = vld [vmem:[%s2161] sm:$0x1]
      %v2164 = vlaneseq
      %v2165 = vshrl.u32 %v2164, 7
      %v2166 = vsub.s32 0, %v2165
      %v2167 = vrot.slane %v2162, %v2166
      %v2177 = vunpack.c.l.b16 %v2153
      %v2178 = vunpack.c.l.b16 %v2154
      %v2179 = vunpack.c.l.b16 %v2155
      %v2180 = vunpack.c.l.b16 %v2156
      %v2181 = vunpack.c.l.b16 %v2157
      %v2182 = vunpack.c.l.b16 %v2158
      %v2183 = vunpack.c.l.b16 %v2159
      %v2184 = vunpack.c.l.b16 %v2160
      %v2185 = vpack.c.b16 %v2178, %v2177
      %v2186 = vpack.c.b16 %v2180, %v2179
      %v2187 = vpack.c.b16 %v2182, %v2181
      %v2188 = vpack.c.b16 %v2184, %v2183
      %2193 = vmatprep.subr.bf16.mxu0 0
      %2194 = vmatpush1.bf16.msra.mxu0 %v2185
      %2195 = vmatprep.subr.bf16.mxu0 0
      %2196 = vmatpush1.bf16.msra.mxu0 %v2186
      %2197 = vmatprep.subr.bf16.mxu0 0
      %2198 = vmatpush1.bf16.msra.mxu0 %v2187
      %2199 = vmatprep.subr.bf16.mxu0 0
      %2200 = vmatpush1.bf16.msra.mxu0 %v2188
      %2201 = vmatprep.subr.bf16.mxu0 0
      %2202 = vmatpush1.bf16.msra.mxu0 0
      %2203 = vmatprep.subr.bf16.mxu0 0
      %2204 = vmatpush1.bf16.msra.mxu0 0
      %2205 = vmatprep.subr.bf16.mxu0 0
      %2206 = vmatpush1.bf16.msra.mxu0 0
      %2207 = vmatprep.subr.bf16.mxu0 0
      %2208 = vmatpush1.bf16.msra.mxu0 0
      %2209 = vmatprep.subr.bf16.mxu0 0
      %2210 = vmatpush1.bf16.msra.mxu0 0
      %2211 = vmatprep.subr.bf16.mxu0 0
      %2212 = vmatpush1.bf16.msra.mxu0 0
      %2213 = vmatprep.subr.bf16.mxu0 0
      %2214 = vmatpush1.bf16.msra.mxu0 0
      %2215 = vmatprep.subr.bf16.mxu0 0
      %2216 = vmatpush1.bf16.msra.mxu0 0
      %2217 = vmatprep.subr.bf16.mxu0 0
      %2218 = vmatpush1.bf16.msra.mxu0 0
      %2219 = vmatprep.subr.bf16.mxu0 0
      %2220 = vmatpush1.bf16.msra.mxu0 0
      %2221 = vmatprep.subr.bf16.mxu0 0
      %2222 = vmatpush1.bf16.msra.mxu0 0
      %2223 = vmatprep.subr.bf16.mxu0 0
      %2224 = vmatpush1.bf16.msra.mxu0 0
      %2225 = vmatprep.mubr.bf16.mxu0 0
      %2226 = vmatmul.mubr.bf16.gmra.mrb[0].mxu0 %v1621
      %v2227 = vpop.f32.mrb[0].mxu0
      %v2228 = vadd.f32 %v2167, %v2227
      %v2229 = vpop.f32.mrb[0].mxu0
      %v2230 = vpop.f32.mrb[0].mxu0
      %v2231 = vadd.f32 %v2167, %v2230
      %v2232 = vpop.f32.mrb[0].mxu0
      %2233 = vdwg.mxu0
      %s2234 = scalar_lea.vmem %s958, 32
      %v2235 = vld [vmem:[%s2234] sm:$0xf]
      %v2236 = vld [vmem:[%s2234 + $0x4] sm:$0xf]
      %v2237 = vld [vmem:[%s2234 + $0x8] sm:$0xf]
      %v2238 = vld [vmem:[%s2234 + $0xc] sm:$0xf]
      %v2239 = vld [vmem:[%s2234 + $0x10] sm:$0xf]
      %v2240 = vld [vmem:[%s2234 + $0x14] sm:$0xf]
      %v2241 = vld [vmem:[%s2234 + $0x18] sm:$0xf]
      %v2242 = vld [vmem:[%s2234 + $0x1c] sm:$0xf]
      %s2243 = scalar_lea.vmem %s970, 1
      %v2244 = vld [vmem:[%s2243] sm:$0x1]
      %v2246 = vlaneseq
      %v2247 = vshrl.u32 %v2246, 7
      %v2248 = vsub.s32 0, %v2247
      %v2249 = vrot.slane %v2244, %v2248
      %v2259 = vunpack.c.l.b16 %v2235
      %v2260 = vunpack.c.l.b16 %v2236
      %v2261 = vunpack.c.l.b16 %v2237
      %v2262 = vunpack.c.l.b16 %v2238
      %v2263 = vunpack.c.l.b16 %v2239
      %v2264 = vunpack.c.l.b16 %v2240
      %v2265 = vunpack.c.l.b16 %v2241
      %v2266 = vunpack.c.l.b16 %v2242
      %v2267 = vpack.c.b16 %v2260, %v2259
      %v2268 = vpack.c.b16 %v2262, %v2261
      %v2269 = vpack.c.b16 %v2264, %v2263
      %v2270 = vpack.c.b16 %v2266, %v2265
      %2275 = vmatprep.subr.bf16.mxu0 0
      %2276 = vmatpush1.bf16.msra.mxu0 %v2267
      %2277 = vmatprep.subr.bf16.mxu0 0
      %2278 = vmatpush1.bf16.msra.mxu0 %v2268
      %2279 = vmatprep.subr.bf16.mxu0 0
      %2280 = vmatpush1.bf16.msra.mxu0 %v2269
      %2281 = vmatprep.subr.bf16.mxu0 0
      %2282 = vmatpush1.bf16.msra.mxu0 %v2270
      %2283 = vmatprep.subr.bf16.mxu0 0
      %2284 = vmatpush1.bf16.msra.mxu0 0
      %2285 = vmatprep.subr.bf16.mxu0 0
      %2286 = vmatpush1.bf16.msra.mxu0 0
      %2287 = vmatprep.subr.bf16.mxu0 0
      %2288 = vmatpush1.bf16.msra.mxu0 0
      %2289 = vmatprep.subr.bf16.mxu0 0
      %2290 = vmatpush1.bf16.msra.mxu0 0
      %2291 = vmatprep.subr.bf16.mxu0 0
      %2292 = vmatpush1.bf16.msra.mxu0 0
      %2293 = vmatprep.subr.bf16.mxu0 0
      %2294 = vmatpush1.bf16.msra.mxu0 0
      %2295 = vmatprep.subr.bf16.mxu0 0
      %2296 = vmatpush1.bf16.msra.mxu0 0
      %2297 = vmatprep.subr.bf16.mxu0 0
      %2298 = vmatpush1.bf16.msra.mxu0 0
      %2299 = vmatprep.subr.bf16.mxu0 0
      %2300 = vmatpush1.bf16.msra.mxu0 0
      %2301 = vmatprep.subr.bf16.mxu0 0
      %2302 = vmatpush1.bf16.msra.mxu0 0
      %2303 = vmatprep.subr.bf16.mxu0 0
      %2304 = vmatpush1.bf16.msra.mxu0 0
      %2305 = vmatprep.subr.bf16.mxu0 0
      %2306 = vmatpush1.bf16.msra.mxu0 0
      %2307 = vmatprep.mubr.bf16.mxu0 0
      %2308 = vmatmul.mubr.bf16.gmra.mrb[0].mxu0 %v1621
      %v2309 = vpop.f32.mrb[0].mxu0
      %v2310 = vadd.f32 %v2249, %v2309
      %v2311 = vpop.f32.mrb[0].mxu0
      %v2312 = vpop.f32.mrb[0].mxu0
      %v2313 = vadd.f32 %v2249, %v2312
      %v2314 = vpop.f32.mrb[0].mxu0
      %2315 = vdwg.mxu0
      %v2317 = vsel %vm1824, %v2146, 0
      %v2320 = vsel %vm1824, %v2149, 0
      %v2323 = vsel %vm1824, %v2228, 0
      %v2326 = vsel %vm1824, %v2231, 0
      %2328 = vmatprep.subr.mxu0 0.0
      %2329 = vmatpush1.xpose.msra.mxu0 %v2323
      %2330 = vmatprep.subr.mxu0 0.0
      %2331 = vmatpush1.xpose.msra.mxu0 %v2326
      %2332 = vmatprep.subr.mxu0 0.0
      %2333 = vmatpush1.xpose.msra.mxu0 0.0
      %2334 = vmatprep.subr.mxu0 0.0
      %2335 = vmatpush1.xpose.msra.mxu0 0.0
      %2336 = vmatprep.subr.mxu0 0.0
      %2337 = vmatpush1.xpose.msra.mxu0 0.0
      %2338 = vmatprep.subr.mxu0 0.0
      %2339 = vmatpush1.xpose.msra.mxu0 0.0
      %2340 = vmatprep.subr.mxu0 0.0
      %2341 = vmatpush1.xpose.msra.mxu0 0.0
      %2342 = vmatprep.subr.mxu0 0.0
      %2343 = vmatpush1.xpose.msra.mxu0 0.0
      %2344 = vmatprep.subr.mxu0 0.0
      %2345 = vmatpush1.xpose.msra.mxu0 0.0
      %2346 = vmatprep.subr.mxu0 0.0
      %2347 = vmatpush1.xpose.msra.mxu0 0.0
      %2348 = vmatprep.subr.mxu0 0.0
      %2349 = vmatpush1.xpose.msra.mxu0 0.0
      %2350 = vmatprep.subr.mxu0 0.0
      %2351 = vmatpush1.xpose.msra.mxu0 0.0
      %2352 = vmatprep.subr.mxu0 0.0
      %2353 = vmatpush1.xpose.msra.mxu0 0.0
      %2354 = vmatprep.subr.mxu0 0.0
      %2355 = vmatpush1.xpose.msra.mxu0 0.0
      %2356 = vmatprep.subr.mxu0 0.0
      %2357 = vmatpush1.xpose.msra.mxu0 0.0
      %2358 = vmatprep.subr.mxu0 0.0
      %2359 = vmatpush1.xpose.msra.mxu0 0.0
      %2360 = vmatprep.subr.mxu0 0.0
      %2361 = vmatpush1.xpose.msra.mxu0 0.0
      %2362 = vmatprep.subr.mxu0 0.0
      %2363 = vmatpush1.xpose.msra.mxu0 0.0
      %2364 = vmatprep.subr.mxu0 0.0
      %2365 = vmatpush1.xpose.msra.mxu0 0.0
      %2366 = vmatprep.subr.mxu0 0.0
      %2367 = vmatpush1.xpose.msra.mxu0 0.0
      %2368 = vmatprep.subr.mxu0 0.0
      %2369 = vmatpush1.xpose.msra.mxu0 0.0
      %2370 = vmatprep.subr.mxu0 0.0
      %2371 = vmatpush1.xpose.msra.mxu0 0.0
      %2372 = vmatprep.subr.mxu0 0.0
      %2373 = vmatpush1.xpose.msra.mxu0 0.0
      %2374 = vmatprep.subr.mxu0 0.0
      %2375 = vmatpush1.xpose.msra.mxu0 0.0
      %2376 = vmatprep.subr.mxu0 0.0
      %2377 = vmatpush1.xpose.msra.mxu0 0.0
      %2378 = vmatprep.subr.mxu0 0.0
      %2379 = vmatpush1.xpose.msra.mxu0 0.0
      %2380 = vmatprep.subr.mxu0 0.0
      %2381 = vmatpush1.xpose.msra.mxu0 0.0
      %2382 = vmatprep.subr.mxu0 0.0
      %2383 = vmatpush1.xpose.msra.mxu0 0.0
      %2384 = vmatprep.subr.mxu0 0.0
      %2385 = vmatpush1.xpose.msra.mxu0 0.0
      %2386 = vmatprep.subr.mxu0 0.0
      %2387 = vmatpush1.xpose.msra.mxu0 0.0
      %2388 = vmatprep.subr.mxu0 0.0
      %2389 = vmatpush1.xpose.msra.mxu0 0.0
      %2390 = vmatprep.subr.mxu0 0.0
      %2391 = vmatpush1.xpose.msra.mxu0 0.0
      %2392 = vmatprep.mubr.f32.mxu0 0.0
      %2393 = vmatmul.mubr.f32.gmra.mrb[0].mxu0 %v2317
      %v2394 = vpop.f32.mrb[0].mxu0
      %v2395 = vadd.f32 %v1530, %v2394
      %v2396 = vpop.f32.mrb[0].mxu0
      %2397 = vmatprep.mubr.f32.mxu0 0.0
      %2398 = vmatmul.mubr.f32.gmra.mrb[0].mxu0 %v2320
      %v2399 = vpop.f32.mrb[0].mxu0
      %v2400 = vadd.f32 %v1531, %v2399
      %v2401 = vpop.f32.mrb[0].mxu0
      %2402 = vdwg.mxu0
      %v2403 = vsel %vm1824, %v2395, -inf
      %2404 = vmax.xlane.f32.xlu0 %v2403
      %v2405 = vpop.xlane.xlu0 %2404
      %v2406 = vsel %vm1824, %v2400, -inf
      %2407 = vmax.xlane.f32.xlu0 %v2406
      %v2408 = vpop.xlane.xlu0 %2407
      %v2409 = vsub.f32 %v2395, %v2405
      %v2410 = vsub.f32 %v2400, %v2408
      %v2411 = vmul.f32 %v2409, 1.442695
      %v2412 = vpow.pop %v2411
      %v2413 = vmul.f32 %v2410, 1.442695
      %v2414 = vpow.pop %v2413
      %v2415 = vsel %vm1824, %v2412, 0.0
      %2416 = vadd.xlane.f32.xlu0 %v2415
      %v2417 = vpop.xlane.xlu0 %2416
      %v2418 = vsel %vm1824, %v2414, 0.0
      %2419 = vadd.xlane.f32.xlu0 %v2418
      %v2420 = vpop.xlane.xlu0 %2419
      %v2421 = vrcp.pop %v2417
      %v2422 = vrcp.pop %v2420
      %v2423 = vmul.f32 %v2412, %v2421
      %v2424 = vmul.f32 %v2414, %v2422
      %v2426 = vsel %vm1824, %v2423, 0
      %v2429 = vsel %vm1824, %v2424, 0
      %2431 = vmatprep.subr.mxu0 0.0
      %2432 = vmatpush1.msra.mxu0 %v2310
      %2433 = vmatprep.subr.mxu0 0.0
      %2434 = vmatpush1.msra.mxu0 %v2313
      %2435 = vmatprep.subr.mxu0 0.0
      %2436 = vmatpush1.msra.mxu0 0.0
      %2437 = vmatprep.subr.mxu0 0.0
      %2438 = vmatpush1.msra.mxu0 0.0
      %2439 = vmatprep.subr.mxu0 0.0
      %2440 = vmatpush1.msra.mxu0 0.0
      %2441 = vmatprep.subr.mxu0 0.0
      %2442 = vmatpush1.msra.mxu0 0.0
      %2443 = vmatprep.subr.mxu0 0.0
      %2444 = vmatpush1.msra.mxu0 0.0
      %2445 = vmatprep.subr.mxu0 0.0
      %2446 = vmatpush1.msra.mxu0 0.0
      %2447 = vmatprep.subr.mxu0 0.0
      %2448 = vmatpush1.msra.mxu0 0.0
      %2449 = vmatprep.subr.mxu0 0.0
      %2450 = vmatpush1.msra.mxu0 0.0
      %2451 = vmatprep.subr.mxu0 0.0
      %2452 = vmatpush1.msra.mxu0 0.0
      %2453 = vmatprep.subr.mxu0 0.0
      %2454 = vmatpush1.msra.mxu0 0.0
      %2455 = vmatprep.subr.mxu0 0.0
      %2456 = vmatpush1.msra.mxu0 0.0
      %2457 = vmatprep.subr.mxu0 0.0
      %2458 = vmatpush1.msra.mxu0 0.0
      %2459 = vmatprep.subr.mxu0 0.0
      %2460 = vmatpush1.msra.mxu0 0.0
      %2461 = vmatprep.subr.mxu0 0.0
      %2462 = vmatpush1.msra.mxu0 0.0
      %2463 = vmatprep.subr.mxu0 0.0
      %2464 = vmatpush1.msra.mxu0 0.0
      %2465 = vmatprep.subr.mxu0 0.0
      %2466 = vmatpush1.msra.mxu0 0.0
      %2467 = vmatprep.subr.mxu0 0.0
      %2468 = vmatpush1.msra.mxu0 0.0
      %2469 = vmatprep.subr.mxu0 0.0
      %2470 = vmatpush1.msra.mxu0 0.0
      %2471 = vmatprep.subr.mxu0 0.0
      %2472 = vmatpush1.msra.mxu0 0.0
      %2473 = vmatprep.subr.mxu0 0.0
      %2474 = vmatpush1.msra.mxu0 0.0
      %2475 = vmatprep.subr.mxu0 0.0
      %2476 = vmatpush1.msra.mxu0 0.0
      %2477 = vmatprep.subr.mxu0 0.0
      %2478 = vmatpush1.msra.mxu0 0.0
      %2479 = vmatprep.subr.mxu0 0.0
      %2480 = vmatpush1.msra.mxu0 0.0
      %2481 = vmatprep.subr.mxu0 0.0
      %2482 = vmatpush1.msra.mxu0 0.0
      %2483 = vmatprep.subr.mxu0 0.0
      %2484 = vmatpush1.msra.mxu0 0.0
      %2485 = vmatprep.subr.mxu0 0.0
      %2486 = vmatpush1.msra.mxu0 0.0
      %2487 = vmatprep.subr.mxu0 0.0
      %2488 = vmatpush1.msra.mxu0 0.0
      %2489 = vmatprep.subr.mxu0 0.0
      %2490 = vmatpush1.msra.mxu0 0.0
      %2491 = vmatprep.subr.mxu0 0.0
      %2492 = vmatpush1.msra.mxu0 0.0
      %2493 = vmatprep.subr.mxu0 0.0
      %2494 = vmatpush1.msra.mxu0 0.0
      %2495 = vmatprep.mubr.f32.mxu0 0.0
      %2496 = vmatmul.mubr.f32.gmra.mrb[0].mxu0 %v2426
      %v2497 = vpop.f32.mrb[0].mxu0
      %v2498 = vadd.f32 0.0, %v2497
      %v2499 = vpop.f32.mrb[0].mxu0
      %2500 = vmatprep.mubr.f32.mxu0 0.0
      %2501 = vmatmul.mubr.f32.gmra.mrb[0].mxu0 %v2429
      %v2502 = vpop.f32.mrb[0].mxu0
      %v2503 = vadd.f32 0.0, %v2502
      %v2504 = vpop.f32.mrb[0].mxu0
      %2505 = vdwg.mxu0
      %v2506 = vpack.c.bf16 %v2503, %v2498
      %s2507 = scalar_lea.vmem %s975, 8
      %v2508 = vld [vmem:[%s2507] sm:$0xf]
      %v2509 = vld [vmem:[%s2507 + $0x4] sm:$0xf]
      %v2512 = vunpack.c.l.b16 %v2508
      %v2513 = vunpack.c.l.b16 %v2509
      %v2514 = vpack.c.b16 %v2513, %v2512
      %v2517 = vsel %vm1824, %v2506, 0
      %2519 = vmatprep.subr.bf16.mxu0 0
      %2520 = vmatpush1.bf16.msra.mxu0 %v2514
      %2521 = vmatprep.subr.bf16.mxu0 0
      %2522 = vmatpush1.bf16.msra.mxu0 0
      %2523 = vmatprep.subr.bf16.mxu0 0
      %2524 = vmatpush1.bf16.msra.mxu0 0
      %2525 = vmatprep.subr.bf16.mxu0 0
      %2526 = vmatpush1.bf16.msra.mxu0 0
      %2527 = vmatprep.subr.bf16.mxu0 0
      %2528 = vmatpush1.bf16.msra.mxu0 0
      %2529 = vmatprep.subr.bf16.mxu0 0
      %2530 = vmatpush1.bf16.msra.mxu0 0
      %2531 = vmatprep.subr.bf16.mxu0 0
      %2532 = vmatpush1.bf16.msra.mxu0 0
      %2533 = vmatprep.subr.bf16.mxu0 0
      %2534 = vmatpush1.bf16.msra.mxu0 0
      %2535 = vmatprep.subr.bf16.mxu0 0
      %2536 = vmatpush1.bf16.msra.mxu0 0
      %2537 = vmatprep.subr.bf16.mxu0 0
      %2538 = vmatpush1.bf16.msra.mxu0 0
      %2539 = vmatprep.subr.bf16.mxu0 0
      %2540 = vmatpush1.bf16.msra.mxu0 0
      %2541 = vmatprep.subr.bf16.mxu0 0
      %2542 = vmatpush1.bf16.msra.mxu0 0
      %2543 = vmatprep.subr.bf16.mxu0 0
      %2544 = vmatpush1.bf16.msra.mxu0 0
      %2545 = vmatprep.subr.bf16.mxu0 0
      %2546 = vmatpush1.bf16.msra.mxu0 0
      %2547 = vmatprep.subr.bf16.mxu0 0
      %2548 = vmatpush1.bf16.msra.mxu0 0
      %2549 = vmatprep.subr.bf16.mxu0 0
      %2550 = vmatpush1.bf16.msra.mxu0 0
      %2551 = vmatprep.mubr.bf16.mxu0 0
      %2552 = vmatmul.mubr.bf16.gmra.mrb[0].mxu0 %v2517
      %v2553 = vpop.f32.mrb[0].mxu0
      %v2554 = vadd.f32 0.0, %v2553
      %v2555 = vpop.f32.mrb[0].mxu0
      %v2556 = vpop.f32.mrb[0].mxu0
      %v2557 = vadd.f32 0.0, %v2556
      %v2558 = vpop.f32.mrb[0].mxu0
      %2559 = vdwg.mxu0
      %v2560 = vadd.f32 %v2068, %v2554
      %v2561 = vadd.f32 %v2069, %v2557
      %s2562 = scalar_lea.vmem %s948, 64
      %v2563 = vld [vmem:[%s2562] sm:$0xf]
      %v2564 = vld [vmem:[%s2562 + $0x4] sm:$0xf]
      %v2565 = vld [vmem:[%s2562 + $0x8] sm:$0xf]
      %v2566 = vld [vmem:[%s2562 + $0xc] sm:$0xf]
      %v2567 = vld [vmem:[%s2562 + $0x10] sm:$0xf]
      %v2568 = vld [vmem:[%s2562 + $0x14] sm:$0xf]
      %v2569 = vld [vmem:[%s2562 + $0x18] sm:$0xf]
      %v2570 = vld [vmem:[%s2562 + $0x1c] sm:$0xf]
      %s2571 = scalar_lea.vmem %s962, 2
      %v2572 = vld [vmem:[%s2571] sm:$0x1]
      %v2574 = vlaneseq
      %v2575 = vshrl.u32 %v2574, 7
      %v2576 = vsub.s32 0, %v2575
      %v2577 = vrot.slane %v2572, %v2576
      %v2587 = vunpack.c.l.b16 %v2563
      %v2588 = vunpack.c.l.b16 %v2564
      %v2589 = vunpack.c.l.b16 %v2565
      %v2590 = vunpack.c.l.b16 %v2566
      %v2591 = vunpack.c.l.b16 %v2567
      %v2592 = vunpack.c.l.b16 %v2568
      %v2593 = vunpack.c.l.b16 %v2569
      %v2594 = vunpack.c.l.b16 %v2570
      %v2595 = vpack.c.b16 %v2588, %v2587
      %v2596 = vpack.c.b16 %v2590, %v2589
      %v2597 = vpack.c.b16 %v2592, %v2591
      %v2598 = vpack.c.b16 %v2594, %v2593
      %2603 = vmatprep.subr.bf16.mxu0 0
      %2604 = vmatpush1.bf16.msra.mxu0 %v2595
      %2605 = vmatprep.subr.bf16.mxu0 0
      %2606 = vmatpush1.bf16.msra.mxu0 %v2596
      %2607 = vmatprep.subr.bf16.mxu0 0
      %2608 = vmatpush1.bf16.msra.mxu0 %v2597
      %2609 = vmatprep.subr.bf16.mxu0 0
      %2610 = vmatpush1.bf16.msra.mxu0 %v2598
      %2611 = vmatprep.subr.bf16.mxu0 0
      %2612 = vmatpush1.bf16.msra.mxu0 0
      %2613 = vmatprep.subr.bf16.mxu0 0
      %2614 = vmatpush1.bf16.msra.mxu0 0
      %2615 = vmatprep.subr.bf16.mxu0 0
      %2616 = vmatpush1.bf16.msra.mxu0 0
      %2617 = vmatprep.subr.bf16.mxu0 0
      %2618 = vmatpush1.bf16.msra.mxu0 0
      %2619 = vmatprep.subr.bf16.mxu0 0
      %2620 = vmatpush1.bf16.msra.mxu0 0
      %2621 = vmatprep.subr.bf16.mxu0 0
      %2622 = vmatpush1.bf16.msra.mxu0 0
      %2623 = vmatprep.subr.bf16.mxu0 0
      %2624 = vmatpush1.bf16.msra.mxu0 0
      %2625 = vmatprep.subr.bf16.mxu0 0
      %2626 = vmatpush1.bf16.msra.mxu0 0
      %2627 = vmatprep.subr.bf16.mxu0 0
      %2628 = vmatpush1.bf16.msra.mxu0 0
      %2629 = vmatprep.subr.bf16.mxu0 0
      %2630 = vmatpush1.bf16.msra.mxu0 0
      %2631 = vmatprep.subr.bf16.mxu0 0
      %2632 = vmatpush1.bf16.msra.mxu0 0
      %2633 = vmatprep.subr.bf16.mxu0 0
      %2634 = vmatpush1.bf16.msra.mxu0 0
      %2635 = vmatprep.mubr.bf16.mxu0 0
      %2636 = vmatmul.mubr.bf16.gmra.mrb[0].mxu0 %v1621
      %v2637 = vpop.f32.mrb[0].mxu0
      %v2638 = vadd.f32 %v2577, %v2637
      %v2639 = vpop.f32.mrb[0].mxu0
      %v2640 = vpop.f32.mrb[0].mxu0
      %v2641 = vadd.f32 %v2577, %v2640
      %v2642 = vpop.f32.mrb[0].mxu0
      %2643 = vdwg.mxu0
      %s2644 = scalar_lea.vmem %s953, 64
      %v2645 = vld [vmem:[%s2644] sm:$0xf]
      %v2646 = vld [vmem:[%s2644 + $0x4] sm:$0xf]
      %v2647 = vld [vmem:[%s2644 + $0x8] sm:$0xf]
      %v2648 = vld [vmem:[%s2644 + $0xc] sm:$0xf]
      %v2649 = vld [vmem:[%s2644 + $0x10] sm:$0xf]
      %v2650 = vld [vmem:[%s2644 + $0x14] sm:$0xf]
      %v2651 = vld [vmem:[%s2644 + $0x18] sm:$0xf]
      %v2652 = vld [vmem:[%s2644 + $0x1c] sm:$0xf]
      %s2653 = scalar_lea.vmem %s966, 2
      %v2654 = vld [vmem:[%s2653] sm:$0x1]
      %v2656 = vlaneseq
      %v2657 = vshrl.u32 %v2656, 7
      %v2658 = vsub.s32 0, %v2657
      %v2659 = vrot.slane %v2654, %v2658
      %v2669 = vunpack.c.l.b16 %v2645
      %v2670 = vunpack.c.l.b16 %v2646
      %v2671 = vunpack.c.l.b16 %v2647
      %v2672 = vunpack.c.l.b16 %v2648
      %v2673 = vunpack.c.l.b16 %v2649
      %v2674 = vunpack.c.l.b16 %v2650
      %v2675 = vunpack.c.l.b16 %v2651
      %v2676 = vunpack.c.l.b16 %v2652
      %v2677 = vpack.c.b16 %v2670, %v2669
      %v2678 = vpack.c.b16 %v2672, %v2671
      %v2679 = vpack.c.b16 %v2674, %v2673
      %v2680 = vpack.c.b16 %v2676, %v2675
      %2685 = vmatprep.subr.bf16.mxu0 0
      %2686 = vmatpush1.bf16.msra.mxu0 %v2677
      %2687 = vmatprep.subr.bf16.mxu0 0
      %2688 = vmatpush1.bf16.msra.mxu0 %v2678
      %2689 = vmatprep.subr.bf16.mxu0 0
      %2690 = vmatpush1.bf16.msra.mxu0 %v2679
      %2691 = vmatprep.subr.bf16.mxu0 0
      %2692 = vmatpush1.bf16.msra.mxu0 %v2680
      %2693 = vmatprep.subr.bf16.mxu0 0
      %2694 = vmatpush1.bf16.msra.mxu0 0
      %2695 = vmatprep.subr.bf16.mxu0 0
      %2696 = vmatpush1.bf16.msra.mxu0 0
      %2697 = vmatprep.subr.bf16.mxu0 0
      %2698 = vmatpush1.bf16.msra.mxu0 0
      %2699 = vmatprep.subr.bf16.mxu0 0
      %2700 = vmatpush1.bf16.msra.mxu0 0
      %2701 = vmatprep.subr.bf16.mxu0 0
      %2702 = vmatpush1.bf16.msra.mxu0 0
      %2703 = vmatprep.subr.bf16.mxu0 0
      %2704 = vmatpush1.bf16.msra.mxu0 0
      %2705 = vmatprep.subr.bf16.mxu0 0
      %2706 = vmatpush1.bf16.msra.mxu0 0
      %2707 = vmatprep.subr.bf16.mxu0 0
      %2708 = vmatpush1.bf16.msra.mxu0 0
      %2709 = vmatprep.subr.bf16.mxu0 0
      %2710 = vmatpush1.bf16.msra.mxu0 0
      %2711 = vmatprep.subr.bf16.mxu0 0
      %2712 = vmatpush1.bf16.msra.mxu0 0
      %2713 = vmatprep.subr.bf16.mxu0 0
      %2714 = vmatpush1.bf16.msra.mxu0 0
      %2715 = vmatprep.subr.bf16.mxu0 0
      %2716 = vmatpush1.bf16.msra.mxu0 0
      %2717 = vmatprep.mubr.bf16.mxu0 0
      %2718 = vmatmul.mubr.bf16.gmra.mrb[0].mxu0 %v1621
      %v2719 = vpop.f32.mrb[0].mxu0
      %v2720 = vadd.f32 %v2659, %v2719
      %v2721 = vpop.f32.mrb[0].mxu0
      %v2722 = vpop.f32.mrb[0].mxu0
      %v2723 = vadd.f32 %v2659, %v2722
      %v2724 = vpop.f32.mrb[0].mxu0
      %2725 = vdwg.mxu0
      %s2726 = scalar_lea.vmem %s958, 64
      %v2727 = vld [vmem:[%s2726] sm:$0xf]
      %v2728 = vld [vmem:[%s2726 + $0x4] sm:$0xf]
      %v2729 = vld [vmem:[%s2726 + $0x8] sm:$0xf]
      %v2730 = vld [vmem:[%s2726 + $0xc] sm:$0xf]
      %v2731 = vld [vmem:[%s2726 + $0x10] sm:$0xf]
      %v2732 = vld [vmem:[%s2726 + $0x14] sm:$0xf]
      %v2733 = vld [vmem:[%s2726 + $0x18] sm:$0xf]
      %v2734 = vld [vmem:[%s2726 + $0x1c] sm:$0xf]
      %s2735 = scalar_lea.vmem %s970, 2
      %v2736 = vld [vmem:[%s2735] sm:$0x1]
      %v2738 = vlaneseq
      %v2739 = vshrl.u32 %v2738, 7
      %v2740 = vsub.s32 0, %v2739
      %v2741 = vrot.slane %v2736, %v2740
      %v2751 = vunpack.c.l.b16 %v2727
      %v2752 = vunpack.c.l.b16 %v2728
      %v2753 = vunpack.c.l.b16 %v2729
      %v2754 = vunpack.c.l.b16 %v2730
      %v2755 = vunpack.c.l.b16 %v2731
      %v2756 = vunpack.c.l.b16 %v2732
      %v2757 = vunpack.c.l.b16 %v2733
      %v2758 = vunpack.c.l.b16 %v2734
      %v2759 = vpack.c.b16 %v2752, %v2751
      %v2760 = vpack.c.b16 %v2754, %v2753
      %v2761 = vpack.c.b16 %v2756, %v2755
      %v2762 = vpack.c.b16 %v2758, %v2757
      %2767 = vmatprep.subr.bf16.mxu0 0
      %2768 = vmatpush1.bf16.msra.mxu0 %v2759
      %2769 = vmatprep.subr.bf16.mxu0 0
      %2770 = vmatpush1.bf16.msra.mxu0 %v2760
      %2771 = vmatprep.subr.bf16.mxu0 0
      %2772 = vmatpush1.bf16.msra.mxu0 %v2761
      %2773 = vmatprep.subr.bf16.mxu0 0
      %2774 = vmatpush1.bf16.msra.mxu0 %v2762
      %2775 = vmatprep.subr.bf16.mxu0 0
      %2776 = vmatpush1.bf16.msra.mxu0 0
      %2777 = vmatprep.subr.bf16.mxu0 0
      %2778 = vmatpush1.bf16.msra.mxu0 0
      %2779 = vmatprep.subr.bf16.mxu0 0
      %2780 = vmatpush1.bf16.msra.mxu0 0
      %2781 = vmatprep.subr.bf16.mxu0 0
      %2782 = vmatpush1.bf16.msra.mxu0 0
      %2783 = vmatprep.subr.bf16.mxu0 0
      %2784 = vmatpush1.bf16.msra.mxu0 0
      %2785 = vmatprep.subr.bf16.mxu0 0
      %2786 = vmatpush1.bf16.msra.mxu0 0
      %2787 = vmatprep.subr.bf16.mxu0 0
      %2788 = vmatpush1.bf16.msra.mxu0 0
      %2789 = vmatprep.subr.bf16.mxu0 0
      %2790 = vmatpush1.bf16.msra.mxu0 0
      %2791 = vmatprep.subr.bf16.mxu0 0
      %2792 = vmatpush1.bf16.msra.mxu0 0
      %2793 = vmatprep.subr.bf16.mxu0 0
      %2794 = vmatpush1.bf16.msra.mxu0 0
      %2795 = vmatprep.subr.bf16.mxu0 0
      %2796 = vmatpush1.bf16.msra.mxu0 0
      %2797 = vmatprep.subr.bf16.mxu0 0
      %2798 = vmatpush1.bf16.msra.mxu0 0
      %2799 = vmatprep.mubr.bf16.mxu0 0
      %2800 = vmatmul.mubr.bf16.gmra.mrb[0].mxu0 %v1621
      %v2801 = vpop.f32.mrb[0].mxu0
      %v2802 = vadd.f32 %v2741, %v2801
      %v2803 = vpop.f32.mrb[0].mxu0
      %v2804 = vpop.f32.mrb[0].mxu0
      %v2805 = vadd.f32 %v2741, %v2804
      %v2806 = vpop.f32.mrb[0].mxu0
      %2807 = vdwg.mxu0
      %v2809 = vsel %vm1824, %v2638, 0
      %v2812 = vsel %vm1824, %v2641, 0
      %v2815 = vsel %vm1824, %v2720, 0
      %v2818 = vsel %vm1824, %v2723, 0
      %2820 = vmatprep.subr.mxu0 0.0
      %2821 = vmatpush1.xpose.msra.mxu0 %v2815
      %2822 = vmatprep.subr.mxu0 0.0
      %2823 = vmatpush1.xpose.msra.mxu0 %v2818
      %2824 = vmatprep.subr.mxu0 0.0
      %2825 = vmatpush1.xpose.msra.mxu0 0.0
      %2826 = vmatprep.subr.mxu0 0.0
      %2827 = vmatpush1.xpose.msra.mxu0 0.0
      %2828 = vmatprep.subr.mxu0 0.0
      %2829 = vmatpush1.xpose.msra.mxu0 0.0
      %2830 = vmatprep.subr.mxu0 0.0
      %2831 = vmatpush1.xpose.msra.mxu0 0.0
      %2832 = vmatprep.subr.mxu0 0.0
      %2833 = vmatpush1.xpose.msra.mxu0 0.0
      %2834 = vmatprep.subr.mxu0 0.0
      %2835 = vmatpush1.xpose.msra.mxu0 0.0
      %2836 = vmatprep.subr.mxu0 0.0
      %2837 = vmatpush1.xpose.msra.mxu0 0.0
      %2838 = vmatprep.subr.mxu0 0.0
      %2839 = vmatpush1.xpose.msra.mxu0 0.0
      %2840 = vmatprep.subr.mxu0 0.0
      %2841 = vmatpush1.xpose.msra.mxu0 0.0
      %2842 = vmatprep.subr.mxu0 0.0
      %2843 = vmatpush1.xpose.msra.mxu0 0.0
      %2844 = vmatprep.subr.mxu0 0.0
      %2845 = vmatpush1.xpose.msra.mxu0 0.0
      %2846 = vmatprep.subr.mxu0 0.0
      %2847 = vmatpush1.xpose.msra.mxu0 0.0
      %2848 = vmatprep.subr.mxu0 0.0
      %2849 = vmatpush1.xpose.msra.mxu0 0.0
      %2850 = vmatprep.subr.mxu0 0.0
      %2851 = vmatpush1.xpose.msra.mxu0 0.0
      %2852 = vmatprep.subr.mxu0 0.0
      %2853 = vmatpush1.xpose.msra.mxu0 0.0
      %2854 = vmatprep.subr.mxu0 0.0
      %2855 = vmatpush1.xpose.msra.mxu0 0.0
      %2856 = vmatprep.subr.mxu0 0.0
      %2857 = vmatpush1.xpose.msra.mxu0 0.0
      %2858 = vmatprep.subr.mxu0 0.0
      %2859 = vmatpush1.xpose.msra.mxu0 0.0
      %2860 = vmatprep.subr.mxu0 0.0
      %2861 = vmatpush1.xpose.msra.mxu0 0.0
      %2862 = vmatprep.subr.mxu0 0.0
      %2863 = vmatpush1.xpose.msra.mxu0 0.0
      %2864 = vmatprep.subr.mxu0 0.0
      %2865 = vmatpush1.xpose.msra.mxu0 0.0
      %2866 = vmatprep.subr.mxu0 0.0
      %2867 = vmatpush1.xpose.msra.mxu0 0.0
      %2868 = vmatprep.subr.mxu0 0.0
      %2869 = vmatpush1.xpose.msra.mxu0 0.0
      %2870 = vmatprep.subr.mxu0 0.0
      %2871 = vmatpush1.xpose.msra.mxu0 0.0
      %2872 = vmatprep.subr.mxu0 0.0
      %2873 = vmatpush1.xpose.msra.mxu0 0.0
      %2874 = vmatprep.subr.mxu0 0.0
      %2875 = vmatpush1.xpose.msra.mxu0 0.0
      %2876 = vmatprep.subr.mxu0 0.0
      %2877 = vmatpush1.xpose.msra.mxu0 0.0
      %2878 = vmatprep.subr.mxu0 0.0
      %2879 = vmatpush1.xpose.msra.mxu0 0.0
      %2880 = vmatprep.subr.mxu0 0.0
      %2881 = vmatpush1.xpose.msra.mxu0 0.0
      %2882 = vmatprep.subr.mxu0 0.0
      %2883 = vmatpush1.xpose.msra.mxu0 0.0
      %2884 = vmatprep.mubr.f32.mxu0 0.0
      %2885 = vmatmul.mubr.f32.gmra.mrb[0].mxu0 %v2809
      %v2886 = vpop.f32.mrb[0].mxu0
      %v2887 = vadd.f32 %v1530, %v2886
      %v2888 = vpop.f32.mrb[0].mxu0
      %2889 = vmatprep.mubr.f32.mxu0 0.0
      %2890 = vmatmul.mubr.f32.gmra.mrb[0].mxu0 %v2812
      %v2891 = vpop.f32.mrb[0].mxu0
      %v2892 = vadd.f32 %v1531, %v2891
      %v2893 = vpop.f32.mrb[0].mxu0
      %2894 = vdwg.mxu0
      %v2895 = vsel %vm1824, %v2887, -inf
      %2896 = vmax.xlane.f32.xlu0 %v2895
      %v2897 = vpop.xlane.xlu0 %2896
      %v2898 = vsel %vm1824, %v2892, -inf
      %2899 = vmax.xlane.f32.xlu0 %v2898
      %v2900 = vpop.xlane.xlu0 %2899
      %v2901 = vsub.f32 %v2887, %v2897
      %v2902 = vsub.f32 %v2892, %v2900
      %v2903 = vmul.f32 %v2901, 1.442695
      %v2904 = vpow.pop %v2903
      %v2905 = vmul.f32 %v2902, 1.442695
      %v2906 = vpow.pop %v2905
      %v2907 = vsel %vm1824, %v2904, 0.0
      %2908 = vadd.xlane.f32.xlu0 %v2907
      %v2909 = vpop.xlane.xlu0 %2908
      %v2910 = vsel %vm1824, %v2906, 0.0
      %2911 = vadd.xlane.f32.xlu0 %v2910
      %v2912 = vpop.xlane.xlu0 %2911
      %v2913 = vrcp.pop %v2909
      %v2914 = vrcp.pop %v2912
      %v2915 = vmul.f32 %v2904, %v2913
      %v2916 = vmul.f32 %v2906, %v2914
      %v2918 = vsel %vm1824, %v2915, 0
      %v2921 = vsel %vm1824, %v2916, 0
      %2923 = vmatprep.subr.mxu0 0.0
      %2924 = vmatpush1.msra.mxu0 %v2802
      %2925 = vmatprep.subr.mxu0 0.0
      %2926 = vmatpush1.msra.mxu0 %v2805
      %2927 = vmatprep.subr.mxu0 0.0
      %2928 = vmatpush1.msra.mxu0 0.0
      %2929 = vmatprep.subr.mxu0 0.0
      %2930 = vmatpush1.msra.mxu0 0.0
      %2931 = vmatprep.subr.mxu0 0.0
      %2932 = vmatpush1.msra.mxu0 0.0
      %2933 = vmatprep.subr.mxu0 0.0
      %2934 = vmatpush1.msra.mxu0 0.0
      %2935 = vmatprep.subr.mxu0 0.0
      %2936 = vmatpush1.msra.mxu0 0.0
      %2937 = vmatprep.subr.mxu0 0.0
      %2938 = vmatpush1.msra.mxu0 0.0
      %2939 = vmatprep.subr.mxu0 0.0
      %2940 = vmatpush1.msra.mxu0 0.0
      %2941 = vmatprep.subr.mxu0 0.0
      %2942 = vmatpush1.msra.mxu0 0.0
      %2943 = vmatprep.subr.mxu0 0.0
      %2944 = vmatpush1.msra.mxu0 0.0
      %2945 = vmatprep.subr.mxu0 0.0
      %2946 = vmatpush1.msra.mxu0 0.0
      %2947 = vmatprep.subr.mxu0 0.0
      %2948 = vmatpush1.msra.mxu0 0.0
      %2949 = vmatprep.subr.mxu0 0.0
      %2950 = vmatpush1.msra.mxu0 0.0
      %2951 = vmatprep.subr.mxu0 0.0
      %2952 = vmatpush1.msra.mxu0 0.0
      %2953 = vmatprep.subr.mxu0 0.0
      %2954 = vmatpush1.msra.mxu0 0.0
      %2955 = vmatprep.subr.mxu0 0.0
      %2956 = vmatpush1.msra.mxu0 0.0
      %2957 = vmatprep.subr.mxu0 0.0
      %2958 = vmatpush1.msra.mxu0 0.0
      %2959 = vmatprep.subr.mxu0 0.0
      %2960 = vmatpush1.msra.mxu0 0.0
      %2961 = vmatprep.subr.mxu0 0.0
      %2962 = vmatpush1.msra.mxu0 0.0
      %2963 = vmatprep.subr.mxu0 0.0
      %2964 = vmatpush1.msra.mxu0 0.0
      %2965 = vmatprep.subr.mxu0 0.0
      %2966 = vmatpush1.msra.mxu0 0.0
      %2967 = vmatprep.subr.mxu0 0.0
      %2968 = vmatpush1.msra.mxu0 0.0
      %2969 = vmatprep.subr.mxu0 0.0
      %2970 = vmatpush1.msra.mxu0 0.0
      %2971 = vmatprep.subr.mxu0 0.0
      %2972 = vmatpush1.msra.mxu0 0.0
      %2973 = vmatprep.subr.mxu0 0.0
      %2974 = vmatpush1.msra.mxu0 0.0
      %2975 = vmatprep.subr.mxu0 0.0
      %2976 = vmatpush1.msra.mxu0 0.0
      %2977 = vmatprep.subr.mxu0 0.0
      %2978 = vmatpush1.msra.mxu0 0.0
      %2979 = vmatprep.subr.mxu0 0.0
      %2980 = vmatpush1.msra.mxu0 0.0
      %2981 = vmatprep.subr.mxu0 0.0
      %2982 = vmatpush1.msra.mxu0 0.0
      %2983 = vmatprep.subr.mxu0 0.0
      %2984 = vmatpush1.msra.mxu0 0.0
      %2985 = vmatprep.subr.mxu0 0.0
      %2986 = vmatpush1.msra.mxu0 0.0
      %2987 = vmatprep.mubr.f32.mxu0 0.0
      %2988 = vmatmul.mubr.f32.gmra.mrb[0].mxu0 %v2918
      %v2989 = vpop.f32.mrb[0].mxu0
      %v2990 = vadd.f32 0.0, %v2989
      %v2991 = vpop.f32.mrb[0].mxu0
      %2992 = vmatprep.mubr.f32.mxu0 0.0
      %2993 = vmatmul.mubr.f32.gmra.mrb[0].mxu0 %v2921
      %v2994 = vpop.f32.mrb[0].mxu0
      %v2995 = vadd.f32 0.0, %v2994
      %v2996 = vpop.f32.mrb[0].mxu0
      %2997 = vdwg.mxu0
      %v2998 = vpack.c.bf16 %v2995, %v2990
      %s2999 = scalar_lea.vmem %s975, 16
      %v3000 = vld [vmem:[%s2999] sm:$0xf]
      %v3001 = vld [vmem:[%s2999 + $0x4] sm:$0xf]
      %v3004 = vunpack.c.l.b16 %v3000
      %v3005 = vunpack.c.l.b16 %v3001
      %v3006 = vpack.c.b16 %v3005, %v3004
      %v3009 = vsel %vm1824, %v2998, 0
      %3011 = vmatprep.subr.bf16.mxu0 0
      %3012 = vmatpush1.bf16.msra.mxu0 %v3006
      %3013 = vmatprep.subr.bf16.mxu0 0
      %3014 = vmatpush1.bf16.msra.mxu0 0
      %3015 = vmatprep.subr.bf16.mxu0 0
      %3016 = vmatpush1.bf16.msra.mxu0 0
      %3017 = vmatprep.subr.bf16.mxu0 0
      %3018 = vmatpush1.bf16.msra.mxu0 0
      %3019 = vmatprep.subr.bf16.mxu0 0
      %3020 = vmatpush1.bf16.msra.mxu0 0
      %3021 = vmatprep.subr.bf16.mxu0 0
      %3022 = vmatpush1.bf16.msra.mxu0 0
      %3023 = vmatprep.subr.bf16.mxu0 0
      %3024 = vmatpush1.bf16.msra.mxu0 0
      %3025 = vmatprep.subr.bf16.mxu0 0
      %3026 = vmatpush1.bf16.msra.mxu0 0
      %3027 = vmatprep.subr.bf16.mxu0 0
      %3028 = vmatpush1.bf16.msra.mxu0 0
      %3029 = vmatprep.subr.bf16.mxu0 0
      %3030 = vmatpush1.bf16.msra.mxu0 0
      %3031 = vmatprep.subr.bf16.mxu0 0
      %3032 = vmatpush1.bf16.msra.mxu0 0
      %3033 = vmatprep.subr.bf16.mxu0 0
      %3034 = vmatpush1.bf16.msra.mxu0 0
      %3035 = vmatprep.subr.bf16.mxu0 0
      %3036 = vmatpush1.bf16.msra.mxu0 0
      %3037 = vmatprep.subr.bf16.mxu0 0
      %3038 = vmatpush1.bf16.msra.mxu0 0
      %3039 = vmatprep.subr.bf16.mxu0 0
      %3040 = vmatpush1.bf16.msra.mxu0 0
      %3041 = vmatprep.subr.bf16.mxu0 0
      %3042 = vmatpush1.bf16.msra.mxu0 0
      %3043 = vmatprep.mubr.bf16.mxu0 0
      %3044 = vmatmul.mubr.bf16.gmra.mrb[0].mxu0 %v3009
      %v3045 = vpop.f32.mrb[0].mxu0
      %v3046 = vadd.f32 0.0, %v3045
      %v3047 = vpop.f32.mrb[0].mxu0
      %v3048 = vpop.f32.mrb[0].mxu0
      %v3049 = vadd.f32 0.0, %v3048
      %v3050 = vpop.f32.mrb[0].mxu0
      %3051 = vdwg.mxu0
      %v3052 = vadd.f32 %v2560, %v3046
      %v3053 = vadd.f32 %v2561, %v3049
      %s3054 = scalar_lea.vmem %s948, 96
      %v3055 = vld [vmem:[%s3054] sm:$0xf]
      %v3056 = vld [vmem:[%s3054 + $0x4] sm:$0xf]
      %v3057 = vld [vmem:[%s3054 + $0x8] sm:$0xf]
      %v3058 = vld [vmem:[%s3054 + $0xc] sm:$0xf]
      %v3059 = vld [vmem:[%s3054 + $0x10] sm:$0xf]
      %v3060 = vld [vmem:[%s3054 + $0x14] sm:$0xf]
      %v3061 = vld [vmem:[%s3054 + $0x18] sm:$0xf]
      %v3062 = vld [vmem:[%s3054 + $0x1c] sm:$0xf]
      %s3063 = scalar_lea.vmem %s962, 3
      %v3064 = vld [vmem:[%s3063] sm:$0x1]
      %v3066 = vlaneseq
      %v3067 = vshrl.u32 %v3066, 7
      %v3068 = vsub.s32 0, %v3067
      %v3069 = vrot.slane %v3064, %v3068
      %v3079 = vunpack.c.l.b16 %v3055
      %v3080 = vunpack.c.l.b16 %v3056
      %v3081 = vunpack.c.l.b16 %v3057
      %v3082 = vunpack.c.l.b16 %v3058
      %v3083 = vunpack.c.l.b16 %v3059
      %v3084 = vunpack.c.l.b16 %v3060
      %v3085 = vunpack.c.l.b16 %v3061
      %v3086 = vunpack.c.l.b16 %v3062
      %v3087 = vpack.c.b16 %v3080, %v3079
      %v3088 = vpack.c.b16 %v3082, %v3081
      %v3089 = vpack.c.b16 %v3084, %v3083
      %v3090 = vpack.c.b16 %v3086, %v3085
      %3095 = vmatprep.subr.bf16.mxu0 0
      %3096 = vmatpush1.bf16.msra.mxu0 %v3087
      %3097 = vmatprep.subr.bf16.mxu0 0
      %3098 = vmatpush1.bf16.msra.mxu0 %v3088
      %3099 = vmatprep.subr.bf16.mxu0 0
      %3100 = vmatpush1.bf16.msra.mxu0 %v3089
      %3101 = vmatprep.subr.bf16.mxu0 0
      %3102 = vmatpush1.bf16.msra.mxu0 %v3090
      %3103 = vmatprep.subr.bf16.mxu0 0
      %3104 = vmatpush1.bf16.msra.mxu0 0
      %3105 = vmatprep.subr.bf16.mxu0 0
      %3106 = vmatpush1.bf16.msra.mxu0 0
      %3107 = vmatprep.subr.bf16.mxu0 0
      %3108 = vmatpush1.bf16.msra.mxu0 0
      %3109 = vmatprep.subr.bf16.mxu0 0
      %3110 = vmatpush1.bf16.msra.mxu0 0
      %3111 = vmatprep.subr.bf16.mxu0 0
      %3112 = vmatpush1.bf16.msra.mxu0 0
      %3113 = vmatprep.subr.bf16.mxu0 0
      %3114 = vmatpush1.bf16.msra.mxu0 0
      %3115 = vmatprep.subr.bf16.mxu0 0
      %3116 = vmatpush1.bf16.msra.mxu0 0
      %3117 = vmatprep.subr.bf16.mxu0 0
      %3118 = vmatpush1.bf16.msra.mxu0 0
      %3119 = vmatprep.subr.bf16.mxu0 0
      %3120 = vmatpush1.bf16.msra.mxu0 0
      %3121 = vmatprep.subr.bf16.mxu0 0
      %3122 = vmatpush1.bf16.msra.mxu0 0
      %3123 = vmatprep.subr.bf16.mxu0 0
      %3124 = vmatpush1.bf16.msra.mxu0 0
      %3125 = vmatprep.subr.bf16.mxu0 0
      %3126 = vmatpush1.bf16.msra.mxu0 0
      %3127 = vmatprep.mubr.bf16.mxu0 0
      %3128 = vmatmul.mubr.bf16.gmra.mrb[0].mxu0 %v1621
      %v3129 = vpop.f32.mrb[0].mxu0
      %v3130 = vadd.f32 %v3069, %v3129
      %v3131 = vpop.f32.mrb[0].mxu0
      %v3132 = vpop.f32.mrb[0].mxu0
      %v3133 = vadd.f32 %v3069, %v3132
      %v3134 = vpop.f32.mrb[0].mxu0
      %3135 = vdwg.mxu0
      %s3136 = scalar_lea.vmem %s953, 96
      %v3137 = vld [vmem:[%s3136] sm:$0xf]
      %v3138 = vld [vmem:[%s3136 + $0x4] sm:$0xf]
      %v3139 = vld [vmem:[%s3136 + $0x8] sm:$0xf]
      %v3140 = vld [vmem:[%s3136 + $0xc] sm:$0xf]
      %v3141 = vld [vmem:[%s3136 + $0x10] sm:$0xf]
      %v3142 = vld [vmem:[%s3136 + $0x14] sm:$0xf]
      %v3143 = vld [vmem:[%s3136 + $0x18] sm:$0xf]
      %v3144 = vld [vmem:[%s3136 + $0x1c] sm:$0xf]
      %s3145 = scalar_lea.vmem %s966, 3
      %v3146 = vld [vmem:[%s3145] sm:$0x1]
      %v3148 = vlaneseq
      %v3149 = vshrl.u32 %v3148, 7
      %v3150 = vsub.s32 0, %v3149
      %v3151 = vrot.slane %v3146, %v3150
      %v3161 = vunpack.c.l.b16 %v3137
      %v3162 = vunpack.c.l.b16 %v3138
      %v3163 = vunpack.c.l.b16 %v3139
      %v3164 = vunpack.c.l.b16 %v3140
      %v3165 = vunpack.c.l.b16 %v3141
      %v3166 = vunpack.c.l.b16 %v3142
      %v3167 = vunpack.c.l.b16 %v3143
      %v3168 = vunpack.c.l.b16 %v3144
      %v3169 = vpack.c.b16 %v3162, %v3161
      %v3170 = vpack.c.b16 %v3164, %v3163
      %v3171 = vpack.c.b16 %v3166, %v3165
      %v3172 = vpack.c.b16 %v3168, %v3167
      %3177 = vmatprep.subr.bf16.mxu0 0
      %3178 = vmatpush1.bf16.msra.mxu0 %v3169
      %3179 = vmatprep.subr.bf16.mxu0 0
      %3180 = vmatpush1.bf16.msra.mxu0 %v3170
      %3181 = vmatprep.subr.bf16.mxu0 0
      %3182 = vmatpush1.bf16.msra.mxu0 %v3171
      %3183 = vmatprep.subr.bf16.mxu0 0
      %3184 = vmatpush1.bf16.msra.mxu0 %v3172
      %3185 = vmatprep.subr.bf16.mxu0 0
      %3186 = vmatpush1.bf16.msra.mxu0 0
      %3187 = vmatprep.subr.bf16.mxu0 0
      %3188 = vmatpush1.bf16.msra.mxu0 0
      %3189 = vmatprep.subr.bf16.mxu0 0
      %3190 = vmatpush1.bf16.msra.mxu0 0
      %3191 = vmatprep.subr.bf16.mxu0 0
      %3192 = vmatpush1.bf16.msra.mxu0 0
      %3193 = vmatprep.subr.bf16.mxu0 0
      %3194 = vmatpush1.bf16.msra.mxu0 0
      %3195 = vmatprep.subr.bf16.mxu0 0
      %3196 = vmatpush1.bf16.msra.mxu0 0
      %3197 = vmatprep.subr.bf16.mxu0 0
      %3198 = vmatpush1.bf16.msra.mxu0 0
      %3199 = vmatprep.subr.bf16.mxu0 0
      %3200 = vmatpush1.bf16.msra.mxu0 0
      %3201 = vmatprep.subr.bf16.mxu0 0
      %3202 = vmatpush1.bf16.msra.mxu0 0
      %3203 = vmatprep.subr.bf16.mxu0 0
      %3204 = vmatpush1.bf16.msra.mxu0 0
      %3205 = vmatprep.subr.bf16.mxu0 0
      %3206 = vmatpush1.bf16.msra.mxu0 0
      %3207 = vmatprep.subr.bf16.mxu0 0
      %3208 = vmatpush1.bf16.msra.mxu0 0
      %3209 = vmatprep.mubr.bf16.mxu0 0
      %3210 = vmatmul.mubr.bf16.gmra.mrb[0].mxu0 %v1621
      %v3211 = vpop.f32.mrb[0].mxu0
      %v3212 = vadd.f32 %v3151, %v3211
      %v3213 = vpop.f32.mrb[0].mxu0
      %v3214 = vpop.f32.mrb[0].mxu0
      %v3215 = vadd.f32 %v3151, %v3214
      %v3216 = vpop.f32.mrb[0].mxu0
      %3217 = vdwg.mxu0
      %s3218 = scalar_lea.vmem %s958, 96
      %v3219 = vld [vmem:[%s3218] sm:$0xf]
      %v3220 = vld [vmem:[%s3218 + $0x4] sm:$0xf]
      %v3221 = vld [vmem:[%s3218 + $0x8] sm:$0xf]
      %v3222 = vld [vmem:[%s3218 + $0xc] sm:$0xf]
      %v3223 = vld [vmem:[%s3218 + $0x10] sm:$0xf]
      %v3224 = vld [vmem:[%s3218 + $0x14] sm:$0xf]
      %v3225 = vld [vmem:[%s3218 + $0x18] sm:$0xf]
      %v3226 = vld [vmem:[%s3218 + $0x1c] sm:$0xf]
      %s3227 = scalar_lea.vmem %s970, 3
      %v3228 = vld [vmem:[%s3227] sm:$0x1]
      %v3230 = vlaneseq
      %v3231 = vshrl.u32 %v3230, 7
      %v3232 = vsub.s32 0, %v3231
      %v3233 = vrot.slane %v3228, %v3232
      %v3243 = vunpack.c.l.b16 %v3219
      %v3244 = vunpack.c.l.b16 %v3220
      %v3245 = vunpack.c.l.b16 %v3221
      %v3246 = vunpack.c.l.b16 %v3222
      %v3247 = vunpack.c.l.b16 %v3223
      %v3248 = vunpack.c.l.b16 %v3224
      %v3249 = vunpack.c.l.b16 %v3225
      %v3250 = vunpack.c.l.b16 %v3226
      %v3251 = vpack.c.b16 %v3244, %v3243
      %v3252 = vpack.c.b16 %v3246, %v3245
      %v3253 = vpack.c.b16 %v3248, %v3247
      %v3254 = vpack.c.b16 %v3250, %v3249
      %3259 = vmatprep.subr.bf16.mxu0 0
      %3260 = vmatpush1.bf16.msra.mxu0 %v3251
      %3261 = vmatprep.subr.bf16.mxu0 0
      %3262 = vmatpush1.bf16.msra.mxu0 %v3252
      %3263 = vmatprep.subr.bf16.mxu0 0
      %3264 = vmatpush1.bf16.msra.mxu0 %v3253
      %3265 = vmatprep.subr.bf16.mxu0 0
      %3266 = vmatpush1.bf16.msra.mxu0 %v3254
      %3267 = vmatprep.subr.bf16.mxu0 0
      %3268 = vmatpush1.bf16.msra.mxu0 0
      %3269 = vmatprep.subr.bf16.mxu0 0
      %3270 = vmatpush1.bf16.msra.mxu0 0
      %3271 = vmatprep.subr.bf16.mxu0 0
      %3272 = vmatpush1.bf16.msra.mxu0 0
      %3273 = vmatprep.subr.bf16.mxu0 0
      %3274 = vmatpush1.bf16.msra.mxu0 0
      %3275 = vmatprep.subr.bf16.mxu0 0
      %3276 = vmatpush1.bf16.msra.mxu0 0
      %3277 = vmatprep.subr.bf16.mxu0 0
      %3278 = vmatpush1.bf16.msra.mxu0 0
      %3279 = vmatprep.subr.bf16.mxu0 0
      %3280 = vmatpush1.bf16.msra.mxu0 0
      %3281 = vmatprep.subr.bf16.mxu0 0
      %3282 = vmatpush1.bf16.msra.mxu0 0
      %3283 = vmatprep.subr.bf16.mxu0 0
      %3284 = vmatpush1.bf16.msra.mxu0 0
      %3285 = vmatprep.subr.bf16.mxu0 0
      %3286 = vmatpush1.bf16.msra.mxu0 0
      %3287 = vmatprep.subr.bf16.mxu0 0
      %3288 = vmatpush1.bf16.msra.mxu0 0
      %3289 = vmatprep.subr.bf16.mxu0 0
      %3290 = vmatpush1.bf16.msra.mxu0 0
      %3291 = vmatprep.mubr.bf16.mxu0 0
      %3292 = vmatmul.mubr.bf16.gmra.mrb[0].mxu0 %v1621
      %v3293 = vpop.f32.mrb[0].mxu0
      %v3294 = vadd.f32 %v3233, %v3293
      %v3295 = vpop.f32.mrb[0].mxu0
      %v3296 = vpop.f32.mrb[0].mxu0
      %v3297 = vadd.f32 %v3233, %v3296
      %v3298 = vpop.f32.mrb[0].mxu0
      %3299 = vdwg.mxu0
      %v3301 = vsel %vm1824, %v3130, 0
      %v3304 = vsel %vm1824, %v3133, 0
      %v3307 = vsel %vm1824, %v3212, 0
      %v3310 = vsel %vm1824, %v3215, 0
      %3312 = vmatprep.subr.mxu0 0.0
      %3313 = vmatpush1.xpose.msra.mxu0 %v3307
      %3314 = vmatprep.subr.mxu0 0.0
      %3315 = vmatpush1.xpose.msra.mxu0 %v3310
      %3316 = vmatprep.subr.mxu0 0.0
      %3317 = vmatpush1.xpose.msra.mxu0 0.0
      %3318 = vmatprep.subr.mxu0 0.0
      %3319 = vmatpush1.xpose.msra.mxu0 0.0
      %3320 = vmatprep.subr.mxu0 0.0
      %3321 = vmatpush1.xpose.msra.mxu0 0.0
      %3322 = vmatprep.subr.mxu0 0.0
      %3323 = vmatpush1.xpose.msra.mxu0 0.0
      %3324 = vmatprep.subr.mxu0 0.0
      %3325 = vmatpush1.xpose.msra.mxu0 0.0
      %3326 = vmatprep.subr.mxu0 0.0
      %3327 = vmatpush1.xpose.msra.mxu0 0.0
      %3328 = vmatprep.subr.mxu0 0.0
      %3329 = vmatpush1.xpose.msra.mxu0 0.0
      %3330 = vmatprep.subr.mxu0 0.0
      %3331 = vmatpush1.xpose.msra.mxu0 0.0
      %3332 = vmatprep.subr.mxu0 0.0
      %3333 = vmatpush1.xpose.msra.mxu0 0.0
      %3334 = vmatprep.subr.mxu0 0.0
      %3335 = vmatpush1.xpose.msra.mxu0 0.0
      %3336 = vmatprep.subr.mxu0 0.0
      %3337 = vmatpush1.xpose.msra.mxu0 0.0
      %3338 = vmatprep.subr.mxu0 0.0
      %3339 = vmatpush1.xpose.msra.mxu0 0.0
      %3340 = vmatprep.subr.mxu0 0.0
      %3341 = vmatpush1.xpose.msra.mxu0 0.0
      %3342 = vmatprep.subr.mxu0 0.0
      %3343 = vmatpush1.xpose.msra.mxu0 0.0
      %3344 = vmatprep.subr.mxu0 0.0
      %3345 = vmatpush1.xpose.msra.mxu0 0.0
      %3346 = vmatprep.subr.mxu0 0.0
      %3347 = vmatpush1.xpose.msra.mxu0 0.0
      %3348 = vmatprep.subr.mxu0 0.0
      %3349 = vmatpush1.xpose.msra.mxu0 0.0
      %3350 = vmatprep.subr.mxu0 0.0
      %3351 = vmatpush1.xpose.msra.mxu0 0.0
      %3352 = vmatprep.subr.mxu0 0.0
      %3353 = vmatpush1.xpose.msra.mxu0 0.0
      %3354 = vmatprep.subr.mxu0 0.0
      %3355 = vmatpush1.xpose.msra.mxu0 0.0
      %3356 = vmatprep.subr.mxu0 0.0
      %3357 = vmatpush1.xpose.msra.mxu0 0.0
      %3358 = vmatprep.subr.mxu0 0.0
      %3359 = vmatpush1.xpose.msra.mxu0 0.0
      %3360 = vmatprep.subr.mxu0 0.0
      %3361 = vmatpush1.xpose.msra.mxu0 0.0
      %3362 = vmatprep.subr.mxu0 0.0
      %3363 = vmatpush1.xpose.msra.mxu0 0.0
      %3364 = vmatprep.subr.mxu0 0.0
      %3365 = vmatpush1.xpose.msra.mxu0 0.0
      %3366 = vmatprep.subr.mxu0 0.0
      %3367 = vmatpush1.xpose.msra.mxu0 0.0
      %3368 = vmatprep.subr.mxu0 0.0
      %3369 = vmatpush1.xpose.msra.mxu0 0.0
      %3370 = vmatprep.subr.mxu0 0.0
      %3371 = vmatpush1.xpose.msra.mxu0 0.0
      %3372 = vmatprep.subr.mxu0 0.0
      %3373 = vmatpush1.xpose.msra.mxu0 0.0
      %3374 = vmatprep.subr.mxu0 0.0
      %3375 = vmatpush1.xpose.msra.mxu0 0.0
      %3376 = vmatprep.mubr.f32.mxu0 0.0
      %3377 = vmatmul.mubr.f32.gmra.mrb[0].mxu0 %v3301
      %v3378 = vpop.f32.mrb[0].mxu0
      %v3379 = vadd.f32 %v1530, %v3378
      %v3380 = vpop.f32.mrb[0].mxu0
      %3381 = vmatprep.mubr.f32.mxu0 0.0
      %3382 = vmatmul.mubr.f32.gmra.mrb[0].mxu0 %v3304
      %v3383 = vpop.f32.mrb[0].mxu0
      %v3384 = vadd.f32 %v1531, %v3383
      %v3385 = vpop.f32.mrb[0].mxu0
      %3386 = vdwg.mxu0
      %v3387 = vsel %vm1824, %v3379, -inf
      %3388 = vmax.xlane.f32.xlu0 %v3387
      %v3389 = vpop.xlane.xlu0 %3388
      %v3390 = vsel %vm1824, %v3384, -inf
      %3391 = vmax.xlane.f32.xlu0 %v3390
      %v3392 = vpop.xlane.xlu0 %3391
      %v3393 = vsub.f32 %v3379, %v3389
      %v3394 = vsub.f32 %v3384, %v3392
      %v3395 = vmul.f32 %v3393, 1.442695
      %v3396 = vpow.pop %v3395
      %v3397 = vmul.f32 %v3394, 1.442695
      %v3398 = vpow.pop %v3397
      %v3399 = vsel %vm1824, %v3396, 0.0
      %3400 = vadd.xlane.f32.xlu0 %v3399
      %v3401 = vpop.xlane.xlu0 %3400
      %v3402 = vsel %vm1824, %v3398, 0.0
      %3403 = vadd.xlane.f32.xlu0 %v3402
      %v3404 = vpop.xlane.xlu0 %3403
      %v3405 = vrcp.pop %v3401
      %v3406 = vrcp.pop %v3404
      %v3407 = vmul.f32 %v3396, %v3405
      %v3408 = vmul.f32 %v3398, %v3406
      %v3410 = vsel %vm1824, %v3407, 0
      %v3413 = vsel %vm1824, %v3408, 0
      %3415 = vmatprep.subr.mxu0 0.0
      %3416 = vmatpush1.msra.mxu0 %v3294
      %3417 = vmatprep.subr.mxu0 0.0
      %3418 = vmatpush1.msra.mxu0 %v3297
      %3419 = vmatprep.subr.mxu0 0.0
      %3420 = vmatpush1.msra.mxu0 0.0
      %3421 = vmatprep.subr.mxu0 0.0
      %3422 = vmatpush1.msra.mxu0 0.0
      %3423 = vmatprep.subr.mxu0 0.0
      %3424 = vmatpush1.msra.mxu0 0.0
      %3425 = vmatprep.subr.mxu0 0.0
      %3426 = vmatpush1.msra.mxu0 0.0
      %3427 = vmatprep.subr.mxu0 0.0
      %3428 = vmatpush1.msra.mxu0 0.0
      %3429 = vmatprep.subr.mxu0 0.0
      %3430 = vmatpush1.msra.mxu0 0.0
      %3431 = vmatprep.subr.mxu0 0.0
      %3432 = vmatpush1.msra.mxu0 0.0
      %3433 = vmatprep.subr.mxu0 0.0
      %3434 = vmatpush1.msra.mxu0 0.0
      %3435 = vmatprep.subr.mxu0 0.0
      %3436 = vmatpush1.msra.mxu0 0.0
      %3437 = vmatprep.subr.mxu0 0.0
      %3438 = vmatpush1.msra.mxu0 0.0
      %3439 = vmatprep.subr.mxu0 0.0
      %3440 = vmatpush1.msra.mxu0 0.0
      %3441 = vmatprep.subr.mxu0 0.0
      %3442 = vmatpush1.msra.mxu0 0.0
      %3443 = vmatprep.subr.mxu0 0.0
      %3444 = vmatpush1.msra.mxu0 0.0
      %3445 = vmatprep.subr.mxu0 0.0
      %3446 = vmatpush1.msra.mxu0 0.0
      %3447 = vmatprep.subr.mxu0 0.0
      %3448 = vmatpush1.msra.mxu0 0.0
      %3449 = vmatprep.subr.mxu0 0.0
      %3450 = vmatpush1.msra.mxu0 0.0
      %3451 = vmatprep.subr.mxu0 0.0
      %3452 = vmatpush1.msra.mxu0 0.0
      %3453 = vmatprep.subr.mxu0 0.0
      %3454 = vmatpush1.msra.mxu0 0.0
      %3455 = vmatprep.subr.mxu0 0.0
      %3456 = vmatpush1.msra.mxu0 0.0
      %3457 = vmatprep.subr.mxu0 0.0
      %3458 = vmatpush1.msra.mxu0 0.0
      %3459 = vmatprep.subr.mxu0 0.0
      %3460 = vmatpush1.msra.mxu0 0.0
      %3461 = vmatprep.subr.mxu0 0.0
      %3462 = vmatpush1.msra.mxu0 0.0
      %3463 = vmatprep.subr.mxu0 0.0
      %3464 = vmatpush1.msra.mxu0 0.0
      %3465 = vmatprep.subr.mxu0 0.0
      %3466 = vmatpush1.msra.mxu0 0.0
      %3467 = vmatprep.subr.mxu0 0.0
      %3468 = vmatpush1.msra.mxu0 0.0
      %3469 = vmatprep.subr.mxu0 0.0
      %3470 = vmatpush1.msra.mxu0 0.0
      %3471 = vmatprep.subr.mxu0 0.0
      %3472 = vmatpush1.msra.mxu0 0.0
      %3473 = vmatprep.subr.mxu0 0.0
      %3474 = vmatpush1.msra.mxu0 0.0
      %3475 = vmatprep.subr.mxu0 0.0
      %3476 = vmatpush1.msra.mxu0 0.0
      %3477 = vmatprep.subr.mxu0 0.0
      %3478 = vmatpush1.msra.mxu0 0.0
      %3479 = vmatprep.mubr.f32.mxu0 0.0
      %3480 = vmatmul.mubr.f32.gmra.mrb[0].mxu0 %v3410
      %v3481 = vpop.f32.mrb[0].mxu0
      %v3482 = vadd.f32 0.0, %v3481
      %v3483 = vpop.f32.mrb[0].mxu0
      %3484 = vmatprep.mubr.f32.mxu0 0.0
      %3485 = vmatmul.mubr.f32.gmra.mrb[0].mxu0 %v3413
      %v3486 = vpop.f32.mrb[0].mxu0
      %v3487 = vadd.f32 0.0, %v3486
      %v3488 = vpop.f32.mrb[0].mxu0
      %3489 = vdwg.mxu0
      %v3490 = vpack.c.bf16 %v3487, %v3482
      %s3491 = scalar_lea.vmem %s975, 24
      %v3492 = vld [vmem:[%s3491] sm:$0xf]
      %v3493 = vld [vmem:[%s3491 + $0x4] sm:$0xf]
      %v3496 = vunpack.c.l.b16 %v3492
      %v3497 = vunpack.c.l.b16 %v3493
      %v3498 = vpack.c.b16 %v3497, %v3496
      %v3501 = vsel %vm1824, %v3490, 0
      %3503 = vmatprep.subr.bf16.mxu0 0
      %3504 = vmatpush1.bf16.msra.mxu0 %v3498
      %3505 = vmatprep.subr.bf16.mxu0 0
      %3506 = vmatpush1.bf16.msra.mxu0 0
      %3507 = vmatprep.subr.bf16.mxu0 0
      %3508 = vmatpush1.bf16.msra.mxu0 0
      %3509 = vmatprep.subr.bf16.mxu0 0
      %3510 = vmatpush1.bf16.msra.mxu0 0
      %3511 = vmatprep.subr.bf16.mxu0 0
      %3512 = vmatpush1.bf16.msra.mxu0 0
      %3513 = vmatprep.subr.bf16.mxu0 0
      %3514 = vmatpush1.bf16.msra.mxu0 0
      %3515 = vmatprep.subr.bf16.mxu0 0
      %3516 = vmatpush1.bf16.msra.mxu0 0
      %3517 = vmatprep.subr.bf16.mxu0 0
      %3518 = vmatpush1.bf16.msra.mxu0 0
      %3519 = vmatprep.subr.bf16.mxu0 0
      %3520 = vmatpush1.bf16.msra.mxu0 0
      %3521 = vmatprep.subr.bf16.mxu0 0
      %3522 = vmatpush1.bf16.msra.mxu0 0
      %3523 = vmatprep.subr.bf16.mxu0 0
      %3524 = vmatpush1.bf16.msra.mxu0 0
      %3525 = vmatprep.subr.bf16.mxu0 0
      %3526 = vmatpush1.bf16.msra.mxu0 0
      %3527 = vmatprep.subr.bf16.mxu0 0
      %3528 = vmatpush1.bf16.msra.mxu0 0
      %3529 = vmatprep.subr.bf16.mxu0 0
      %3530 = vmatpush1.bf16.msra.mxu0 0
      %3531 = vmatprep.subr.bf16.mxu0 0
      %3532 = vmatpush1.bf16.msra.mxu0 0
      %3533 = vmatprep.subr.bf16.mxu0 0
      %3534 = vmatpush1.bf16.msra.mxu0 0
      %3535 = vmatprep.mubr.bf16.mxu0 0
      %3536 = vmatmul.mubr.bf16.gmra.mrb[0].mxu0 %v3501
      %v3537 = vpop.f32.mrb[0].mxu0
      %v3538 = vadd.f32 0.0, %v3537
      %v3539 = vpop.f32.mrb[0].mxu0
      %v3540 = vpop.f32.mrb[0].mxu0
      %v3541 = vadd.f32 0.0, %v3540
      %v3542 = vpop.f32.mrb[0].mxu0
      %3543 = vdwg.mxu0
      %v3544 = vadd.f32 %v3052, %v3538
      %v3545 = vadd.f32 %v3053, %v3541
      %v3546 = vld [vmem:[%s978] sm:$0x1]
      %v3548 = vlaneseq
      %v3549 = vshrl.u32 %v3548, 7
      %v3550 = vsub.s32 0, %v3549
      %v3551 = vrot.slane %v3546, %v3550
      %v3553 = vadd.f32 %v3544, %v3551
      %v3554 = vadd.f32 %v3545, %v3551
      %v3555 = vld [vmem:[%s981] sm:$0x1]
      %v3556 = vld [vmem:[%s984] sm:$0x1]
      %v3557 = vsel %vm1536, %v3553, 0.0
      %3558 = vadd.xlane.f32.xlu0 %v3557
      %v3559 = vpop.xlane.xlu0 %3558
      %v3560 = vsel %vm1536, %v3554, 0.0
      %3561 = vadd.xlane.f32.xlu0 %v3560
      %v3562 = vpop.xlane.xlu0 %3561
      %v3563 = vmul.f32 %v3559, %v1543
      %v3564 = vmul.f32 %v3562, %v1543
      %v3565 = vsub.f32 %v3553, %v3563
      %v3566 = vsub.f32 %v3554, %v3564
      %v3567 = vmul.f32 %v3565, %v3565
      %v3568 = vmul.f32 %v3566, %v3566
      %v3569 = vsel %vm1536, %v3567, 0.0
      %3570 = vadd.xlane.f32.xlu0 %v3569
      %v3571 = vpop.xlane.xlu0 %3570
      %v3572 = vsel %vm1536, %v3568, 0.0
      %3573 = vadd.xlane.f32.xlu0 %v3572
      %v3574 = vpop.xlane.xlu0 %3573
      %v3575 = vmul.f32 %v3571, %v1543
      %v3576 = vmul.f32 %v3574, %v1543
      %v3577 = vadd.f32 %v3575, 1e-06
      %v3578 = vadd.f32 %v3576, 1e-06
      %v3579 = vrsqrt.pop %v3577
      %v3580 = vrsqrt.pop %v3578
      %v3581 = vmul.f32 %v3565, %v3579
      %v3582 = vmul.f32 %v3566, %v3580
      %v3584 = vlaneseq
      %v3585 = vshrl.u32 %v3584, 7
      %v3586 = vsub.s32 0, %v3585
      %v3587 = vrot.slane %v3555, %v3586
      %v3589 = vmul.f32 %v3581, %v3587
      %v3590 = vmul.f32 %v3582, %v3587
      %v3592 = vlaneseq
      %v3593 = vshrl.u32 %v3592, 7
      %v3594 = vsub.s32 0, %v3593
      %v3595 = vrot.slane %v3556, %v3594
      %v3597 = vadd.f32 %v3589, %v3595
      %v3598 = vadd.f32 %v3590, %v3595
      %v3599 = vpack.c.bf16 %v3598, %v3597
      %v3600 = vld [vmem:[%s989] sm:$0xff]
      %v3601 = vld [vmem:[%s989 + $0x8] sm:$0xff]
      %v3602 = vld [vmem:[%s989 + $0x10] sm:$0xff]
      %v3603 = vld [vmem:[%s989 + $0x18] sm:$0xff]
      %v3604 = vld [vmem:[%s989 + $0x20] sm:$0xff]
      %v3605 = vld [vmem:[%s989 + $0x28] sm:$0xff]
      %v3606 = vld [vmem:[%s989 + $0x30] sm:$0xff]
      %v3607 = vld [vmem:[%s989 + $0x38] sm:$0xff]
      %v3608 = vld [vmem:[%s993] sm:$0x3]
      %v3610 = vlaneseq
      %v3611 = vshrl.u32 %v3610, 7
      %v3612 = vsub.s32 0, %v3611
      %v3613 = vrot.slane %v3608, %v3612
      %v3614 = vlaneseq
      %v3615 = vshrl.u32 %v3614, 7
      %v3616 = vsub.s32 1, %v3615
      %v3617 = vrot.slane %v3608, %v3616
      %v3628 = vunpack.c.l.b16 %v3600
      %v3629 = vunpack.c.h.b16 %v3600
      %v3630 = vunpack.c.l.b16 %v3601
      %v3631 = vunpack.c.h.b16 %v3601
      %v3632 = vunpack.c.l.b16 %v3602
      %v3633 = vunpack.c.h.b16 %v3602
      %v3634 = vunpack.c.l.b16 %v3603
      %v3635 = vunpack.c.h.b16 %v3603
      %v3636 = vunpack.c.l.b16 %v3604
      %v3637 = vunpack.c.h.b16 %v3604
      %v3638 = vunpack.c.l.b16 %v3605
      %v3639 = vunpack.c.h.b16 %v3605
      %v3640 = vunpack.c.l.b16 %v3606
      %v3641 = vunpack.c.h.b16 %v3606
      %v3642 = vunpack.c.l.b16 %v3607
      %v3643 = vunpack.c.h.b16 %v3607
      %v3644 = vpack.c.b16 %v3630, %v3628
      %v3645 = vpack.c.b16 %v3631, %v3629
      %v3646 = vpack.c.b16 %v3634, %v3632
      %v3647 = vpack.c.b16 %v3635, %v3633
      %v3648 = vpack.c.b16 %v3638, %v3636
      %v3649 = vpack.c.b16 %v3639, %v3637
      %v3650 = vpack.c.b16 %v3642, %v3640
      %v3651 = vpack.c.b16 %v3643, %v3641
      %v3661 = vsel %vm1536, %v3599, 0
      %3663 = vmatprep.subr.bf16.mxu0 %v3645
      %3664 = vmatpush1.bf16.msra.mxu0 %v3644
      %3665 = vmatprep.subr.bf16.mxu0 %v3647
      %3666 = vmatpush1.bf16.msra.mxu0 %v3646
      %3667 = vmatprep.subr.bf16.mxu0 %v3649
      %3668 = vmatpush1.bf16.msra.mxu0 %v3648
      %3669 = vmatprep.subr.bf16.mxu0 %v3651
      %3670 = vmatpush1.bf16.msra.mxu0 %v3650
      %3671 = vmatprep.subr.bf16.mxu0 0
      %3672 = vmatpush1.bf16.msra.mxu0 0
      %3673 = vmatprep.subr.bf16.mxu0 0
      %3674 = vmatpush1.bf16.msra.mxu0 0
      %3675 = vmatprep.subr.bf16.mxu0 0
      %3676 = vmatpush1.bf16.msra.mxu0 0
      %3677 = vmatprep.subr.bf16.mxu0 0
      %3678 = vmatpush1.bf16.msra.mxu0 0
      %3679 = vmatprep.subr.bf16.mxu0 0
      %3680 = vmatpush1.bf16.msra.mxu0 0
      %3681 = vmatprep.subr.bf16.mxu0 0
      %3682 = vmatpush1.bf16.msra.mxu0 0
      %3683 = vmatprep.subr.bf16.mxu0 0
      %3684 = vmatpush1.bf16.msra.mxu0 0
      %3685 = vmatprep.subr.bf16.mxu0 0
      %3686 = vmatpush1.bf16.msra.mxu0 0
      %3687 = vmatprep.subr.bf16.mxu0 0
      %3688 = vmatpush1.bf16.msra.mxu0 0
      %3689 = vmatprep.subr.bf16.mxu0 0
      %3690 = vmatpush1.bf16.msra.mxu0 0
      %3691 = vmatprep.subr.bf16.mxu0 0
      %3692 = vmatpush1.bf16.msra.mxu0 0
      %3693 = vmatprep.subr.bf16.mxu0 0
      %3694 = vmatpush1.bf16.msra.mxu0 0
      %3695 = vmatprep.mubr.bf16.mxu0 0
      %3696 = vmatmul.mubr.bf16.gmra.mrb[0].mxu0 %v3661
      %v3697 = vpop.f32.mrb[0].mxu0
      %v3698 = vadd.f32 %v3613, %v3697
      %v3699 = vpop.f32.mrb[0].mxu0
      %v3700 = vadd.f32 %v3617, %v3699
      %v3701 = vpop.f32.mrb[0].mxu0
      %v3702 = vadd.f32 %v3613, %v3701
      %v3703 = vpop.f32.mrb[0].mxu0
      %v3704 = vadd.f32 %v3617, %v3703
      %3705 = vdwg.mxu0
      %v3706 = vmul.f32 %v3698, 0.5
      %v3707 = vmul.f32 %v3700, 0.5
      %v3708 = vmul.f32 %v3702, 0.5
      %v3709 = vmul.f32 %v3704, 0.5
      %v3710 = vmul.f32 %v3698, 0.70710677
      %v3711 = vmul.f32 %v3700, 0.70710677
      %v3712 = vmul.f32 %v3702, 0.70710677
      %v3713 = vmul.f32 %v3704, 0.70710677
      %v3714 = vand.u32 2147483647, %v3710
      %v3715 = vand.u32 2147483647, %v3711
      %v3716 = vand.u32 2147483647, %v3712
      %v3717 = vand.u32 2147483647, %v3713
      %v3718 = vmul.f32 %v3714, 0.3275911
      %v3719 = vmul.f32 %v3715, 0.3275911
      %v3720 = vmul.f32 %v3716, 0.3275911
      %v3721 = vmul.f32 %v3717, 0.3275911
      %v3722 = vadd.f32 %v3718, 1.0
      %v3723 = vadd.f32 %v3719, 1.0
      %v3724 = vadd.f32 %v3720, 1.0
      %v3725 = vadd.f32 %v3721, 1.0
      %v3726 = vrcp.pop %v3722
      %v3727 = vmul.f32 1.0, %v3726
      %v3728 = vrcp.pop %v3723
      %v3729 = vmul.f32 1.0, %v3728
      %v3730 = vrcp.pop %v3724
      %v3731 = vmul.f32 1.0, %v3730
      %v3732 = vrcp.pop %v3725
      %v3733 = vmul.f32 1.0, %v3732
      %v3734 = vmul.f32 %v3727, 1.0614054
      %v3735 = vmul.f32 %v3729, 1.0614054
      %v3736 = vmul.f32 %v3731, 1.0614054
      %v3737 = vmul.f32 %v3733, 1.0614054
      %v3738 = vadd.f32 %v3734, -1.4531521
      %v3739 = vadd.f32 %v3735, -1.4531521
      %v3740 = vadd.f32 %v3736, -1.4531521
      %v3741 = vadd.f32 %v3737, -1.4531521
      %v3742 = vmul.f32 %v3738, %v3727
      %v3743 = vmul.f32 %v3739, %v3729
      %v3744 = vmul.f32 %v3740, %v3731
      %v3745 = vmul.f32 %v3741, %v3733
      %v3746 = vadd.f32 %v3742, 1.4214138
      %v3747 = vadd.f32 %v3743, 1.4214138
      %v3748 = vadd.f32 %v3744, 1.4214138
      %v3749 = vadd.f32 %v3745, 1.4214138
      %v3750 = vmul.f32 %v3746, %v3727
      %v3751 = vmul.f32 %v3747, %v3729
      %v3752 = vmul.f32 %v3748, %v3731
      %v3753 = vmul.f32 %v3749, %v3733
      %v3754 = vadd.f32 %v3750, -0.28449672
      %v3755 = vadd.f32 %v3751, -0.28449672
      %v3756 = vadd.f32 %v3752, -0.28449672
      %v3757 = vadd.f32 %v3753, -0.28449672
      %v3758 = vmul.f32 %v3754, %v3727
      %v3759 = vmul.f32 %v3755, %v3729
      %v3760 = vmul.f32 %v3756, %v3731
      %v3761 = vmul.f32 %v3757, %v3733
      %v3762 = vadd.f32 %v3758, 0.2548296
      %v3763 = vadd.f32 %v3759, 0.2548296
      %v3764 = vadd.f32 %v3760, 0.2548296
      %v3765 = vadd.f32 %v3761, 0.2548296
      %v3766 = vmul.f32 %v3762, %v3727
      %v3767 = vmul.f32 %v3763, %v3729
      %v3768 = vmul.f32 %v3764, %v3731
      %v3769 = vmul.f32 %v3765, %v3733
      %v3770 = vsub.f32 0.0, %v3714
      %v3771 = vsub.f32 0.0, %v3715
      %v3772 = vsub.f32 0.0, %v3716
      %v3773 = vsub.f32 0.0, %v3717
      %v3774 = vmul.f32 %v3770, %v3714
      %v3775 = vmul.f32 %v3771, %v3715
      %v3776 = vmul.f32 %v3772, %v3716
      %v3777 = vmul.f32 %v3773, %v3717
      %v3778 = vmul.f32 %v3774, 1.442695
      %v3779 = vpow.pop %v3778
      %v3780 = vmul.f32 %v3775, 1.442695
      %v3781 = vpow.pop %v3780
      %v3782 = vmul.f32 %v3776, 1.442695
      %v3783 = vpow.pop %v3782
      %v3784 = vmul.f32 %v3777, 1.442695
      %v3785 = vpow.pop %v3784
      %v3786 = vmul.f32 %v3766, %v3779
      %v3787 = vmul.f32 %v3767, %v3781
      %v3788 = vmul.f32 %v3768, %v3783
      %v3789 = vmul.f32 %v3769, %v3785
      %v3790 = vsub.f32 1.0, %v3786
      %v3791 = vsub.f32 1.0, %v3787
      %v3792 = vsub.f32 1.0, %v3788
      %v3793 = vsub.f32 1.0, %v3789
      %vm3794 = vcmp.lt.f32.partialorder %v3710, 0.0
      %vm3795 = vcmp.lt.f32.partialorder %v3711, 0.0
      %vm3796 = vcmp.lt.f32.partialorder %v3712, 0.0
      %vm3797 = vcmp.lt.f32.partialorder %v3713, 0.0
      %v3798 = vsub.f32 0.0, %v3790
      %v3799 = vsub.f32 0.0, %v3791
      %v3800 = vsub.f32 0.0, %v3792
      %v3801 = vsub.f32 0.0, %v3793
      %v3802 = vsel %vm3794, %v3798, %v3790
      %v3803 = vsel %vm3795, %v3799, %v3791
      %v3804 = vsel %vm3796, %v3800, %v3792
      %v3805 = vsel %vm3797, %v3801, %v3793
      %v3806 = vadd.f32 %v3802, 1.0
      %v3807 = vadd.f32 %v3803, 1.0
      %v3808 = vadd.f32 %v3804, 1.0
      %v3809 = vadd.f32 %v3805, 1.0
      %v3810 = vmul.f32 %v3706, %v3806
      %v3811 = vmul.f32 %v3707, %v3807
      %v3812 = vmul.f32 %v3708, %v3808
      %v3813 = vmul.f32 %v3709, %v3809
      %v3814 = vpack.c.bf16 %v3812, %v3810
      %v3815 = vpack.c.bf16 %v3813, %v3811
      %v3816 = vld [vmem:[%s998] sm:$0xf]
      %v3817 = vld [vmem:[%s998 + $0x4] sm:$0xf]
      %v3818 = vld [vmem:[%s998 + $0x8] sm:$0xf]
      %v3819 = vld [vmem:[%s998 + $0xc] sm:$0xf]
      %v3820 = vld [vmem:[%s998 + $0x10] sm:$0xf]
      %v3821 = vld [vmem:[%s998 + $0x14] sm:$0xf]
      %v3822 = vld [vmem:[%s998 + $0x18] sm:$0xf]
      %v3823 = vld [vmem:[%s998 + $0x1c] sm:$0xf]
      %v3824 = vld [vmem:[%s998 + $0x20] sm:$0xf]
      %v3825 = vld [vmem:[%s998 + $0x24] sm:$0xf]
      %v3826 = vld [vmem:[%s998 + $0x28] sm:$0xf]
      %v3827 = vld [vmem:[%s998 + $0x2c] sm:$0xf]
      %v3828 = vld [vmem:[%s998 + $0x30] sm:$0xf]
      %v3829 = vld [vmem:[%s998 + $0x34] sm:$0xf]
      %v3830 = vld [vmem:[%s998 + $0x38] sm:$0xf]
      %v3831 = vld [vmem:[%s998 + $0x3c] sm:$0xf]
      %v3832 = vld [vmem:[%s998 + $0x40] sm:$0xf]
      %v3833 = vld [vmem:[%s998 + $0x44] sm:$0xf]
      %v3834 = vld [vmem:[%s998 + $0x48] sm:$0xf]
      %v3835 = vld [vmem:[%s998 + $0x4c] sm:$0xf]
      %v3836 = vld [vmem:[%s998 + $0x50] sm:$0xf]
      %v3837 = vld [vmem:[%s998 + $0x54] sm:$0xf]
      %v3838 = vld [vmem:[%s998 + $0x58] sm:$0xf]
      %v3839 = vld [vmem:[%s998 + $0x5c] sm:$0xf]
      %v3840 = vld [vmem:[%s998 + $0x60] sm:$0xf]
      %v3841 = vld [vmem:[%s998 + $0x64] sm:$0xf]
      %v3842 = vld [vmem:[%s998 + $0x68] sm:$0xf]
      %v3843 = vld [vmem:[%s998 + $0x6c] sm:$0xf]
      %v3844 = vld [vmem:[%s998 + $0x70] sm:$0xf]
      %v3845 = vld [vmem:[%s998 + $0x74] sm:$0xf]
      %v3846 = vld [vmem:[%s998 + $0x78] sm:$0xf]
      %v3847 = vld [vmem:[%s998 + $0x7c] sm:$0xf]
      %v3880 = vunpack.c.l.b16 %v3816
      %v3881 = vunpack.c.l.b16 %v3817
      %v3882 = vunpack.c.l.b16 %v3818
      %v3883 = vunpack.c.l.b16 %v3819
      %v3884 = vunpack.c.l.b16 %v3820
      %v3885 = vunpack.c.l.b16 %v3821
      %v3886 = vunpack.c.l.b16 %v3822
      %v3887 = vunpack.c.l.b16 %v3823
      %v3888 = vunpack.c.l.b16 %v3824
      %v3889 = vunpack.c.l.b16 %v3825
      %v3890 = vunpack.c.l.b16 %v3826
      %v3891 = vunpack.c.l.b16 %v3827
      %v3892 = vunpack.c.l.b16 %v3828
      %v3893 = vunpack.c.l.b16 %v3829
      %v3894 = vunpack.c.l.b16 %v3830
      %v3895 = vunpack.c.l.b16 %v3831
      %v3896 = vunpack.c.l.b16 %v3832
      %v3897 = vunpack.c.l.b16 %v3833
      %v3898 = vunpack.c.l.b16 %v3834
      %v3899 = vunpack.c.l.b16 %v3835
      %v3900 = vunpack.c.l.b16 %v3836
      %v3901 = vunpack.c.l.b16 %v3837
      %v3902 = vunpack.c.l.b16 %v3838
      %v3903 = vunpack.c.l.b16 %v3839
      %v3904 = vunpack.c.l.b16 %v3840
      %v3905 = vunpack.c.l.b16 %v3841
      %v3906 = vunpack.c.l.b16 %v3842
      %v3907 = vunpack.c.l.b16 %v3843
      %v3908 = vunpack.c.l.b16 %v3844
      %v3909 = vunpack.c.l.b16 %v3845
      %v3910 = vunpack.c.l.b16 %v3846
      %v3911 = vunpack.c.l.b16 %v3847
      %v3912 = vpack.c.b16 %v3881, %v3880
      %v3913 = vpack.c.b16 %v3883, %v3882
      %v3914 = vpack.c.b16 %v3885, %v3884
      %v3915 = vpack.c.b16 %v3887, %v3886
      %v3916 = vpack.c.b16 %v3889, %v3888
      %v3917 = vpack.c.b16 %v3891, %v3890
      %v3918 = vpack.c.b16 %v3893, %v3892
      %v3919 = vpack.c.b16 %v3895, %v3894
      %v3920 = vpack.c.b16 %v3897, %v3896
      %v3921 = vpack.c.b16 %v3899, %v3898
      %v3922 = vpack.c.b16 %v3901, %v3900
      %v3923 = vpack.c.b16 %v3903, %v3902
      %v3924 = vpack.c.b16 %v3905, %v3904
      %v3925 = vpack.c.b16 %v3907, %v3906
      %v3926 = vpack.c.b16 %v3909, %v3908
      %v3927 = vpack.c.b16 %v3911, %v3910
      %3944 = vmatprep.subr.bf16.mxu0 0
      %3945 = vmatpush1.bf16.msra.mxu0 %v3912
      %3946 = vmatprep.subr.bf16.mxu0 0
      %3947 = vmatpush1.bf16.msra.mxu0 %v3913
      %3948 = vmatprep.subr.bf16.mxu0 0
      %3949 = vmatpush1.bf16.msra.mxu0 %v3914
      %3950 = vmatprep.subr.bf16.mxu0 0
      %3951 = vmatpush1.bf16.msra.mxu0 %v3915
      %3952 = vmatprep.subr.bf16.mxu0 0
      %3953 = vmatpush1.bf16.msra.mxu0 %v3916
      %3954 = vmatprep.subr.bf16.mxu0 0
      %3955 = vmatpush1.bf16.msra.mxu0 %v3917
      %3956 = vmatprep.subr.bf16.mxu0 0
      %3957 = vmatpush1.bf16.msra.mxu0 %v3918
      %3958 = vmatprep.subr.bf16.mxu0 0
      %3959 = vmatpush1.bf16.msra.mxu0 %v3919
      %3960 = vmatprep.subr.bf16.mxu0 0
      %3961 = vmatpush1.bf16.msra.mxu0 %v3920
      %3962 = vmatprep.subr.bf16.mxu0 0
      %3963 = vmatpush1.bf16.msra.mxu0 %v3921
      %3964 = vmatprep.subr.bf16.mxu0 0
      %3965 = vmatpush1.bf16.msra.mxu0 %v3922
      %3966 = vmatprep.subr.bf16.mxu0 0
      %3967 = vmatpush1.bf16.msra.mxu0 %v3923
      %3968 = vmatprep.subr.bf16.mxu0 0
      %3969 = vmatpush1.bf16.msra.mxu0 %v3924
      %3970 = vmatprep.subr.bf16.mxu0 0
      %3971 = vmatpush1.bf16.msra.mxu0 %v3925
      %3972 = vmatprep.subr.bf16.mxu0 0
      %3973 = vmatpush1.bf16.msra.mxu0 %v3926
      %3974 = vmatprep.subr.bf16.mxu0 0
      %3975 = vmatpush1.bf16.msra.mxu0 %v3927
      %3976 = vmatprep.mubr.bf16.mxu0 %v3815
      %3977 = vmatmul.mubr.bf16.gmra.mrb[0].mxu0 %v3814
      %v3978 = vpop.f32.mrb[0].mxu0
      %v3979 = vadd.f32 0.0, %v3978
      %v3980 = vpop.f32.mrb[0].mxu0
      %v3981 = vpop.f32.mrb[0].mxu0
      %v3982 = vadd.f32 0.0, %v3981
      %v3983 = vpop.f32.mrb[0].mxu0
      %3984 = vdwg.mxu0
      %v3985 = vadd.f32 %v3553, %v3979
      %v3986 = vadd.f32 %v3554, %v3982
      %v3987 = vld [vmem:[%s1001] sm:$0x1]
      %v3989 = vlaneseq
      %v3990 = vshrl.u32 %v3989, 7
      %v3991 = vsub.s32 0, %v3990
      %v3992 = vrot.slane %v3987, %v3991
      %v3994 = vadd.f32 %v3985, %v3992
      %v3995 = vadd.f32 %v3986, %v3992
      %3996 = vst.msk [vmem:[#allocation2] sm:$0xff] %vm1536, %v3994
      %3997 = vst.msk [vmem:[#allocation2 + $0x8] sm:$0xff] %vm1536, %v3995
      %p3998 = scmp.eq.s32.totalorder %s36, 1
      // Predicated region
      $region125: #{build_transformer_forward.1} parent=119 // pred_check
        %p3999 = pneg %p3998
      $region126: #{build_transformer_forward.1} parent=119 // pred_check_branch
        %4001 = sbr.rel (%p3999) target = $region128
      $region127: #{build_transformer_forward.1} parent=119 // pred_region
        %v4002 = vld [vmem:[%s20] sm:$0x1]
        %v4003 = vld [vmem:[%s21] sm:$0x1]
        %vm4004 = vcmask 517120
        %v4005 = vsel %vm4004, %v3995, 0.0
        %4006 = vadd.xlane.f32.xlu0 %v4005
        %v4007 = vpop.xlane.xlu0 %4006
        %v4008 = vmul.f32 %v4007, %v1543
        %v4009 = vsub.f32 %v3995, %v4008
        %v4010 = vmul.f32 %v4009, %v4009
        %v4011 = vsel %vm4004, %v4010, 0.0
        %4012 = vadd.xlane.f32.xlu0 %v4011
        %v4013 = vpop.xlane.xlu0 %4012
        %v4014 = vmul.f32 %v4013, %v1543
        %v4015 = vadd.f32 %v4014, 1e-06
        %v4016 = vrsqrt.pop %v4015
        %v4017 = vmul.f32 %v4009, %v4016
        %v4019 = vlaneseq
        %v4020 = vshrl.u32 %v4019, 7
        %v4021 = vsub.s32 0, %v4020
        %v4022 = vrot.slane %v4002, %v4021
        %v4024 = vmul.f32 %v4017, %v4022
        %v4026 = vlaneseq
        %v4027 = vshrl.u32 %v4026, 7
        %v4028 = vsub.s32 0, %v4027
        %v4029 = vrot.slane %v4003, %v4028
        %v4031 = vadd.f32 %v4024, %v4029
        %v4032 = vsel %vm4004, %v4031, 0.0
        %v4033 = vrot.slane %v4032, 4
        %v4034 = vadd.f32 %v4032, %v4033
        %v4035 = vrot.slane %v4034, 2
        %v4036 = vadd.f32 %v4034, %v4035
        %v4037 = vrot.slane %v4036, 1
        %v4038 = vadd.f32 %v4036, %v4037
        %v4039 = vrcp.pop 2.0
        %v4040 = vmul.f32 %v4038, %v4039
        %v4041 = vsub.f32 %v4031, %v4040
        %v4042 = vmul.f32 %v4041, %v4041
        %v4043 = vsel %vm4004, %v4042, 0.0
        %v4044 = vrot.slane %v4043, 4
        %v4045 = vadd.f32 %v4043, %v4044
        %v4046 = vrot.slane %v4045, 2
        %v4047 = vadd.f32 %v4045, %v4046
        %v4048 = vrot.slane %v4047, 1
        %v4049 = vadd.f32 %v4047, %v4048
        %v4050 = vmul.f32 %v4049, %v4039
        %v4051 = vadd.f32 %v4050, 1e-05
        %v4052 = vrsqrt.pop %v4051
        %v4053 = vmul.f32 %v4041, %v4052
        %v4054 = vld [vmem:[%s22] sm:$0x1]
        %v4056 = vlaneseq
        %v4057 = vshrl.u32 %v4056, 7
        %v4058 = vsub.s32 0, %v4057
        %v4059 = vrot.slane %v4054, %v4058
        %v4061 = vmul.f32 %v4053, %v4059
        %v4062 = vld [vmem:[%s23] sm:$0x1]
        %v4064 = vlaneseq
        %v4065 = vshrl.u32 %v4064, 7
        %v4066 = vsub.s32 0, %v4065
        %v4067 = vrot.slane %v4062, %v4066
        %v4069 = vadd.f32 %v4061, %v4067
        %v4070 = vld [vmem:[%s24] sm:$0xff]
        %v4071 = vld [vmem:[%s24 + $0x8] sm:$0xff]
        %v4072 = vld [vmem:[%s24 + $0x10] sm:$0xff]
        %v4073 = vld [vmem:[%s24 + $0x18] sm:$0xff]
        %v4074 = vld [vmem:[%s24 + $0x20] sm:$0xff]
        %v4075 = vld [vmem:[%s24 + $0x28] sm:$0xff]
        %v4076 = vld [vmem:[%s24 + $0x30] sm:$0xff]
        %v4077 = vld [vmem:[%s24 + $0x38] sm:$0xff]
        %v4079 = vsel %vm1536, %v4069, 0
        %4081 = vmatprep.subr.mxu0 0.0
        %4082 = vmatpush1.msra.mxu0 %v4070
        %4083 = vmatprep.subr.mxu0 0.0
        %4084 = vmatpush1.msra.mxu0 %v4071
        %4085 = vmatprep.subr.mxu0 0.0
        %4086 = vmatpush1.msra.mxu0 %v4072
        %4087 = vmatprep.subr.mxu0 0.0
        %4088 = vmatpush1.msra.mxu0 %v4073
        %4089 = vmatprep.subr.mxu0 0.0
        %4090 = vmatpush1.msra.mxu0 %v4074
        %4091 = vmatprep.subr.mxu0 0.0
        %4092 = vmatpush1.msra.mxu0 %v4075
        %4093 = vmatprep.subr.mxu0 0.0
        %4094 = vmatpush1.msra.mxu0 %v4076
        %4095 = vmatprep.subr.mxu0 0.0
        %4096 = vmatpush1.msra.mxu0 %v4077
        %4097 = vmatprep.subr.mxu0 0.0
        %4098 = vmatpush1.msra.mxu0 0.0
        %4099 = vmatprep.subr.mxu0 0.0
        %4100 = vmatpush1.msra.mxu0 0.0
        %4101 = vmatprep.subr.mxu0 0.0
        %4102 = vmatpush1.msra.mxu0 0.0
        %4103 = vmatprep.subr.mxu0 0.0
        %4104 = vmatpush1.msra.mxu0 0.0
        %4105 = vmatprep.subr.mxu0 0.0
        %4106 = vmatpush1.msra.mxu0 0.0
        %4107 = vmatprep.subr.mxu0 0.0
        %4108 = vmatpush1.msra.mxu0 0.0
        %4109 = vmatprep.subr.mxu0 0.0
        %4110 = vmatpush1.msra.mxu0 0.0
        %4111 = vmatprep.subr.mxu0 0.0
        %4112 = vmatpush1.msra.mxu0 0.0
        %4113 = vmatprep.subr.mxu0 0.0
        %4114 = vmatpush1.msra.mxu0 0.0
        %4115 = vmatprep.subr.mxu0 0.0
        %4116 = vmatpush1.msra.mxu0 0.0
        %4117 = vmatprep.subr.mxu0 0.0
        %4118 = vmatpush1.msra.mxu0 0.0
        %4119 = vmatprep.subr.mxu0 0.0
        %4120 = vmatpush1.msra.mxu0 0.0
        %4121 = vmatprep.subr.mxu0 0.0
        %4122 = vmatpush1.msra.mxu0 0.0
        %4123 = vmatprep.subr.mxu0 0.0
        %4124 = vmatpush1.msra.mxu0 0.0
        %4125 = vmatprep.subr.mxu0 0.0
        %4126 = vmatpush1.msra.mxu0 0.0
        %4127 = vmatprep.subr.mxu0 0.0
        %4128 = vmatpush1.msra.mxu0 0.0
        %4129 = vmatprep.subr.mxu0 0.0
        %4130 = vmatpush1.msra.mxu0 0.0
        %4131 = vmatprep.subr.mxu0 0.0
        %4132 = vmatpush1.msra.mxu0 0.0
        %4133 = vmatprep.subr.mxu0 0.0
        %4134 = vmatpush1.msra.mxu0 0.0
        %4135 = vmatprep.subr.mxu0 0.0
        %4136 = vmatpush1.msra.mxu0 0.0
        %4137 = vmatprep.subr.mxu0 0.0
        %4138 = vmatpush1.msra.mxu0 0.0
        %4139 = vmatprep.subr.mxu0 0.0
        %4140 = vmatpush1.msra.mxu0 0.0
        %4141 = vmatprep.subr.mxu0 0.0
        %4142 = vmatpush1.msra.mxu0 0.0
        %4143 = vmatprep.subr.mxu0 0.0
        %4144 = vmatpush1.msra.mxu0 0.0
        %4145 = vmatprep.mubr.f32.mxu0 0.0
        %4146 = vmatmul.mubr.f32.gmra.mrb[0].mxu0 %v4079
        %v4147 = vpop.f32.mrb[0].mxu0
        %v4148 = vadd.f32 0.0, %v4147
        %v4149 = vpop.f32.mrb[0].mxu0
        %4150 = vdwg.mxu0
        %4152 = vrot.lane.b32.xlu0 %v4031, 64
        %v4153 = vpop.permute.xlu0 %4152
        %v4155 = vsel %vm1536, %v4148, %v4153
        %vm4156 = vcmask 1041408
        %v4157 = vsel %vm4156, %v4155, 0.0
        %4158 = vst [vmem:[%s25] sm:$0xff] %v4157
      $region128: #{build_transformer_forward.1} parent=119 // pred_fallthru
        _
      // Predicated region
      $region129: #{build_transformer_forward.1} parent=119 // pred_check
        %p4159 = pneg %p654
      $region130: #{build_transformer_forward.1} parent=119 // pred_check_branch
        %4161 = sbr.rel (%p4159) target = $region132
      $region131: #{build_transformer_forward.1} parent=119 // pred_region
        _
      $region132: #{build_transformer_forward.1} parent=119 // pred_fallthru
        _
      // Predicated region
      $region133: #{build_transformer_forward.1} parent=119 // pred_check
        %p4162 = pneg %p654
      $region134: #{build_transformer_forward.1} parent=119 // pred_check_branch
        %4164 = sbr.rel (%p4162) target = $region136
      $region135: #{build_transformer_forward.1} parent=119 // pred_region
        _
      $region136: #{build_transformer_forward.1} parent=119 // pred_fallthru
        _
    $region120: #{build_transformer_forward.1} parent=5 // pred_fallthru
      _
    %p4165 = scmp.le.s32.totalorder 2, %s31
    // Predicated region
    $region137: #{build_transformer_forward.1} parent=5 // pred_check
      %p4166 = pneg %p4165
    $region138: #{build_transformer_forward.1} parent=5 // pred_check_branch
      %4168 = sbr.rel (%p4166) target = $region140
    $region139: #{build_transformer_forward.1} parent=5 // pred_region
      %s4169 = ssub.s32 %s31, 2
    $region140: #{build_transformer_forward.1} parent=5 // pred_fallthru
      _
  $region6: #{build_transformer_forward.1} parent=0 // loop_footer
    %s35 = sadd.s32 1, %s31
  $region7: #{build_transformer_forward.1} parent=0 // loop_footer_branch
    %30 = sbr.rel target = $region3
  $region8: #{build_transformer_forward.1} parent=0 // loop_exit
    _

</llo_original>
